<compile_context>
chip_gen: v6e
topology: v6e:2x2x1
jax: 0.10.0
libtpu: 0.0.40
codegen_flags: <defaults>
</compile_context>

<pallas_src>
import jax
import jax.numpy as jnp
from jax import lax
from jax.experimental import pallas as pl
from jax.experimental.pallas import tpu as pltpu

_BATCH_TILE = 128  # max images per grid step


# ----------------------------------------------------------------------------
# Fused forward kernel (one batch tile per grid step).
#
# Activation layouts (B = batch tile):
#   conv1 out : rows (oh, b)   cols j*120 + ow1*10 + oc     (24B, 240)
#   pooled    : rows (oh1, b)  cols ow1*10 + oc             (12B, 120)
#   conv2 out : rows (oh2, b)  cols j2*80 + ow3*20 + oc     (8B, 160)
#   pooled    : rows (oh3, b)  cols ow3*20 + oc             (4B, 80)
#   fc1/fc2   : rows b         cols features                (B, 64) / (B, 128)
# where ow = 2*ow1 + j and ow2 = 2*ow3 + j2 (parity-major columns), so both
# max-pools are static slices + elementwise max.
# ----------------------------------------------------------------------------
def _net_fused_kernel(x_ref, k1_ref, b1_ref, k2_ref, b2_ref,
                      w3_ref, b3_ref, w4_ref, b4_ref, o_ref):
    f32, bf16 = jnp.float32, jnp.bfloat16
    B = x_ref.shape[1]  # static batch tile

    # ---- conv1 (1->10, k=5): 5 row-shifted matmuls, bf16 in / f32 acc -------
    acc1 = None
    for dy in range(5):
        xs = x_ref[dy:dy + 24].reshape(24 * B, 28)                 # (24B, 28) bf16
        p = jnp.dot(xs, k1_ref[dy], preferred_element_type=f32)    # (24B, 240)
        acc1 = p if acc1 is None else acc1 + p
    acc1 = acc1 + b1_ref[...]

    # ---- 2x2 max-pool + relu (24x24 -> 12x12): slices + max only ------------
    p1 = jnp.maximum(acc1[:, :120], acc1[:, 120:])                 # width pairs
    p1 = p1.reshape(12, 2 * B, 120)
    h1 = jnp.maximum(p1[:, :B, :], p1[:, B:, :]).reshape(12 * B, 120)  # height pairs
    h1 = jnp.maximum(h1, 0.0).astype(bf16)                         # rows (oh1, b)

    # ---- conv2 (10->20, k=5); nn.Dropout2d = identity at inference ----------
    acc2 = None
    for dy in range(5):
        hs = h1[dy * B:(dy + 8) * B, :]                            # (8B, 120)
        p = jnp.dot(hs, k2_ref[dy], preferred_element_type=f32)    # (8B, 160)
        acc2 = p if acc2 is None else acc2 + p
    acc2 = acc2 + b2_ref[...]

    # ---- 2x2 max-pool + relu (8x8 -> 4x4) ------------------------------------
    p2 = jnp.maximum(acc2[:, :80], acc2[:, 80:])
    p2 = p2.reshape(4, 2 * B, 80)
    h2 = jnp.maximum(p2[:, :B, :], p2[:, B:, :]).reshape(4 * B, 80)
    h2 = jnp.maximum(h2, 0.0).astype(bf16)                         # rows (oh3, b)

    # ---- flatten (PyTorch (c,h,w) order baked into w3) + fc1 + relu ---------
    a3 = None
    for q in range(4):                                             # q = oh3
        blk = h2[q * B:(q + 1) * B, :]                             # (B, 80)
        p = jnp.dot(blk, w3_ref[q], preferred_element_type=f32)    # (B, 64)
        a3 = p if a3 is None else a3 + p
    h3 = jnp.maximum(a3 + b3_ref[...], 0.0).astype(bf16)
    # F.dropout = identity at inference.
    # TODO(synk): training-mode dropout via pltpu.prng_* not implemented.

    # ---- fc2 + log_softmax (classes padded to 128 lanes; pads carry -1e30) --
    logits = jnp.dot(h3, w4_ref[...], preferred_element_type=f32) + b4_ref[...]
    m = jnp.max(logits, axis=-1, keepdims=True)
    s = logits - m
    lse = jnp.log(jnp.sum(jnp.exp(s), axis=-1, keepdims=True))
    o_ref[...] = (s - lse).astype(o_ref.dtype)


# ----------------------------------------------------------------------------
# One-time host-side weight preparation (banding / parity-major reorder / bf16).
# ----------------------------------------------------------------------------
def prepare_params(params):
    f32, bf16 = jnp.float32, jnp.bfloat16
    hp = lax.Precision.HIGHEST
    w1 = params["conv1_w"].astype(f32)   # (10, 1, 5, 5)
    b1 = params["conv1_b"].astype(f32)
    w2 = params["conv2_w"].astype(f32)   # (20, 10, 5, 5)
    b2 = params["conv2_b"].astype(f32)
    fw1 = params["fc1_w"].astype(f32)    # (50, 320)   PyTorch Linear: (out, in)
    fb1 = params["fc1_b"].astype(f32)
    fw2 = params["fc2_w"].astype(f32)    # (10, 50)
    fb2 = params["fc2_b"].astype(f32)

    dxs = jnp.arange(5)

    # conv1 banded: k1[dy, w, j*120 + ow1*10 + oc] = w1[oc, 0, dy, w - (2*ow1 + j)]
    ws = jnp.arange(28)
    ows = jnp.arange(24)
    sel1 = (ws[None, :, None] == ows[None, None, :] + dxs[:, None, None]).astype(f32)
    k1 = jnp.einsum("xwo,cyx->ywoc", sel1, w1[:, 0], precision=hp)   # (5, 28, 24, 10)
    k1 = k1.reshape(5, 28, 12, 2, 10).transpose(0, 1, 3, 2, 4)       # (dy, w, j, ow1, oc)
    k1 = k1.reshape(5, 28, 240).astype(bf16)
    b1t = jnp.tile(b1, 24).reshape(1, 240)

    # conv2 banded: k2[dy, ow1*10 + ic, j2*80 + ow3*20 + oc] = w2[oc, ic, dy, ow1 - (2*ow3 + j2)]
    ow1s = jnp.arange(12)
    ow2s = jnp.arange(8)
    sel2 = (ow1s[None, :, None] == ow2s[None, None, :] + dxs[:, None, None]).astype(f32)
    k2 = jnp.einsum("xab,ciyx->yaibc", sel2, w2, precision=hp)       # (5, 12, 10, 8, 20)
    k2 = k2.reshape(5, 12, 10, 4, 2, 20).transpose(0, 1, 2, 4, 3, 5)  # (dy, ow1, ic, j2, ow3, oc)
    k2 = k2.reshape(5, 120, 160).astype(bf16)
    b2t = jnp.tile(b2, 8).reshape(1, 160)

    # fc1: w3[oh3, ow3*20 + oc, jf] = fc1_w[jf, oc*16 + oh3*4 + ow3]   (jf padded 50->64)
    w3 = fw1.reshape(50, 20, 4, 4).transpose(2, 3, 1, 0).reshape(4, 80, 50)
    w3 = jnp.pad(w3, ((0, 0), (0, 0), (0, 14))).astype(bf16)         # (4, 80, 64)
    b3t = jnp.pad(fb1, (0, 14)).reshape(1, 64)

    # fc2: w4[jf, k] = fc2_w[k, jf]; classes padded 10->128 (lane-dense output),
    # padded classes get bias -1e30 so they vanish under log_softmax.
    w4 = jnp.pad(fw2.T, ((0, 14), (0, 118))).astype(bf16)            # (64, 128)
    b4t = jnp.concatenate([fb2, jnp.full((118,), -1e30, f32)]).reshape(1, 128)

    return {"k1": k1, "b1": b1t, "k2": k2, "b2": b2t,
            "w3": w3, "b3": b3t, "w4": w4, "b4": b4t}


# ----------------------------------------------------------------------------
# Forward pass: single fused pallas_call, 1-D grid over batch tiles.
# ----------------------------------------------------------------------------
def _pick_batch_tile(n):
    # ~half the batch per step (>=2 grid steps feed both TensorCores on
    # megacore parts), capped at _BATCH_TILE, always a multiple of 8.
    half = (((n + 1) // 2) + 7) // 8 * 8
    return max(8, min(_BATCH_TILE, half))


@jax.jit
def net_forward(prep, x):
    """x: (N, 1, 28, 28) float32  ->  (N, 10) log-probabilities."""
    n = x.shape[0]
    bt = _pick_batch_tile(n)
    n_pad = -(-n // bt) * bt
    xs = x.reshape(n, 28, 28).astype(jnp.bfloat16)
    if n_pad != n:
        xs = jnp.pad(xs, ((0, n_pad - n), (0, 0), (0, 0)))
    xs = jnp.transpose(xs, (1, 0, 2))            # (28, n_pad, 28): rows (h, b)

    out = pl.pallas_call(
        _net_fused_kernel,
        out_shape=jax.ShapeDtypeStruct((n_pad, 128), jnp.float32),
        grid=(n_pad // bt,),
        in_specs=[
            pl.BlockSpec((28, bt, 28), lambda i: (0, i, 0)),    # x tile (bf16)
            pl.BlockSpec((5, 28, 240), lambda i: (0, 0, 0)),    # conv1 banded (bf16)
            pl.BlockSpec((1, 240), lambda i: (0, 0)),           # conv1 bias (f32)
            pl.BlockSpec((5, 120, 160), lambda i: (0, 0, 0)),   # conv2 banded (bf16)
            pl.BlockSpec((1, 160), lambda i: (0, 0)),           # conv2 bias (f32)
            pl.BlockSpec((4, 80, 64), lambda i: (0, 0, 0)),     # fc1 weights (bf16)
            pl.BlockSpec((1, 64), lambda i: (0, 0)),            # fc1 bias (f32)
            pl.BlockSpec((64, 128), lambda i: (0, 0)),          # fc2 weights (bf16)
            pl.BlockSpec((1, 128), lambda i: (0, 0)),           # fc2 bias (f32)
        ],
        out_specs=pl.BlockSpec((bt, 128), lambda i: (i, 0)),    # lane-dense store
        compiler_params=pltpu.CompilerParams(
            dimension_semantics=("parallel",),
            vmem_limit_bytes=48 * 1024 * 1024),
    )(xs, prep["k1"], prep["b1"], prep["k2"], prep["b2"],
      prep["w3"], prep["b3"], prep["w4"], prep["b4"])
    return out[:n, :10]


# ----------------------------------------------------------------------------
# Parameter init + pure-JAX (XLA) reference for cross-checking.
# ----------------------------------------------------------------------------
def init_params(key):
    ks = jax.random.split(key, 8)

    def _w(k, shape, fan_in):
        return jax.random.normal(k, shape, jnp.float32) / jnp.sqrt(fan_in)

    return {
        "conv1_w": _w(ks[0], (10, 1, 5, 5), 25),
        "conv1_b": _w(ks[1], (10,), 25),
        "conv2_w": _w(ks[2], (20, 10, 5, 5), 250),
        "conv2_b": _w(ks[3], (20,), 250),
        "fc1_w": _w(ks[4], (50, 320), 320),
        "fc1_b": _w(ks[5], (50,), 320),
        "fc2_w": _w(ks[6], (10, 50), 50),
        "fc2_b": _w(ks[7], (10,), 50),
    }


def _maxpool2_ref(x):
    n, c, h, w = x.shape
    return x.reshape(n, c, h // 2, 2, w // 2, 2).max(axis=(3, 5))


@jax.jit
def reference_forward(params, x):
    dn = ("NCHW", "OIHW", "NCHW")
    hp = lax.Precision.HIGHEST
    h = lax.conv_general_dilated(x, params["conv1_w"], (1, 1), "VALID",
                                 dimension_numbers=dn, precision=hp)
    h = h + params["conv1_b"][None, :, None, None]
    h = jax.nn.relu(_maxpool2_ref(h))
    h = lax.conv_general_dilated(h, params["conv2_w"], (1, 1), "VALID",
                                 dimension_numbers=dn, precision=hp)
    h = h + params["conv2_b"][None, :, None, None]
    h = jax.nn.relu(_maxpool2_ref(h))
    h = h.reshape(h.shape[0], -1)
    h = jax.nn.relu(jnp.dot(h, params["fc1_w"].T, precision=hp) + params["fc1_b"])
    h = jnp.dot(h, params["fc2_w"].T, precision=hp) + params["fc2_b"]
    return jax.nn.log_softmax(h, axis=-1)


if __name__ == "__main__":
    key = jax.random.PRNGKey(0)
    k_x, k_p = jax.random.split(key)
    x = jax.random.normal(k_x, (2, 1, 28, 28), jnp.float32)  # fc1(320) fixes 28x28
    params = init_params(k_p)
    prep = prepare_params(params)

    out = jax.block_until_ready(net_forward(prep, x))

    assert out.shape == (2, 10), out.shape
    assert bool(jnp.all(jnp.isfinite(out)))
    # log-softmax rows must exp-sum to 1
    assert jnp.allclose(jnp.sum(jnp.exp(out), axis=-1), 1.0, atol=1e-3)
    # cross-check against a pure-JAX/XLA f32 reference of the same network
    ref = jax.block_until_ready(reference_forward(params, x))
    max_diff = float(jnp.max(jnp.abs(out - ref)))
    assert jnp.allclose(out, ref, atol=5e-2, rtol=5e-2), (
        "max abs diff vs reference: %f" % max_diff)
    print("KERNEL_OK")
</pallas_src>

<mosaic_0001>
module attributes {stable_mosaic.version = 11 : i64} {
  func.func @_net_fused_kernel(%arg0: i32, %arg1: memref<28x8x28xbf16, #tpu.memory_space<vmem>>, %arg2: memref<5x28x240xbf16, #tpu.memory_space<vmem>>, %arg3: memref<1x240xf32, #tpu.memory_space<vmem>>, %arg4: memref<5x120x160xbf16, #tpu.memory_space<vmem>>, %arg5: memref<1x160xf32, #tpu.memory_space<vmem>>, %arg6: memref<4x80x64xbf16, #tpu.memory_space<vmem>>, %arg7: memref<1x64xf32, #tpu.memory_space<vmem>>, %arg8: memref<64x128xbf16, #tpu.memory_space<vmem>>, %arg9: memref<1x128xf32, #tpu.memory_space<vmem>>, %arg10: memref<8x128xf32, #tpu.memory_space<vmem>>) attributes {dimension_semantics = [#tpu.dimension_semantics<parallel>], iteration_bounds = array<i64: 1>, scalar_prefetch = 0 : i64, scratch_operands = 0 : i64, tpu.core_type = #tpu.core_type<tc>, window_params = [{transform_indices = @transform_0, window_bounds = array<i64: 28, 8, 28>}, {pipeline_mode = #tpu.pipeline_mode<synchronous>, transform_indices = @transform_1, window_bounds = array<i64: 5, 28, 240>}, {pipeline_mode = #tpu.pipeline_mode<synchronous>, transform_indices = @transform_2, window_bounds = array<i64: 1, 240>}, {pipeline_mode = #tpu.pipeline_mode<synchronous>, transform_indices = @transform_3, window_bounds = array<i64: 5, 120, 160>}, {pipeline_mode = #tpu.pipeline_mode<synchronous>, transform_indices = @transform_4, window_bounds = array<i64: 1, 160>}, {pipeline_mode = #tpu.pipeline_mode<synchronous>, transform_indices = @transform_5, window_bounds = array<i64: 4, 80, 64>}, {pipeline_mode = #tpu.pipeline_mode<synchronous>, transform_indices = @transform_6, window_bounds = array<i64: 1, 64>}, {pipeline_mode = #tpu.pipeline_mode<synchronous>, transform_indices = @transform_7, window_bounds = array<i64: 64, 128>}, {pipeline_mode = #tpu.pipeline_mode<synchronous>, transform_indices = @transform_8, window_bounds = array<i64: 1, 128>}, {transform_indices = @transform_9, window_bounds = array<i64: 8, 128>}]} {
    %c0 = arith.constant 0 : index
    %c0_0 = arith.constant 0 : index
    %c0_1 = arith.constant 0 : index
    %0 = vector.load %arg1[%c0, %c0_0, %c0_1] : memref<28x8x28xbf16, #tpu.memory_space<vmem>>, vector<24x8x28xbf16>
    %1 = vector.shape_cast %0 : vector<24x8x28xbf16> to vector<192x28xbf16>
    %c0_2 = arith.constant 0 : index
    %c0_3 = arith.constant 0 : index
    %c0_4 = arith.constant 0 : index
    %2 = vector.load %arg2[%c0_2, %c0_3, %c0_4] : memref<5x28x240xbf16, #tpu.memory_space<vmem>>, vector<1x28x240xbf16>
    %3 = vector.shape_cast %2 : vector<1x28x240xbf16> to vector<28x240xbf16>
    %cst = arith.constant dense<0.000000e+00> : vector<192x240xf32>
    %4 = tpu.matmul %1, %3, %cst {dimension_numbers = #tpu.dot_dimension_numbers<[1], [0], [0], [1], [0, 0, 1, 1], [], []>} : vector<192x28xbf16>, vector<28x240xbf16>, vector<192x240xf32> -> vector<192x240xf32>
    %c1 = arith.constant 1 : index
    %c0_5 = arith.constant 0 : index
    %c0_6 = arith.constant 0 : index
    %5 = vector.load %arg1[%c1, %c0_5, %c0_6] : memref<28x8x28xbf16, #tpu.memory_space<vmem>>, vector<24x8x28xbf16>
    %6 = vector.shape_cast %5 : vector<24x8x28xbf16> to vector<192x28xbf16>
    %c1_7 = arith.constant 1 : index
    %c0_8 = arith.constant 0 : index
    %c0_9 = arith.constant 0 : index
    %7 = vector.load %arg2[%c1_7, %c0_8, %c0_9] : memref<5x28x240xbf16, #tpu.memory_space<vmem>>, vector<1x28x240xbf16>
    %8 = vector.shape_cast %7 : vector<1x28x240xbf16> to vector<28x240xbf16>
    %cst_10 = arith.constant dense<0.000000e+00> : vector<192x240xf32>
    %9 = tpu.matmul %6, %8, %cst_10 {dimension_numbers = #tpu.dot_dimension_numbers<[1], [0], [0], [1], [0, 0, 1, 1], [], []>} : vector<192x28xbf16>, vector<28x240xbf16>, vector<192x240xf32> -> vector<192x240xf32>
    %10 = arith.addf %4, %9 : vector<192x240xf32>
    %c2 = arith.constant 2 : index
    %c0_11 = arith.constant 0 : index
    %c0_12 = arith.constant 0 : index
    %11 = vector.load %arg1[%c2, %c0_11, %c0_12] : memref<28x8x28xbf16, #tpu.memory_space<vmem>>, vector<24x8x28xbf16>
    %12 = vector.shape_cast %11 : vector<24x8x28xbf16> to vector<192x28xbf16>
    %c2_13 = arith.constant 2 : index
    %c0_14 = arith.constant 0 : index
    %c0_15 = arith.constant 0 : index
    %13 = vector.load %arg2[%c2_13, %c0_14, %c0_15] : memref<5x28x240xbf16, #tpu.memory_space<vmem>>, vector<1x28x240xbf16>
    %14 = vector.shape_cast %13 : vector<1x28x240xbf16> to vector<28x240xbf16>
    %cst_16 = arith.constant dense<0.000000e+00> : vector<192x240xf32>
    %15 = tpu.matmul %12, %14, %cst_16 {dimension_numbers = #tpu.dot_dimension_numbers<[1], [0], [0], [1], [0, 0, 1, 1], [], []>} : vector<192x28xbf16>, vector<28x240xbf16>, vector<192x240xf32> -> vector<192x240xf32>
    %16 = arith.addf %10, %15 : vector<192x240xf32>
    %c3 = arith.constant 3 : index
    %c0_17 = arith.constant 0 : index
    %c0_18 = arith.constant 0 : index
    %17 = vector.load %arg1[%c3, %c0_17, %c0_18] : memref<28x8x28xbf16, #tpu.memory_space<vmem>>, vector<24x8x28xbf16>
    %18 = vector.shape_cast %17 : vector<24x8x28xbf16> to vector<192x28xbf16>
    %c3_19 = arith.constant 3 : index
    %c0_20 = arith.constant 0 : index
    %c0_21 = arith.constant 0 : index
    %19 = vector.load %arg2[%c3_19, %c0_20, %c0_21] : memref<5x28x240xbf16, #tpu.memory_space<vmem>>, vector<1x28x240xbf16>
    %20 = vector.shape_cast %19 : vector<1x28x240xbf16> to vector<28x240xbf16>
    %cst_22 = arith.constant dense<0.000000e+00> : vector<192x240xf32>
    %21 = tpu.matmul %18, %20, %cst_22 {dimension_numbers = #tpu.dot_dimension_numbers<[1], [0], [0], [1], [0, 0, 1, 1], [], []>} : vector<192x28xbf16>, vector<28x240xbf16>, vector<192x240xf32> -> vector<192x240xf32>
    %22 = arith.addf %16, %21 : vector<192x240xf32>
    %c4 = arith.constant 4 : index
    %c0_23 = arith.constant 0 : index
    %c0_24 = arith.constant 0 : index
    %23 = vector.load %arg1[%c4, %c0_23, %c0_24] : memref<28x8x28xbf16, #tpu.memory_space<vmem>>, vector<24x8x28xbf16>
    %24 = vector.shape_cast %23 : vector<24x8x28xbf16> to vector<192x28xbf16>
    %c4_25 = arith.constant 4 : index
    %c0_26 = arith.constant 0 : index
    %c0_27 = arith.constant 0 : index
    %25 = vector.load %arg2[%c4_25, %c0_26, %c0_27] : memref<5x28x240xbf16, #tpu.memory_space<vmem>>, vector<1x28x240xbf16>
    %26 = vector.shape_cast %25 : vector<1x28x240xbf16> to vector<28x240xbf16>
    %cst_28 = arith.constant dense<0.000000e+00> : vector<192x240xf32>
    %27 = tpu.matmul %24, %26, %cst_28 {dimension_numbers = #tpu.dot_dimension_numbers<[1], [0], [0], [1], [0, 0, 1, 1], [], []>} : vector<192x28xbf16>, vector<28x240xbf16>, vector<192x240xf32> -> vector<192x240xf32>
    %28 = arith.addf %22, %27 : vector<192x240xf32>
    %c0_29 = arith.constant 0 : index
    %c0_30 = arith.constant 0 : index
    %29 = vector.load %arg3[%c0_29, %c0_30] : memref<1x240xf32, #tpu.memory_space<vmem>>, vector<1x240xf32>
    %30 = vector.broadcast %29 : vector<1x240xf32> to vector<192x240xf32>
    %31 = arith.addf %28, %30 : vector<192x240xf32>
    %32 = vector.extract_strided_slice %31 {offsets = [0, 0], sizes = [192, 120], strides = [1, 1]} : vector<192x240xf32> to vector<192x120xf32>
    %33 = vector.extract_strided_slice %31 {offsets = [0, 120], sizes = [192, 120], strides = [1, 1]} : vector<192x240xf32> to vector<192x120xf32>
    %34 = arith.maximumf %32, %33 : vector<192x120xf32>
    %35 = vector.shape_cast %34 : vector<192x120xf32> to vector<12x16x120xf32>
    %36 = vector.extract_strided_slice %35 {offsets = [0, 0, 0], sizes = [12, 8, 120], strides = [1, 1, 1]} : vector<12x16x120xf32> to vector<12x8x120xf32>
    %37 = vector.extract_strided_slice %35 {offsets = [0, 8, 0], sizes = [12, 8, 120], strides = [1, 1, 1]} : vector<12x16x120xf32> to vector<12x8x120xf32>
    %38 = arith.maximumf %36, %37 : vector<12x8x120xf32>
    %39 = vector.shape_cast %38 : vector<12x8x120xf32> to vector<96x120xf32>
    %cst_31 = arith.constant 0.000000e+00 : f32
    %40 = vector.broadcast %cst_31 : f32 to vector<96x120xf32>
    %41 = arith.maximumf %39, %40 : vector<96x120xf32>
    %42 = arith.truncf %41 : vector<96x120xf32> to vector<96x120xbf16>
    %43 = vector.extract_strided_slice %42 {offsets = [0, 0], sizes = [64, 120], strides = [1, 1]} : vector<96x120xbf16> to vector<64x120xbf16>
    %c0_32 = arith.constant 0 : index
    %c0_33 = arith.constant 0 : index
    %c0_34 = arith.constant 0 : index
    %44 = vector.load %arg4[%c0_32, %c0_33, %c0_34] : memref<5x120x160xbf16, #tpu.memory_space<vmem>>, vector<1x120x160xbf16>
    %45 = vector.shape_cast %44 : vector<1x120x160xbf16> to vector<120x160xbf16>
    %cst_35 = arith.constant dense<0.000000e+00> : vector<64x160xf32>
    %46 = tpu.matmul %43, %45, %cst_35 {dimension_numbers = #tpu.dot_dimension_numbers<[1], [0], [0], [1], [0, 0, 1, 1], [], []>} : vector<64x120xbf16>, vector<120x160xbf16>, vector<64x160xf32> -> vector<64x160xf32>
    %47 = vector.extract_strided_slice %42 {offsets = [8, 0], sizes = [64, 120], strides = [1, 1]} : vector<96x120xbf16> to vector<64x120xbf16>
    %c1_36 = arith.constant 1 : index
    %c0_37 = arith.constant 0 : index
    %c0_38 = arith.constant 0 : index
    %48 = vector.load %arg4[%c1_36, %c0_37, %c0_38] : memref<5x120x160xbf16, #tpu.memory_space<vmem>>, vector<1x120x160xbf16>
    %49 = vector.shape_cast %48 : vector<1x120x160xbf16> to vector<120x160xbf16>
    %cst_39 = arith.constant dense<0.000000e+00> : vector<64x160xf32>
    %50 = tpu.matmul %47, %49, %cst_39 {dimension_numbers = #tpu.dot_dimension_numbers<[1], [0], [0], [1], [0, 0, 1, 1], [], []>} : vector<64x120xbf16>, vector<120x160xbf16>, vector<64x160xf32> -> vector<64x160xf32>
    %51 = arith.addf %46, %50 : vector<64x160xf32>
    %52 = vector.extract_strided_slice %42 {offsets = [16, 0], sizes = [64, 120], strides = [1, 1]} : vector<96x120xbf16> to vector<64x120xbf16>
    %c2_40 = arith.constant 2 : index
    %c0_41 = arith.constant 0 : index
    %c0_42 = arith.constant 0 : index
    %53 = vector.load %arg4[%c2_40, %c0_41, %c0_42] : memref<5x120x160xbf16, #tpu.memory_space<vmem>>, vector<1x120x160xbf16>
    %54 = vector.shape_cast %53 : vector<1x120x160xbf16> to vector<120x160xbf16>
    %cst_43 = arith.constant dense<0.000000e+00> : vector<64x160xf32>
    %55 = tpu.matmul %52, %54, %cst_43 {dimension_numbers = #tpu.dot_dimension_numbers<[1], [0], [0], [1], [0, 0, 1, 1], [], []>} : vector<64x120xbf16>, vector<120x160xbf16>, vector<64x160xf32> -> vector<64x160xf32>
    %56 = arith.addf %51, %55 : vector<64x160xf32>
    %57 = vector.extract_strided_slice %42 {offsets = [24, 0], sizes = [64, 120], strides = [1, 1]} : vector<96x120xbf16> to vector<64x120xbf16>
    %c3_44 = arith.constant 3 : index
    %c0_45 = arith.constant 0 : index
    %c0_46 = arith.constant 0 : index
    %58 = vector.load %arg4[%c3_44, %c0_45, %c0_46] : memref<5x120x160xbf16, #tpu.memory_space<vmem>>, vector<1x120x160xbf16>
    %59 = vector.shape_cast %58 : vector<1x120x160xbf16> to vector<120x160xbf16>
    %cst_47 = arith.constant dense<0.000000e+00> : vector<64x160xf32>
    %60 = tpu.matmul %57, %59, %cst_47 {dimension_numbers = #tpu.dot_dimension_numbers<[1], [0], [0], [1], [0, 0, 1, 1], [], []>} : vector<64x120xbf16>, vector<120x160xbf16>, vector<64x160xf32> -> vector<64x160xf32>
    %61 = arith.addf %56, %60 : vector<64x160xf32>
    %62 = vector.extract_strided_slice %42 {offsets = [32, 0], sizes = [64, 120], strides = [1, 1]} : vector<96x120xbf16> to vector<64x120xbf16>
    %c4_48 = arith.constant 4 : index
    %c0_49 = arith.constant 0 : index
    %c0_50 = arith.constant 0 : index
    %63 = vector.load %arg4[%c4_48, %c0_49, %c0_50] : memref<5x120x160xbf16, #tpu.memory_space<vmem>>, vector<1x120x160xbf16>
    %64 = vector.shape_cast %63 : vector<1x120x160xbf16> to vector<120x160xbf16>
    %cst_51 = arith.constant dense<0.000000e+00> : vector<64x160xf32>
    %65 = tpu.matmul %62, %64, %cst_51 {dimension_numbers = #tpu.dot_dimension_numbers<[1], [0], [0], [1], [0, 0, 1, 1], [], []>} : vector<64x120xbf16>, vector<120x160xbf16>, vector<64x160xf32> -> vector<64x160xf32>
    %66 = arith.addf %61, %65 : vector<64x160xf32>
    %c0_52 = arith.constant 0 : index
    %c0_53 = arith.constant 0 : index
    %67 = vector.load %arg5[%c0_52, %c0_53] : memref<1x160xf32, #tpu.memory_space<vmem>>, vector<1x160xf32>
    %68 = vector.broadcast %67 : vector<1x160xf32> to vector<64x160xf32>
    %69 = arith.addf %66, %68 : vector<64x160xf32>
    %70 = vector.extract_strided_slice %69 {offsets = [0, 0], sizes = [64, 80], strides = [1, 1]} : vector<64x160xf32> to vector<64x80xf32>
    %71 = vector.extract_strided_slice %69 {offsets = [0, 80], sizes = [64, 80], strides = [1, 1]} : vector<64x160xf32> to vector<64x80xf32>
    %72 = arith.maximumf %70, %71 : vector<64x80xf32>
    %73 = vector.shape_cast %72 : vector<64x80xf32> to vector<4x16x80xf32>
    %74 = vector.extract_strided_slice %73 {offsets = [0, 0, 0], sizes = [4, 8, 80], strides = [1, 1, 1]} : vector<4x16x80xf32> to vector<4x8x80xf32>
    %75 = vector.extract_strided_slice %73 {offsets = [0, 8, 0], sizes = [4, 8, 80], strides = [1, 1, 1]} : vector<4x16x80xf32> to vector<4x8x80xf32>
    %76 = arith.maximumf %74, %75 : vector<4x8x80xf32>
    %77 = vector.shape_cast %76 : vector<4x8x80xf32> to vector<32x80xf32>
    %cst_54 = arith.constant 0.000000e+00 : f32
    %78 = vector.broadcast %cst_54 : f32 to vector<32x80xf32>
    %79 = arith.maximumf %77, %78 : vector<32x80xf32>
    %80 = arith.truncf %79 : vector<32x80xf32> to vector<32x80xbf16>
    %81 = vector.extract_strided_slice %80 {offsets = [0, 0], sizes = [8, 80], strides = [1, 1]} : vector<32x80xbf16> to vector<8x80xbf16>
    %c0_55 = arith.constant 0 : index
    %c0_56 = arith.constant 0 : index
    %c0_57 = arith.constant 0 : index
    %82 = vector.load %arg6[%c0_55, %c0_56, %c0_57] : memref<4x80x64xbf16, #tpu.memory_space<vmem>>, vector<1x80x64xbf16>
    %83 = vector.shape_cast %82 : vector<1x80x64xbf16> to vector<80x64xbf16>
    %cst_58 = arith.constant dense<0.000000e+00> : vector<8x64xf32>
    %84 = tpu.matmul %81, %83, %cst_58 {dimension_numbers = #tpu.dot_dimension_numbers<[1], [0], [0], [1], [0, 0, 1, 1], [], []>} : vector<8x80xbf16>, vector<80x64xbf16>, vector<8x64xf32> -> vector<8x64xf32>
    %85 = vector.extract_strided_slice %80 {offsets = [8, 0], sizes = [8, 80], strides = [1, 1]} : vector<32x80xbf16> to vector<8x80xbf16>
    %c1_59 = arith.constant 1 : index
    %c0_60 = arith.constant 0 : index
    %c0_61 = arith.constant 0 : index
    %86 = vector.load %arg6[%c1_59, %c0_60, %c0_61] : memref<4x80x64xbf16, #tpu.memory_space<vmem>>, vector<1x80x64xbf16>
    %87 = vector.shape_cast %86 : vector<1x80x64xbf16> to vector<80x64xbf16>
    %cst_62 = arith.constant dense<0.000000e+00> : vector<8x64xf32>
    %88 = tpu.matmul %85, %87, %cst_62 {dimension_numbers = #tpu.dot_dimension_numbers<[1], [0], [0], [1], [0, 0, 1, 1], [], []>} : vector<8x80xbf16>, vector<80x64xbf16>, vector<8x64xf32> -> vector<8x64xf32>
    %89 = arith.addf %84, %88 : vector<8x64xf32>
    %90 = vector.extract_strided_slice %80 {offsets = [16, 0], sizes = [8, 80], strides = [1, 1]} : vector<32x80xbf16> to vector<8x80xbf16>
    %c2_63 = arith.constant 2 : index
    %c0_64 = arith.constant 0 : index
    %c0_65 = arith.constant 0 : index
    %91 = vector.load %arg6[%c2_63, %c0_64, %c0_65] : memref<4x80x64xbf16, #tpu.memory_space<vmem>>, vector<1x80x64xbf16>
    %92 = vector.shape_cast %91 : vector<1x80x64xbf16> to vector<80x64xbf16>
    %cst_66 = arith.constant dense<0.000000e+00> : vector<8x64xf32>
    %93 = tpu.matmul %90, %92, %cst_66 {dimension_numbers = #tpu.dot_dimension_numbers<[1], [0], [0], [1], [0, 0, 1, 1], [], []>} : vector<8x80xbf16>, vector<80x64xbf16>, vector<8x64xf32> -> vector<8x64xf32>
    %94 = arith.addf %89, %93 : vector<8x64xf32>
    %95 = vector.extract_strided_slice %80 {offsets = [24, 0], sizes = [8, 80], strides = [1, 1]} : vector<32x80xbf16> to vector<8x80xbf16>
    %c3_67 = arith.constant 3 : index
    %c0_68 = arith.constant 0 : index
    %c0_69 = arith.constant 0 : index
    %96 = vector.load %arg6[%c3_67, %c0_68, %c0_69] : memref<4x80x64xbf16, #tpu.memory_space<vmem>>, vector<1x80x64xbf16>
    %97 = vector.shape_cast %96 : vector<1x80x64xbf16> to vector<80x64xbf16>
    %cst_70 = arith.constant dense<0.000000e+00> : vector<8x64xf32>
    %98 = tpu.matmul %95, %97, %cst_70 {dimension_numbers = #tpu.dot_dimension_numbers<[1], [0], [0], [1], [0, 0, 1, 1], [], []>} : vector<8x80xbf16>, vector<80x64xbf16>, vector<8x64xf32> -> vector<8x64xf32>
    %99 = arith.addf %94, %98 : vector<8x64xf32>
    %c0_71 = arith.constant 0 : index
    %c0_72 = arith.constant 0 : index
    %100 = vector.load %arg7[%c0_71, %c0_72] : memref<1x64xf32, #tpu.memory_space<vmem>>, vector<1x64xf32>
    %101 = vector.broadcast %100 : vector<1x64xf32> to vector<8x64xf32>
    %102 = arith.addf %99, %101 : vector<8x64xf32>
    %cst_73 = arith.constant 0.000000e+00 : f32
    %103 = vector.broadcast %cst_73 : f32 to vector<8x64xf32>
    %104 = arith.maximumf %102, %103 : vector<8x64xf32>
    %105 = arith.truncf %104 : vector<8x64xf32> to vector<8x64xbf16>
    %c0_74 = arith.constant 0 : index
    %c0_75 = arith.constant 0 : index
    %106 = vector.load %arg8[%c0_74, %c0_75] : memref<64x128xbf16, #tpu.memory_space<vmem>>, vector<64x128xbf16>
    %cst_76 = arith.constant dense<0.000000e+00> : vector<8x128xf32>
    %107 = tpu.matmul %105, %106, %cst_76 {dimension_numbers = #tpu.dot_dimension_numbers<[1], [0], [0], [1], [0, 0, 1, 1], [], []>} : vector<8x64xbf16>, vector<64x128xbf16>, vector<8x128xf32> -> vector<8x128xf32>
    %c0_77 = arith.constant 0 : index
    %c0_78 = arith.constant 0 : index
    %108 = vector.load %arg9[%c0_77, %c0_78] : memref<1x128xf32, #tpu.memory_space<vmem>>, vector<1x128xf32>
    %109 = vector.broadcast %108 : vector<1x128xf32> to vector<8x128xf32>
    %110 = arith.addf %107, %109 : vector<8x128xf32>
    %cst_79 = arith.constant dense<0xFF800000> : vector<8xf32>
    %111 = vector.multi_reduction <maximumf>, %110, %cst_79 [1] : vector<8x128xf32> to vector<8xf32>
    %112 = vector.shape_cast %111 : vector<8xf32> to vector<8x1xf32>
    %113 = vector.broadcast %112 : vector<8x1xf32> to vector<8x128xf32>
    %114 = arith.subf %110, %113 : vector<8x128xf32>
    %115 = math.exp %114 : vector<8x128xf32>
    %cst_80 = arith.constant dense<0.000000e+00> : vector<8xf32>
    %116 = vector.multi_reduction <add>, %115, %cst_80 [1] : vector<8x128xf32> to vector<8xf32>
    %117 = vector.shape_cast %116 : vector<8xf32> to vector<8x1xf32>
    %118 = math.log %117 : vector<8x1xf32>
    %119 = vector.broadcast %118 : vector<8x1xf32> to vector<8x128xf32>
    %120 = arith.subf %114, %119 : vector<8x128xf32>
    %c0_81 = arith.constant 0 : index
    %c0_82 = arith.constant 0 : index
    %121 = vector.load %arg10[%c0_81, %c0_82] : memref<8x128xf32, #tpu.memory_space<vmem>>, vector<8x128xf32>
    tpu.vector_store %arg10[%c0_81, %c0_82], %120 {strides = array<i32>} : memref<8x128xf32, #tpu.memory_space<vmem>>, vector<8x128xf32>,
    return
  }
  func.func @transform_0(%arg0: i32) -> (i32, i32, i32) {
    %c0_i32 = arith.constant 0 : i32
    %c0_i32_0 = arith.constant 0 : i32
    %c0_i32_1 = arith.constant 0 : i32
    return %c0_i32, %arg0, %c0_i32_0 : i32, i32, i32
  }
  func.func @transform_1(%arg0: i32) -> (i32, i32, i32) {
    %c0_i32 = arith.constant 0 : i32
    %c0_i32_0 = arith.constant 0 : i32
    %c0_i32_1 = arith.constant 0 : i32
    %c0_i32_2 = arith.constant 0 : i32
    return %c0_i32, %c0_i32_0, %c0_i32_1 : i32, i32, i32
  }
  func.func @transform_2(%arg0: i32) -> (i32, i32) {
    %c0_i32 = arith.constant 0 : i32
    %c0_i32_0 = arith.constant 0 : i32
    %c0_i32_1 = arith.constant 0 : i32
    return %c0_i32, %c0_i32_0 : i32, i32
  }
  func.func @transform_3(%arg0: i32) -> (i32, i32, i32) {
    %c0_i32 = arith.constant 0 : i32
    %c0_i32_0 = arith.constant 0 : i32
    %c0_i32_1 = arith.constant 0 : i32
    %c0_i32_2 = arith.constant 0 : i32
    return %c0_i32, %c0_i32_0, %c0_i32_1 : i32, i32, i32
  }
  func.func @transform_4(%arg0: i32) -> (i32, i32) {
    %c0_i32 = arith.constant 0 : i32
    %c0_i32_0 = arith.constant 0 : i32
    %c0_i32_1 = arith.constant 0 : i32
    return %c0_i32, %c0_i32_0 : i32, i32
  }
  func.func @transform_5(%arg0: i32) -> (i32, i32, i32) {
    %c0_i32 = arith.constant 0 : i32
    %c0_i32_0 = arith.constant 0 : i32
    %c0_i32_1 = arith.constant 0 : i32
    %c0_i32_2 = arith.constant 0 : i32
    return %c0_i32, %c0_i32_0, %c0_i32_1 : i32, i32, i32
  }
  func.func @transform_6(%arg0: i32) -> (i32, i32) {
    %c0_i32 = arith.constant 0 : i32
    %c0_i32_0 = arith.constant 0 : i32
    %c0_i32_1 = arith.constant 0 : i32
    return %c0_i32, %c0_i32_0 : i32, i32
  }
  func.func @transform_7(%arg0: i32) -> (i32, i32) {
    %c0_i32 = arith.constant 0 : i32
    %c0_i32_0 = arith.constant 0 : i32
    %c0_i32_1 = arith.constant 0 : i32
    return %c0_i32, %c0_i32_0 : i32, i32
  }
  func.func @transform_8(%arg0: i32) -> (i32, i32) {
    %c0_i32 = arith.constant 0 : i32
    %c0_i32_0 = arith.constant 0 : i32
    %c0_i32_1 = arith.constant 0 : i32
    return %c0_i32, %c0_i32_0 : i32, i32
  }
  func.func @transform_9(%arg0: i32) -> (i32, i32) {
    %c0_i32 = arith.constant 0 : i32
    %c0_i32_0 = arith.constant 0 : i32
    return %arg0, %c0_i32 : i32, i32
  }
}

</mosaic_0001>

<llo_original>
// kernel: net_forward.1
$region0: #{net_forward.1}
  #allocation0 [shape = 'u32[]', space=smem, size = 0x4, offset = 0x4, fixed_abs, tag = 'smem constant byte address 0x4 - core index']
  #allocation1 [shape = 'u32[144,128]{1,0:T(1,128)}', space=vmem, size = 0x12000, scoped, tag = 'internal scratch']
  %s0 = inlined_call_operand.vmem [shape: bf16[28,8,28], index: 0, kind: input, shape index: {}]
  %s1 = inlined_call_operand.vmem [shape: bf16[5,28,240], index: 1, kind: input, shape index: {}]
  %s2 = inlined_call_operand.vmem [shape: f32[1,240], index: 2, kind: input, shape index: {}]
  %s3 = inlined_call_operand.vmem [shape: bf16[5,120,160], index: 3, kind: input, shape index: {}]
  %s4 = inlined_call_operand.vmem [shape: f32[1,160], index: 4, kind: input, shape index: {}]
  %s5 = inlined_call_operand.vmem [shape: bf16[4,80,64], index: 5, kind: input, shape index: {}]
  %s6 = inlined_call_operand.vmem [shape: f32[1,64], index: 6, kind: input, shape index: {}]
  %s7 = inlined_call_operand.vmem [shape: bf16[64,128], index: 7, kind: input, shape index: {}]
  %s8 = inlined_call_operand.vmem [shape: f32[1,128], index: 8, kind: input, shape index: {}]
  %s9 = inlined_call_operand.vmem [shape: f32[8,128], index: 9, kind: output, shape index: {}]
  %s10 = sld [smem:[#allocation0]]
  $region46: #{net_forward.1} parent=0
    _
  %s12 = ssub.s32 1, %s10
  %s13 = scalar_select 0, %s12, %s10
  // Predicated region
  $region2: #{net_forward.1} parent=0 // pred_check
    _
  $region3: #{net_forward.1} parent=0 // pred_check_branch
    %15 = sbr.rel (0) target = $region5
  $region4: #{net_forward.1} parent=0 // pred_region
    _
  $region5: #{net_forward.1} parent=0 // pred_fallthru
    _
  // Predicated region
  $region6: #{net_forward.1} parent=0 // pred_check
    _
  $region7: #{net_forward.1} parent=0 // pred_check_branch
    %17 = sbr.rel (0) target = $region9
  $region8: #{net_forward.1} parent=0 // pred_region
    _
  $region9: #{net_forward.1} parent=0 // pred_fallthru
    _
  // Predicated region
  $region10: #{net_forward.1} parent=0 // pred_check
    _
  $region11: #{net_forward.1} parent=0 // pred_check_branch
    %19 = sbr.rel (0) target = $region13
  $region12: #{net_forward.1} parent=0 // pred_region
    _
  $region13: #{net_forward.1} parent=0 // pred_fallthru
    _
  // Predicated region
  $region14: #{net_forward.1} parent=0 // pred_check
    _
  $region15: #{net_forward.1} parent=0 // pred_check_branch
    %21 = sbr.rel (0) target = $region17
  $region16: #{net_forward.1} parent=0 // pred_region
    _
  $region17: #{net_forward.1} parent=0 // pred_fallthru
    _
  // Predicated region
  $region18: #{net_forward.1} parent=0 // pred_check
    _
  $region19: #{net_forward.1} parent=0 // pred_check_branch
    %23 = sbr.rel (0) target = $region21
  $region20: #{net_forward.1} parent=0 // pred_region
    _
  $region21: #{net_forward.1} parent=0 // pred_fallthru
    _
  // Predicated region
  $region22: #{net_forward.1} parent=0 // pred_check
    _
  $region23: #{net_forward.1} parent=0 // pred_check_branch
    %25 = sbr.rel (0) target = $region25
  $region24: #{net_forward.1} parent=0 // pred_region
    _
  $region25: #{net_forward.1} parent=0 // pred_fallthru
    _
  // Predicated region
  $region26: #{net_forward.1} parent=0 // pred_check
    _
  $region27: #{net_forward.1} parent=0 // pred_check_branch
    %27 = sbr.rel (0) target = $region29
  $region28: #{net_forward.1} parent=0 // pred_region
    _
  $region29: #{net_forward.1} parent=0 // pred_fallthru
    _
  // Predicated region
  $region30: #{net_forward.1} parent=0 // pred_check
    _
  $region31: #{net_forward.1} parent=0 // pred_check_branch
    %29 = sbr.rel (0) target = $region33
  $region32: #{net_forward.1} parent=0 // pred_region
    _
  $region33: #{net_forward.1} parent=0 // pred_fallthru
    _
  // Predicated region
  $region34: #{net_forward.1} parent=0 // pred_check
    _
  $region35: #{net_forward.1} parent=0 // pred_check_branch
    %31 = sbr.rel (0) target = $region37
  $region36: #{net_forward.1} parent=0 // pred_region
    _
  $region37: #{net_forward.1} parent=0 // pred_fallthru
    _
  %v33 = vld [vmem:[%s0] sm:$0xf]
  %v34 = vld [vmem:[%s0 + $0x4] sm:$0xf]
  %v35 = vld [vmem:[%s0 + $0x8] sm:$0xf]
  %v36 = vld [vmem:[%s0 + $0xc] sm:$0xf]
  %v37 = vld [vmem:[%s0 + $0x10] sm:$0xf]
  %v38 = vld [vmem:[%s0 + $0x14] sm:$0xf]
  %v39 = vld [vmem:[%s0 + $0x18] sm:$0xf]
  %v40 = vld [vmem:[%s0 + $0x1c] sm:$0xf]
  %v41 = vld [vmem:[%s0 + $0x20] sm:$0xf]
  %v42 = vld [vmem:[%s0 + $0x24] sm:$0xf]
  %v43 = vld [vmem:[%s0 + $0x28] sm:$0xf]
  %v44 = vld [vmem:[%s0 + $0x2c] sm:$0xf]
  %v45 = vld [vmem:[%s0 + $0x30] sm:$0xf]
  %v46 = vld [vmem:[%s0 + $0x34] sm:$0xf]
  %v47 = vld [vmem:[%s0 + $0x38] sm:$0xf]
  %v48 = vld [vmem:[%s0 + $0x3c] sm:$0xf]
  %v49 = vld [vmem:[%s0 + $0x40] sm:$0xf]
  %v50 = vld [vmem:[%s0 + $0x44] sm:$0xf]
  %v51 = vld [vmem:[%s0 + $0x48] sm:$0xf]
  %v52 = vld [vmem:[%s0 + $0x4c] sm:$0xf]
  %v53 = vld [vmem:[%s0 + $0x50] sm:$0xf]
  %v54 = vld [vmem:[%s0 + $0x54] sm:$0xf]
  %v55 = vld [vmem:[%s0 + $0x58] sm:$0xf]
  %v56 = vld [vmem:[%s0 + $0x5c] sm:$0xf]
  %v57 = vld [vmem:[%s1] sm:$0xff]
  %v58 = vld [vmem:[%s1 + $0x8] sm:$0xff]
  %v59 = vld [vmem:[%s1 + $0x10] sm:$0xff]
  %v60 = vld [vmem:[%s1 + $0x18] sm:$0x33]
  %s61 = scalar_lea.vmem %s0, 4
  %v62 = vld [vmem:[%s61] sm:$0xf]
  %v63 = vld [vmem:[%s61 + $0x4] sm:$0xf]
  %v64 = vld [vmem:[%s61 + $0x8] sm:$0xf]
  %v65 = vld [vmem:[%s61 + $0xc] sm:$0xf]
  %v66 = vld [vmem:[%s61 + $0x10] sm:$0xf]
  %v67 = vld [vmem:[%s61 + $0x14] sm:$0xf]
  %v68 = vld [vmem:[%s61 + $0x18] sm:$0xf]
  %v69 = vld [vmem:[%s61 + $0x1c] sm:$0xf]
  %v70 = vld [vmem:[%s61 + $0x20] sm:$0xf]
  %v71 = vld [vmem:[%s61 + $0x24] sm:$0xf]
  %v72 = vld [vmem:[%s61 + $0x28] sm:$0xf]
  %v73 = vld [vmem:[%s61 + $0x2c] sm:$0xf]
  %v74 = vld [vmem:[%s61 + $0x30] sm:$0xf]
  %v75 = vld [vmem:[%s61 + $0x34] sm:$0xf]
  %v76 = vld [vmem:[%s61 + $0x38] sm:$0xf]
  %v77 = vld [vmem:[%s61 + $0x3c] sm:$0xf]
  %v78 = vld [vmem:[%s61 + $0x40] sm:$0xf]
  %v79 = vld [vmem:[%s61 + $0x44] sm:$0xf]
  %v80 = vld [vmem:[%s61 + $0x48] sm:$0xf]
  %v81 = vld [vmem:[%s61 + $0x4c] sm:$0xf]
  %v82 = vld [vmem:[%s61 + $0x50] sm:$0xf]
  %v83 = vld [vmem:[%s61 + $0x54] sm:$0xf]
  %v84 = vld [vmem:[%s61 + $0x58] sm:$0xf]
  %v85 = vld [vmem:[%s61 + $0x5c] sm:$0xf]
  %s86 = scalar_lea.vmem %s1, 32
  %v87 = vld [vmem:[%s86] sm:$0xff]
  %v88 = vld [vmem:[%s86 + $0x8] sm:$0xff]
  %v89 = vld [vmem:[%s86 + $0x10] sm:$0xff]
  %v90 = vld [vmem:[%s86 + $0x18] sm:$0x33]
  %v115 = vunpack.c.l.b16 %v62
  %v116 = vunpack.c.l.b16 %v63
  %v117 = vunpack.c.l.b16 %v64
  %v118 = vunpack.c.l.b16 %v65
  %v119 = vunpack.c.l.b16 %v66
  %v120 = vunpack.c.l.b16 %v67
  %v121 = vunpack.c.l.b16 %v68
  %v122 = vunpack.c.l.b16 %v69
  %v123 = vunpack.c.l.b16 %v70
  %v124 = vunpack.c.l.b16 %v71
  %v125 = vunpack.c.l.b16 %v72
  %v126 = vunpack.c.l.b16 %v73
  %v127 = vunpack.c.l.b16 %v74
  %v128 = vunpack.c.l.b16 %v75
  %v129 = vunpack.c.l.b16 %v76
  %v130 = vunpack.c.l.b16 %v77
  %v131 = vunpack.c.l.b16 %v78
  %v132 = vunpack.c.l.b16 %v79
  %v133 = vunpack.c.l.b16 %v80
  %v134 = vunpack.c.l.b16 %v81
  %v135 = vunpack.c.l.b16 %v82
  %v136 = vunpack.c.l.b16 %v83
  %v137 = vunpack.c.l.b16 %v84
  %v138 = vunpack.c.l.b16 %v85
  %v139 = vpack.c.b16 %v116, %v115
  %v140 = vpack.c.b16 %v118, %v117
  %v141 = vpack.c.b16 %v120, %v119
  %v142 = vpack.c.b16 %v122, %v121
  %v143 = vpack.c.b16 %v124, %v123
  %v144 = vpack.c.b16 %v126, %v125
  %v145 = vpack.c.b16 %v128, %v127
  %v146 = vpack.c.b16 %v130, %v129
  %v147 = vpack.c.b16 %v132, %v131
  %v148 = vpack.c.b16 %v134, %v133
  %v149 = vpack.c.b16 %v136, %v135
  %v150 = vpack.c.b16 %v138, %v137
  %v155 = vunpack.c.l.b16 %v87
  %v156 = vunpack.c.h.b16 %v87
  %v157 = vunpack.c.l.b16 %v88
  %v158 = vunpack.c.h.b16 %v88
  %v159 = vunpack.c.l.b16 %v89
  %v160 = vunpack.c.h.b16 %v89
  %v161 = vunpack.c.l.b16 %v90
  %v162 = vunpack.c.h.b16 %v90
  %v163 = vpack.c.b16 %v157, %v155
  %v164 = vpack.c.b16 %v158, %v156
  %v165 = vpack.c.b16 %v161, %v159
  %v166 = vpack.c.b16 %v162, %v160
  %vm169 = vcmask 228352
  %v171 = vsel %vm169, %v139, 0
  %v174 = vsel %vm169, %v140, 0
  %v177 = vsel %vm169, %v141, 0
  %v180 = vsel %vm169, %v142, 0
  %v183 = vsel %vm169, %v143, 0
  %v186 = vsel %vm169, %v144, 0
  %v189 = vsel %vm169, %v145, 0
  %v192 = vsel %vm169, %v146, 0
  %v195 = vsel %vm169, %v147, 0
  %v198 = vsel %vm169, %v148, 0
  %v201 = vsel %vm169, %v149, 0
  %v204 = vsel %vm169, %v150, 0
  %vm206 = vcmask 1045504
  %v208 = vsel %vm206, %v165, 0
  %v211 = vsel %vm206, %v166, 0
  %213 = vmatprep.subr.bf16.mxu0 0
  %214 = vmatpush1.bf16.msra.mxu0 0
  %215 = vmatprep.subr.bf16.mxu0 0
  %216 = vmatpush1.bf16.msra.mxu0 0
  %217 = vmatprep.subr.bf16.mxu0 0
  %218 = vmatpush1.bf16.msra.mxu0 0
  %219 = vmatprep.subr.bf16.mxu0 0
  %220 = vmatpush1.bf16.msra.mxu0 0
  %221 = vmatprep.subr.bf16.mxu0 0
  %222 = vmatpush1.bf16.msra.mxu0 0
  %223 = vmatprep.subr.bf16.mxu0 0
  %224 = vmatpush1.bf16.msra.mxu0 0
  %225 = vmatprep.subr.bf16.mxu0 %v211
  %226 = vmatpush1.bf16.msra.mxu0 %v208
  %227 = vmatprep.subr.bf16.mxu0 %v164
  %228 = vmatpush1.bf16.msra.mxu0 %v163
  %229 = vmatprep.subr.bf16.mxu0 0
  %230 = vmatpush2.bf16.msra.mxu0 0
  %231 = vmatprep.subr.bf16.mxu0 0
  %232 = vmatpush2.bf16.msra.mxu0 0
  %233 = vmatprep.subr.bf16.mxu0 0
  %234 = vmatpush2.bf16.msra.mxu0 0
  %235 = vmatprep.subr.bf16.mxu0 0
  %236 = vmatpush2.bf16.msra.mxu0 0
  %237 = vmatprep.subr.bf16.mxu0 0
  %238 = vmatpush2.bf16.msra.mxu0 0
  %239 = vmatprep.subr.bf16.mxu0 0
  %240 = vmatpush2.bf16.msra.mxu0 0
  %241 = vmatprep.subr.bf16.mxu0 0
  %242 = vmatpush2.bf16.msra.mxu0 0
  %243 = vmatprep.subr.bf16.mxu0 0
  %244 = vmatpush2.bf16.msra.mxu0 0
  %245 = vmatprep.mubr.bf16.mxu0 0
  %246 = vmatmul.mubr.bf16.gmra.mxu0 %v171
  %v247 = vpop.f32.mrf.mxu0
  %v248 = vadd.f32 0.0, %v247
  %v249 = vpop.f32.mrf.mxu0
  %v250 = vadd.f32 0.0, %v249
  %v251 = vpop.f32.mrf.mxu0
  %v252 = vadd.f32 0.0, %v251
  %v253 = vpop.f32.mrf.mxu0
  %v254 = vadd.f32 0.0, %v253
  %255 = vmatprep.mubr.bf16.mxu0 0
  %256 = vmatmul.mubr.bf16.gmra.mxu0 %v174
  %v257 = vpop.f32.mrf.mxu0
  %v258 = vadd.f32 0.0, %v257
  %v259 = vpop.f32.mrf.mxu0
  %v260 = vadd.f32 0.0, %v259
  %v261 = vpop.f32.mrf.mxu0
  %v262 = vadd.f32 0.0, %v261
  %v263 = vpop.f32.mrf.mxu0
  %v264 = vadd.f32 0.0, %v263
  %265 = vmatprep.mubr.bf16.mxu0 0
  %266 = vmatmul.mubr.bf16.gmra.mxu0 %v177
  %v267 = vpop.f32.mrf.mxu0
  %v268 = vadd.f32 0.0, %v267
  %v269 = vpop.f32.mrf.mxu0
  %v270 = vadd.f32 0.0, %v269
  %v271 = vpop.f32.mrf.mxu0
  %v272 = vadd.f32 0.0, %v271
  %v273 = vpop.f32.mrf.mxu0
  %v274 = vadd.f32 0.0, %v273
  %275 = vmatprep.mubr.bf16.mxu0 0
  %276 = vmatmul.mubr.bf16.gmra.mxu0 %v180
  %v277 = vpop.f32.mrf.mxu0
  %v278 = vadd.f32 0.0, %v277
  %v279 = vpop.f32.mrf.mxu0
  %v280 = vadd.f32 0.0, %v279
  %v281 = vpop.f32.mrf.mxu0
  %v282 = vadd.f32 0.0, %v281
  %v283 = vpop.f32.mrf.mxu0
  %v284 = vadd.f32 0.0, %v283
  %285 = vmatprep.mubr.bf16.mxu0 0
  %286 = vmatmul.mubr.bf16.gmra.mxu0 %v183
  %v287 = vpop.f32.mrf.mxu0
  %v288 = vadd.f32 0.0, %v287
  %v289 = vpop.f32.mrf.mxu0
  %v290 = vadd.f32 0.0, %v289
  %v291 = vpop.f32.mrf.mxu0
  %v292 = vadd.f32 0.0, %v291
  %v293 = vpop.f32.mrf.mxu0
  %v294 = vadd.f32 0.0, %v293
  %295 = vmatprep.mubr.bf16.mxu0 0
  %296 = vmatmul.mubr.bf16.gmra.mxu0 %v186
  %v297 = vpop.f32.mrf.mxu0
  %v298 = vadd.f32 0.0, %v297
  %v299 = vpop.f32.mrf.mxu0
  %v300 = vadd.f32 0.0, %v299
  %v301 = vpop.f32.mrf.mxu0
  %v302 = vadd.f32 0.0, %v301
  %v303 = vpop.f32.mrf.mxu0
  %v304 = vadd.f32 0.0, %v303
  %305 = vmatprep.mubr.bf16.mxu0 0
  %306 = vmatmul.mubr.bf16.gmra.mxu0 %v189
  %v307 = vpop.f32.mrf.mxu0
  %v308 = vadd.f32 0.0, %v307
  %v309 = vpop.f32.mrf.mxu0
  %v310 = vadd.f32 0.0, %v309
  %v311 = vpop.f32.mrf.mxu0
  %v312 = vadd.f32 0.0, %v311
  %v313 = vpop.f32.mrf.mxu0
  %v314 = vadd.f32 0.0, %v313
  %315 = vmatprep.mubr.bf16.mxu0 0
  %316 = vmatmul.mubr.bf16.gmra.mxu0 %v192
  %v317 = vpop.f32.mrf.mxu0
  %v318 = vadd.f32 0.0, %v317
  %v319 = vpop.f32.mrf.mxu0
  %v320 = vadd.f32 0.0, %v319
  %v321 = vpop.f32.mrf.mxu0
  %v322 = vadd.f32 0.0, %v321
  %v323 = vpop.f32.mrf.mxu0
  %v324 = vadd.f32 0.0, %v323
  %325 = vmatprep.mubr.bf16.mxu0 0
  %326 = vmatmul.mubr.bf16.gmra.mxu0 %v195
  %v327 = vpop.f32.mrf.mxu0
  %v328 = vadd.f32 0.0, %v327
  %v329 = vpop.f32.mrf.mxu0
  %v330 = vadd.f32 0.0, %v329
  %v331 = vpop.f32.mrf.mxu0
  %v332 = vadd.f32 0.0, %v331
  %v333 = vpop.f32.mrf.mxu0
  %v334 = vadd.f32 0.0, %v333
  %335 = vmatprep.mubr.bf16.mxu0 0
  %336 = vmatmul.mubr.bf16.gmra.mxu0 %v198
  %v337 = vpop.f32.mrf.mxu0
  %v338 = vadd.f32 0.0, %v337
  %v339 = vpop.f32.mrf.mxu0
  %v340 = vadd.f32 0.0, %v339
  %v341 = vpop.f32.mrf.mxu0
  %v342 = vadd.f32 0.0, %v341
  %v343 = vpop.f32.mrf.mxu0
  %v344 = vadd.f32 0.0, %v343
  %345 = vmatprep.mubr.bf16.mxu0 0
  %346 = vmatmul.mubr.bf16.gmra.mxu0 %v201
  %v347 = vpop.f32.mrf.mxu0
  %v348 = vadd.f32 0.0, %v347
  %v349 = vpop.f32.mrf.mxu0
  %v350 = vadd.f32 0.0, %v349
  %v351 = vpop.f32.mrf.mxu0
  %v352 = vadd.f32 0.0, %v351
  %v353 = vpop.f32.mrf.mxu0
  %v354 = vadd.f32 0.0, %v353
  %355 = vmatprep.mubr.bf16.mxu0 0
  %356 = vmatmul.mubr.bf16.gmra.mxu0 %v204
  %v357 = vpop.f32.mrf.mxu0
  %v358 = vadd.f32 0.0, %v357
  %v359 = vpop.f32.mrf.mxu0
  %v360 = vadd.f32 0.0, %v359
  %v361 = vpop.f32.mrf.mxu0
  %v362 = vadd.f32 0.0, %v361
  %v363 = vpop.f32.mrf.mxu0
  %v364 = vadd.f32 0.0, %v363
  %365 = vdwg.mxu0
  %v390 = vunpack.c.l.b16 %v33
  %v391 = vunpack.c.l.b16 %v34
  %v392 = vunpack.c.l.b16 %v35
  %v393 = vunpack.c.l.b16 %v36
  %v394 = vunpack.c.l.b16 %v37
  %v395 = vunpack.c.l.b16 %v38
  %v396 = vunpack.c.l.b16 %v39
  %v397 = vunpack.c.l.b16 %v40
  %v398 = vunpack.c.l.b16 %v41
  %v399 = vunpack.c.l.b16 %v42
  %v400 = vunpack.c.l.b16 %v43
  %v401 = vunpack.c.l.b16 %v44
  %v402 = vunpack.c.l.b16 %v45
  %v403 = vunpack.c.l.b16 %v46
  %v404 = vunpack.c.l.b16 %v47
  %v405 = vunpack.c.l.b16 %v48
  %v406 = vunpack.c.l.b16 %v49
  %v407 = vunpack.c.l.b16 %v50
  %v408 = vunpack.c.l.b16 %v51
  %v409 = vunpack.c.l.b16 %v52
  %v410 = vunpack.c.l.b16 %v53
  %v411 = vunpack.c.l.b16 %v54
  %v412 = vunpack.c.l.b16 %v55
  %v413 = vunpack.c.l.b16 %v56
  %v414 = vpack.c.b16 %v391, %v390
  %v415 = vpack.c.b16 %v393, %v392
  %v416 = vpack.c.b16 %v395, %v394
  %v417 = vpack.c.b16 %v397, %v396
  %v418 = vpack.c.b16 %v399, %v398
  %v419 = vpack.c.b16 %v401, %v400
  %v420 = vpack.c.b16 %v403, %v402
  %v421 = vpack.c.b16 %v405, %v404
  %v422 = vpack.c.b16 %v407, %v406
  %v423 = vpack.c.b16 %v409, %v408
  %v424 = vpack.c.b16 %v411, %v410
  %v425 = vpack.c.b16 %v413, %v412
  %v430 = vunpack.c.l.b16 %v57
  %v431 = vunpack.c.h.b16 %v57
  %v432 = vunpack.c.l.b16 %v58
  %v433 = vunpack.c.h.b16 %v58
  %v434 = vunpack.c.l.b16 %v59
  %v435 = vunpack.c.h.b16 %v59
  %v436 = vunpack.c.l.b16 %v60
  %v437 = vunpack.c.h.b16 %v60
  %v438 = vpack.c.b16 %v432, %v430
  %v439 = vpack.c.b16 %v433, %v431
  %v440 = vpack.c.b16 %v436, %v434
  %v441 = vpack.c.b16 %v437, %v435
  %v445 = vsel %vm169, %v414, 0
  %v448 = vsel %vm169, %v415, 0
  %v451 = vsel %vm169, %v416, 0
  %v454 = vsel %vm169, %v417, 0
  %v457 = vsel %vm169, %v418, 0
  %v460 = vsel %vm169, %v419, 0
  %v463 = vsel %vm169, %v420, 0
  %v466 = vsel %vm169, %v421, 0
  %v469 = vsel %vm169, %v422, 0
  %v472 = vsel %vm169, %v423, 0
  %v475 = vsel %vm169, %v424, 0
  %v478 = vsel %vm169, %v425, 0
  %v481 = vsel %vm206, %v440, 0
  %v484 = vsel %vm206, %v441, 0
  %486 = vmatprep.subr.bf16.mxu0 0
  %487 = vmatpush1.bf16.msra.mxu0 0
  %488 = vmatprep.subr.bf16.mxu0 0
  %489 = vmatpush1.bf16.msra.mxu0 0
  %490 = vmatprep.subr.bf16.mxu0 0
  %491 = vmatpush1.bf16.msra.mxu0 0
  %492 = vmatprep.subr.bf16.mxu0 0
  %493 = vmatpush1.bf16.msra.mxu0 0
  %494 = vmatprep.subr.bf16.mxu0 0
  %495 = vmatpush1.bf16.msra.mxu0 0
  %496 = vmatprep.subr.bf16.mxu0 0
  %497 = vmatpush1.bf16.msra.mxu0 0
  %498 = vmatprep.subr.bf16.mxu0 %v484
  %499 = vmatpush1.bf16.msra.mxu0 %v481
  %500 = vmatprep.subr.bf16.mxu0 %v439
  %501 = vmatpush1.bf16.msra.mxu0 %v438
  %502 = vmatprep.subr.bf16.mxu0 0
  %503 = vmatpush2.bf16.msra.mxu0 0
  %504 = vmatprep.subr.bf16.mxu0 0
  %505 = vmatpush2.bf16.msra.mxu0 0
  %506 = vmatprep.subr.bf16.mxu0 0
  %507 = vmatpush2.bf16.msra.mxu0 0
  %508 = vmatprep.subr.bf16.mxu0 0
  %509 = vmatpush2.bf16.msra.mxu0 0
  %510 = vmatprep.subr.bf16.mxu0 0
  %511 = vmatpush2.bf16.msra.mxu0 0
  %512 = vmatprep.subr.bf16.mxu0 0
  %513 = vmatpush2.bf16.msra.mxu0 0
  %514 = vmatprep.subr.bf16.mxu0 0
  %515 = vmatpush2.bf16.msra.mxu0 0
  %516 = vmatprep.subr.bf16.mxu0 0
  %517 = vmatpush2.bf16.msra.mxu0 0
  %518 = vmatprep.mubr.bf16.mxu0 0
  %519 = vmatmul.mubr.bf16.gmra.mxu0 %v445
  %v520 = vpop.f32.mrf.mxu0
  %v521 = vadd.f32 %v248, %v520
  %v522 = vpop.f32.mrf.mxu0
  %v523 = vadd.f32 %v250, %v522
  %v524 = vpop.f32.mrf.mxu0
  %v525 = vadd.f32 %v252, %v524
  %v526 = vpop.f32.mrf.mxu0
  %v527 = vadd.f32 %v254, %v526
  %528 = vmatprep.mubr.bf16.mxu0 0
  %529 = vmatmul.mubr.bf16.gmra.mxu0 %v448
  %v530 = vpop.f32.mrf.mxu0
  %v531 = vadd.f32 %v258, %v530
  %v532 = vpop.f32.mrf.mxu0
  %v533 = vadd.f32 %v260, %v532
  %v534 = vpop.f32.mrf.mxu0
  %v535 = vadd.f32 %v262, %v534
  %v536 = vpop.f32.mrf.mxu0
  %v537 = vadd.f32 %v264, %v536
  %538 = vmatprep.mubr.bf16.mxu0 0
  %539 = vmatmul.mubr.bf16.gmra.mxu0 %v451
  %v540 = vpop.f32.mrf.mxu0
  %v541 = vadd.f32 %v268, %v540
  %v542 = vpop.f32.mrf.mxu0
  %v543 = vadd.f32 %v270, %v542
  %v544 = vpop.f32.mrf.mxu0
  %v545 = vadd.f32 %v272, %v544
  %v546 = vpop.f32.mrf.mxu0
  %v547 = vadd.f32 %v274, %v546
  %548 = vmatprep.mubr.bf16.mxu0 0
  %549 = vmatmul.mubr.bf16.gmra.mxu0 %v454
  %v550 = vpop.f32.mrf.mxu0
  %v551 = vadd.f32 %v278, %v550
  %v552 = vpop.f32.mrf.mxu0
  %v553 = vadd.f32 %v280, %v552
  %v554 = vpop.f32.mrf.mxu0
  %v555 = vadd.f32 %v282, %v554
  %v556 = vpop.f32.mrf.mxu0
  %v557 = vadd.f32 %v284, %v556
  %558 = vmatprep.mubr.bf16.mxu0 0
  %559 = vmatmul.mubr.bf16.gmra.mxu0 %v457
  %v560 = vpop.f32.mrf.mxu0
  %v561 = vadd.f32 %v288, %v560
  %v562 = vpop.f32.mrf.mxu0
  %v563 = vadd.f32 %v290, %v562
  %v564 = vpop.f32.mrf.mxu0
  %v565 = vadd.f32 %v292, %v564
  %v566 = vpop.f32.mrf.mxu0
  %v567 = vadd.f32 %v294, %v566
  %568 = vmatprep.mubr.bf16.mxu0 0
  %569 = vmatmul.mubr.bf16.gmra.mxu0 %v460
  %v570 = vpop.f32.mrf.mxu0
  %v571 = vadd.f32 %v298, %v570
  %v572 = vpop.f32.mrf.mxu0
  %v573 = vadd.f32 %v300, %v572
  %v574 = vpop.f32.mrf.mxu0
  %v575 = vadd.f32 %v302, %v574
  %v576 = vpop.f32.mrf.mxu0
  %v577 = vadd.f32 %v304, %v576
  %578 = vmatprep.mubr.bf16.mxu0 0
  %579 = vmatmul.mubr.bf16.gmra.mxu0 %v463
  %v580 = vpop.f32.mrf.mxu0
  %v581 = vadd.f32 %v308, %v580
  %v582 = vpop.f32.mrf.mxu0
  %v583 = vadd.f32 %v310, %v582
  %v584 = vpop.f32.mrf.mxu0
  %v585 = vadd.f32 %v312, %v584
  %v586 = vpop.f32.mrf.mxu0
  %v587 = vadd.f32 %v314, %v586
  %588 = vmatprep.mubr.bf16.mxu0 0
  %589 = vmatmul.mubr.bf16.gmra.mxu0 %v466
  %v590 = vpop.f32.mrf.mxu0
  %v591 = vadd.f32 %v318, %v590
  %v592 = vpop.f32.mrf.mxu0
  %v593 = vadd.f32 %v320, %v592
  %v594 = vpop.f32.mrf.mxu0
  %v595 = vadd.f32 %v322, %v594
  %v596 = vpop.f32.mrf.mxu0
  %v597 = vadd.f32 %v324, %v596
  %598 = vmatprep.mubr.bf16.mxu0 0
  %599 = vmatmul.mubr.bf16.gmra.mxu0 %v469
  %v600 = vpop.f32.mrf.mxu0
  %v601 = vadd.f32 %v328, %v600
  %v602 = vpop.f32.mrf.mxu0
  %v603 = vadd.f32 %v330, %v602
  %v604 = vpop.f32.mrf.mxu0
  %v605 = vadd.f32 %v332, %v604
  %v606 = vpop.f32.mrf.mxu0
  %v607 = vadd.f32 %v334, %v606
  %608 = vmatprep.mubr.bf16.mxu0 0
  %609 = vmatmul.mubr.bf16.gmra.mxu0 %v472
  %v610 = vpop.f32.mrf.mxu0
  %v611 = vadd.f32 %v338, %v610
  %v612 = vpop.f32.mrf.mxu0
  %v613 = vadd.f32 %v340, %v612
  %v614 = vpop.f32.mrf.mxu0
  %v615 = vadd.f32 %v342, %v614
  %v616 = vpop.f32.mrf.mxu0
  %v617 = vadd.f32 %v344, %v616
  %618 = vmatprep.mubr.bf16.mxu0 0
  %619 = vmatmul.mubr.bf16.gmra.mxu0 %v475
  %v620 = vpop.f32.mrf.mxu0
  %v621 = vadd.f32 %v348, %v620
  %v622 = vpop.f32.mrf.mxu0
  %v623 = vadd.f32 %v350, %v622
  %v624 = vpop.f32.mrf.mxu0
  %v625 = vadd.f32 %v352, %v624
  %v626 = vpop.f32.mrf.mxu0
  %v627 = vadd.f32 %v354, %v626
  %628 = vmatprep.mubr.bf16.mxu0 0
  %629 = vmatmul.mubr.bf16.gmra.mxu0 %v478
  %v630 = vpop.f32.mrf.mxu0
  %v631 = vadd.f32 %v358, %v630
  %v632 = vpop.f32.mrf.mxu0
  %v633 = vadd.f32 %v360, %v632
  %v634 = vpop.f32.mrf.mxu0
  %v635 = vadd.f32 %v362, %v634
  %v636 = vpop.f32.mrf.mxu0
  %v637 = vadd.f32 %v364, %v636
  %638 = vdwg.mxu0
  %s639 = scalar_lea.vmem %s0, 8
  %v640 = vld [vmem:[%s639] sm:$0xf]
  %v641 = vld [vmem:[%s639 + $0x4] sm:$0xf]
  %v642 = vld [vmem:[%s639 + $0x8] sm:$0xf]
  %v643 = vld [vmem:[%s639 + $0xc] sm:$0xf]
  %v644 = vld [vmem:[%s639 + $0x10] sm:$0xf]
  %v645 = vld [vmem:[%s639 + $0x14] sm:$0xf]
  %v646 = vld [vmem:[%s639 + $0x18] sm:$0xf]
  %v647 = vld [vmem:[%s639 + $0x1c] sm:$0xf]
  %v648 = vld [vmem:[%s639 + $0x20] sm:$0xf]
  %v649 = vld [vmem:[%s639 + $0x24] sm:$0xf]
  %v650 = vld [vmem:[%s639 + $0x28] sm:$0xf]
  %v651 = vld [vmem:[%s639 + $0x2c] sm:$0xf]
  %v652 = vld [vmem:[%s639 + $0x30] sm:$0xf]
  %v653 = vld [vmem:[%s639 + $0x34] sm:$0xf]
  %v654 = vld [vmem:[%s639 + $0x38] sm:$0xf]
  %v655 = vld [vmem:[%s639 + $0x3c] sm:$0xf]
  %v656 = vld [vmem:[%s639 + $0x40] sm:$0xf]
  %v657 = vld [vmem:[%s639 + $0x44] sm:$0xf]
  %v658 = vld [vmem:[%s639 + $0x48] sm:$0xf]
  %v659 = vld [vmem:[%s639 + $0x4c] sm:$0xf]
  %v660 = vld [vmem:[%s639 + $0x50] sm:$0xf]
  %v661 = vld [vmem:[%s639 + $0x54] sm:$0xf]
  %v662 = vld [vmem:[%s639 + $0x58] sm:$0xf]
  %v663 = vld [vmem:[%s639 + $0x5c] sm:$0xf]
  %s664 = scalar_lea.vmem %s1, 64
  %v665 = vld [vmem:[%s664] sm:$0xff]
  %v666 = vld [vmem:[%s664 + $0x8] sm:$0xff]
  %v667 = vld [vmem:[%s664 + $0x10] sm:$0xff]
  %v668 = vld [vmem:[%s664 + $0x18] sm:$0x33]
  %v693 = vunpack.c.l.b16 %v640
  %v694 = vunpack.c.l.b16 %v641
  %v695 = vunpack.c.l.b16 %v642
  %v696 = vunpack.c.l.b16 %v643
  %v697 = vunpack.c.l.b16 %v644
  %v698 = vunpack.c.l.b16 %v645
  %v699 = vunpack.c.l.b16 %v646
  %v700 = vunpack.c.l.b16 %v647
  %v701 = vunpack.c.l.b16 %v648
  %v702 = vunpack.c.l.b16 %v649
  %v703 = vunpack.c.l.b16 %v650
  %v704 = vunpack.c.l.b16 %v651
  %v705 = vunpack.c.l.b16 %v652
  %v706 = vunpack.c.l.b16 %v653
  %v707 = vunpack.c.l.b16 %v654
  %v708 = vunpack.c.l.b16 %v655
  %v709 = vunpack.c.l.b16 %v656
  %v710 = vunpack.c.l.b16 %v657
  %v711 = vunpack.c.l.b16 %v658
  %v712 = vunpack.c.l.b16 %v659
  %v713 = vunpack.c.l.b16 %v660
  %v714 = vunpack.c.l.b16 %v661
  %v715 = vunpack.c.l.b16 %v662
  %v716 = vunpack.c.l.b16 %v663
  %v717 = vpack.c.b16 %v694, %v693
  %v718 = vpack.c.b16 %v696, %v695
  %v719 = vpack.c.b16 %v698, %v697
  %v720 = vpack.c.b16 %v700, %v699
  %v721 = vpack.c.b16 %v702, %v701
  %v722 = vpack.c.b16 %v704, %v703
  %v723 = vpack.c.b16 %v706, %v705
  %v724 = vpack.c.b16 %v708, %v707
  %v725 = vpack.c.b16 %v710, %v709
  %v726 = vpack.c.b16 %v712, %v711
  %v727 = vpack.c.b16 %v714, %v713
  %v728 = vpack.c.b16 %v716, %v715
  %v733 = vunpack.c.l.b16 %v665
  %v734 = vunpack.c.h.b16 %v665
  %v735 = vunpack.c.l.b16 %v666
  %v736 = vunpack.c.h.b16 %v666
  %v737 = vunpack.c.l.b16 %v667
  %v738 = vunpack.c.h.b16 %v667
  %v739 = vunpack.c.l.b16 %v668
  %v740 = vunpack.c.h.b16 %v668
  %v741 = vpack.c.b16 %v735, %v733
  %v742 = vpack.c.b16 %v736, %v734
  %v743 = vpack.c.b16 %v739, %v737
  %v744 = vpack.c.b16 %v740, %v738
  %v748 = vsel %vm169, %v717, 0
  %v751 = vsel %vm169, %v718, 0
  %v754 = vsel %vm169, %v719, 0
  %v757 = vsel %vm169, %v720, 0
  %v760 = vsel %vm169, %v721, 0
  %v763 = vsel %vm169, %v722, 0
  %v766 = vsel %vm169, %v723, 0
  %v769 = vsel %vm169, %v724, 0
  %v772 = vsel %vm169, %v725, 0
  %v775 = vsel %vm169, %v726, 0
  %v778 = vsel %vm169, %v727, 0
  %v781 = vsel %vm169, %v728, 0
  %v784 = vsel %vm206, %v743, 0
  %v787 = vsel %vm206, %v744, 0
  %789 = vmatprep.subr.bf16.mxu0 0
  %790 = vmatpush1.bf16.msra.mxu0 0
  %791 = vmatprep.subr.bf16.mxu0 0
  %792 = vmatpush1.bf16.msra.mxu0 0
  %793 = vmatprep.subr.bf16.mxu0 0
  %794 = vmatpush1.bf16.msra.mxu0 0
  %795 = vmatprep.subr.bf16.mxu0 0
  %796 = vmatpush1.bf16.msra.mxu0 0
  %797 = vmatprep.subr.bf16.mxu0 0
  %798 = vmatpush1.bf16.msra.mxu0 0
  %799 = vmatprep.subr.bf16.mxu0 0
  %800 = vmatpush1.bf16.msra.mxu0 0
  %801 = vmatprep.subr.bf16.mxu0 %v787
  %802 = vmatpush1.bf16.msra.mxu0 %v784
  %803 = vmatprep.subr.bf16.mxu0 %v742
  %804 = vmatpush1.bf16.msra.mxu0 %v741
  %805 = vmatprep.subr.bf16.mxu0 0
  %806 = vmatpush2.bf16.msra.mxu0 0
  %807 = vmatprep.subr.bf16.mxu0 0
  %808 = vmatpush2.bf16.msra.mxu0 0
  %809 = vmatprep.subr.bf16.mxu0 0
  %810 = vmatpush2.bf16.msra.mxu0 0
  %811 = vmatprep.subr.bf16.mxu0 0
  %812 = vmatpush2.bf16.msra.mxu0 0
  %813 = vmatprep.subr.bf16.mxu0 0
  %814 = vmatpush2.bf16.msra.mxu0 0
  %815 = vmatprep.subr.bf16.mxu0 0
  %816 = vmatpush2.bf16.msra.mxu0 0
  %817 = vmatprep.subr.bf16.mxu0 0
  %818 = vmatpush2.bf16.msra.mxu0 0
  %819 = vmatprep.subr.bf16.mxu0 0
  %820 = vmatpush2.bf16.msra.mxu0 0
  %821 = vmatprep.mubr.bf16.mxu0 0
  %822 = vmatmul.mubr.bf16.gmra.mxu0 %v748
  %v823 = vpop.f32.mrf.mxu0
  %v824 = vadd.f32 0.0, %v823
  %v825 = vpop.f32.mrf.mxu0
  %v826 = vadd.f32 0.0, %v825
  %v827 = vpop.f32.mrf.mxu0
  %v828 = vadd.f32 0.0, %v827
  %v829 = vpop.f32.mrf.mxu0
  %v830 = vadd.f32 0.0, %v829
  %831 = vmatprep.mubr.bf16.mxu0 0
  %832 = vmatmul.mubr.bf16.gmra.mxu0 %v751
  %v833 = vpop.f32.mrf.mxu0
  %v834 = vadd.f32 0.0, %v833
  %v835 = vpop.f32.mrf.mxu0
  %v836 = vadd.f32 0.0, %v835
  %v837 = vpop.f32.mrf.mxu0
  %v838 = vadd.f32 0.0, %v837
  %v839 = vpop.f32.mrf.mxu0
  %v840 = vadd.f32 0.0, %v839
  %841 = vmatprep.mubr.bf16.mxu0 0
  %842 = vmatmul.mubr.bf16.gmra.mxu0 %v754
  %v843 = vpop.f32.mrf.mxu0
  %v844 = vadd.f32 0.0, %v843
  %v845 = vpop.f32.mrf.mxu0
  %v846 = vadd.f32 0.0, %v845
  %v847 = vpop.f32.mrf.mxu0
  %v848 = vadd.f32 0.0, %v847
  %v849 = vpop.f32.mrf.mxu0
  %v850 = vadd.f32 0.0, %v849
  %851 = vmatprep.mubr.bf16.mxu0 0
  %852 = vmatmul.mubr.bf16.gmra.mxu0 %v757
  %v853 = vpop.f32.mrf.mxu0
  %v854 = vadd.f32 0.0, %v853
  %v855 = vpop.f32.mrf.mxu0
  %v856 = vadd.f32 0.0, %v855
  %v857 = vpop.f32.mrf.mxu0
  %v858 = vadd.f32 0.0, %v857
  %v859 = vpop.f32.mrf.mxu0
  %v860 = vadd.f32 0.0, %v859
  %861 = vmatprep.mubr.bf16.mxu0 0
  %862 = vmatmul.mubr.bf16.gmra.mxu0 %v760
  %v863 = vpop.f32.mrf.mxu0
  %v864 = vadd.f32 0.0, %v863
  %v865 = vpop.f32.mrf.mxu0
  %v866 = vadd.f32 0.0, %v865
  %v867 = vpop.f32.mrf.mxu0
  %v868 = vadd.f32 0.0, %v867
  %v869 = vpop.f32.mrf.mxu0
  %v870 = vadd.f32 0.0, %v869
  %871 = vmatprep.mubr.bf16.mxu0 0
  %872 = vmatmul.mubr.bf16.gmra.mxu0 %v763
  %v873 = vpop.f32.mrf.mxu0
  %v874 = vadd.f32 0.0, %v873
  %v875 = vpop.f32.mrf.mxu0
  %v876 = vadd.f32 0.0, %v875
  %v877 = vpop.f32.mrf.mxu0
  %v878 = vadd.f32 0.0, %v877
  %v879 = vpop.f32.mrf.mxu0
  %v880 = vadd.f32 0.0, %v879
  %881 = vmatprep.mubr.bf16.mxu0 0
  %882 = vmatmul.mubr.bf16.gmra.mxu0 %v766
  %v883 = vpop.f32.mrf.mxu0
  %v884 = vadd.f32 0.0, %v883
  %v885 = vpop.f32.mrf.mxu0
  %v886 = vadd.f32 0.0, %v885
  %v887 = vpop.f32.mrf.mxu0
  %v888 = vadd.f32 0.0, %v887
  %v889 = vpop.f32.mrf.mxu0
  %v890 = vadd.f32 0.0, %v889
  %891 = vmatprep.mubr.bf16.mxu0 0
  %892 = vmatmul.mubr.bf16.gmra.mxu0 %v769
  %v893 = vpop.f32.mrf.mxu0
  %v894 = vadd.f32 0.0, %v893
  %v895 = vpop.f32.mrf.mxu0
  %v896 = vadd.f32 0.0, %v895
  %v897 = vpop.f32.mrf.mxu0
  %v898 = vadd.f32 0.0, %v897
  %v899 = vpop.f32.mrf.mxu0
  %v900 = vadd.f32 0.0, %v899
  %901 = vmatprep.mubr.bf16.mxu0 0
  %902 = vmatmul.mubr.bf16.gmra.mxu0 %v772
  %v903 = vpop.f32.mrf.mxu0
  %v904 = vadd.f32 0.0, %v903
  %v905 = vpop.f32.mrf.mxu0
  %v906 = vadd.f32 0.0, %v905
  %v907 = vpop.f32.mrf.mxu0
  %v908 = vadd.f32 0.0, %v907
  %v909 = vpop.f32.mrf.mxu0
  %v910 = vadd.f32 0.0, %v909
  %911 = vmatprep.mubr.bf16.mxu0 0
  %912 = vmatmul.mubr.bf16.gmra.mxu0 %v775
  %v913 = vpop.f32.mrf.mxu0
  %v914 = vadd.f32 0.0, %v913
  %v915 = vpop.f32.mrf.mxu0
  %v916 = vadd.f32 0.0, %v915
  %v917 = vpop.f32.mrf.mxu0
  %v918 = vadd.f32 0.0, %v917
  %v919 = vpop.f32.mrf.mxu0
  %v920 = vadd.f32 0.0, %v919
  %921 = vmatprep.mubr.bf16.mxu0 0
  %922 = vmatmul.mubr.bf16.gmra.mxu0 %v778
  %v923 = vpop.f32.mrf.mxu0
  %v924 = vadd.f32 0.0, %v923
  %v925 = vpop.f32.mrf.mxu0
  %v926 = vadd.f32 0.0, %v925
  %v927 = vpop.f32.mrf.mxu0
  %v928 = vadd.f32 0.0, %v927
  %v929 = vpop.f32.mrf.mxu0
  %v930 = vadd.f32 0.0, %v929
  %931 = vmatprep.mubr.bf16.mxu0 0
  %932 = vmatmul.mubr.bf16.gmra.mxu0 %v781
  %v933 = vpop.f32.mrf.mxu0
  %v934 = vadd.f32 0.0, %v933
  %v935 = vpop.f32.mrf.mxu0
  %v936 = vadd.f32 0.0, %v935
  %v937 = vpop.f32.mrf.mxu0
  %v938 = vadd.f32 0.0, %v937
  %v939 = vpop.f32.mrf.mxu0
  %v940 = vadd.f32 0.0, %v939
  %941 = vdwg.mxu0
  %v942 = vadd.f32 %v521, %v824
  %v943 = vadd.f32 %v523, %v826
  %v944 = vadd.f32 %v525, %v828
  %v945 = vadd.f32 %v527, %v830
  %v946 = vadd.f32 %v531, %v834
  %v947 = vadd.f32 %v533, %v836
  %v948 = vadd.f32 %v535, %v838
  %v949 = vadd.f32 %v537, %v840
  %v950 = vadd.f32 %v541, %v844
  %v951 = vadd.f32 %v543, %v846
  %v952 = vadd.f32 %v545, %v848
  %v953 = vadd.f32 %v547, %v850
  %v954 = vadd.f32 %v551, %v854
  %v955 = vadd.f32 %v553, %v856
  %v956 = vadd.f32 %v555, %v858
  %v957 = vadd.f32 %v557, %v860
  %v958 = vadd.f32 %v561, %v864
  %v959 = vadd.f32 %v563, %v866
  %v960 = vadd.f32 %v565, %v868
  %v961 = vadd.f32 %v567, %v870
  %v962 = vadd.f32 %v571, %v874
  %v963 = vadd.f32 %v573, %v876
  %v964 = vadd.f32 %v575, %v878
  %v965 = vadd.f32 %v577, %v880
  %v966 = vadd.f32 %v581, %v884
  %v967 = vadd.f32 %v583, %v886
  %v968 = vadd.f32 %v585, %v888
  %v969 = vadd.f32 %v587, %v890
  %v970 = vadd.f32 %v591, %v894
  %v971 = vadd.f32 %v593, %v896
  %v972 = vadd.f32 %v595, %v898
  %v973 = vadd.f32 %v597, %v900
  %v974 = vadd.f32 %v601, %v904
  %v975 = vadd.f32 %v603, %v906
  %v976 = vadd.f32 %v605, %v908
  %v977 = vadd.f32 %v607, %v910
  %v978 = vadd.f32 %v611, %v914
  %v979 = vadd.f32 %v613, %v916
  %v980 = vadd.f32 %v615, %v918
  %v981 = vadd.f32 %v617, %v920
  %v982 = vadd.f32 %v621, %v924
  %v983 = vadd.f32 %v623, %v926
  %v984 = vadd.f32 %v625, %v928
  %v985 = vadd.f32 %v627, %v930
  %v986 = vadd.f32 %v631, %v934
  %v987 = vadd.f32 %v633, %v936
  %v988 = vadd.f32 %v635, %v938
  %v989 = vadd.f32 %v637, %v940
  %s990 = scalar_lea.vmem %s0, 12
  %v991 = vld [vmem:[%s990] sm:$0xf]
  %v992 = vld [vmem:[%s990 + $0x4] sm:$0xf]
  %v993 = vld [vmem:[%s990 + $0x8] sm:$0xf]
  %v994 = vld [vmem:[%s990 + $0xc] sm:$0xf]
  %v995 = vld [vmem:[%s990 + $0x10] sm:$0xf]
  %v996 = vld [vmem:[%s990 + $0x14] sm:$0xf]
  %v997 = vld [vmem:[%s990 + $0x18] sm:$0xf]
  %v998 = vld [vmem:[%s990 + $0x1c] sm:$0xf]
  %v999 = vld [vmem:[%s990 + $0x20] sm:$0xf]
  %v1000 = vld [vmem:[%s990 + $0x24] sm:$0xf]
  %v1001 = vld [vmem:[%s990 + $0x28] sm:$0xf]
  %v1002 = vld [vmem:[%s990 + $0x2c] sm:$0xf]
  %v1003 = vld [vmem:[%s990 + $0x30] sm:$0xf]
  %v1004 = vld [vmem:[%s990 + $0x34] sm:$0xf]
  %v1005 = vld [vmem:[%s990 + $0x38] sm:$0xf]
  %v1006 = vld [vmem:[%s990 + $0x3c] sm:$0xf]
  %v1007 = vld [vmem:[%s990 + $0x40] sm:$0xf]
  %v1008 = vld [vmem:[%s990 + $0x44] sm:$0xf]
  %v1009 = vld [vmem:[%s990 + $0x48] sm:$0xf]
  %v1010 = vld [vmem:[%s990 + $0x4c] sm:$0xf]
  %v1011 = vld [vmem:[%s990 + $0x50] sm:$0xf]
  %v1012 = vld [vmem:[%s990 + $0x54] sm:$0xf]
  %v1013 = vld [vmem:[%s990 + $0x58] sm:$0xf]
  %v1014 = vld [vmem:[%s990 + $0x5c] sm:$0xf]
  %s1015 = scalar_lea.vmem %s1, 96
  %v1016 = vld [vmem:[%s1015] sm:$0xff]
  %v1017 = vld [vmem:[%s1015 + $0x8] sm:$0xff]
  %v1018 = vld [vmem:[%s1015 + $0x10] sm:$0xff]
  %v1019 = vld [vmem:[%s1015 + $0x18] sm:$0x33]
  %v1044 = vunpack.c.l.b16 %v991
  %v1045 = vunpack.c.l.b16 %v992
  %v1046 = vunpack.c.l.b16 %v993
  %v1047 = vunpack.c.l.b16 %v994
  %v1048 = vunpack.c.l.b16 %v995
  %v1049 = vunpack.c.l.b16 %v996
  %v1050 = vunpack.c.l.b16 %v997
  %v1051 = vunpack.c.l.b16 %v998
  %v1052 = vunpack.c.l.b16 %v999
  %v1053 = vunpack.c.l.b16 %v1000
  %v1054 = vunpack.c.l.b16 %v1001
  %v1055 = vunpack.c.l.b16 %v1002
  %v1056 = vunpack.c.l.b16 %v1003
  %v1057 = vunpack.c.l.b16 %v1004
  %v1058 = vunpack.c.l.b16 %v1005
  %v1059 = vunpack.c.l.b16 %v1006
  %v1060 = vunpack.c.l.b16 %v1007
  %v1061 = vunpack.c.l.b16 %v1008
  %v1062 = vunpack.c.l.b16 %v1009
  %v1063 = vunpack.c.l.b16 %v1010
  %v1064 = vunpack.c.l.b16 %v1011
  %v1065 = vunpack.c.l.b16 %v1012
  %v1066 = vunpack.c.l.b16 %v1013
  %v1067 = vunpack.c.l.b16 %v1014
  %v1068 = vpack.c.b16 %v1045, %v1044
  %v1069 = vpack.c.b16 %v1047, %v1046
  %v1070 = vpack.c.b16 %v1049, %v1048
  %v1071 = vpack.c.b16 %v1051, %v1050
  %v1072 = vpack.c.b16 %v1053, %v1052
  %v1073 = vpack.c.b16 %v1055, %v1054
  %v1074 = vpack.c.b16 %v1057, %v1056
  %v1075 = vpack.c.b16 %v1059, %v1058
  %v1076 = vpack.c.b16 %v1061, %v1060
  %v1077 = vpack.c.b16 %v1063, %v1062
  %v1078 = vpack.c.b16 %v1065, %v1064
  %v1079 = vpack.c.b16 %v1067, %v1066
  %v1084 = vunpack.c.l.b16 %v1016
  %v1085 = vunpack.c.h.b16 %v1016
  %v1086 = vunpack.c.l.b16 %v1017
  %v1087 = vunpack.c.h.b16 %v1017
  %v1088 = vunpack.c.l.b16 %v1018
  %v1089 = vunpack.c.h.b16 %v1018
  %v1090 = vunpack.c.l.b16 %v1019
  %v1091 = vunpack.c.h.b16 %v1019
  %v1092 = vpack.c.b16 %v1086, %v1084
  %v1093 = vpack.c.b16 %v1087, %v1085
  %v1094 = vpack.c.b16 %v1090, %v1088
  %v1095 = vpack.c.b16 %v1091, %v1089
  %v1099 = vsel %vm169, %v1068, 0
  %v1102 = vsel %vm169, %v1069, 0
  %v1105 = vsel %vm169, %v1070, 0
  %v1108 = vsel %vm169, %v1071, 0
  %v1111 = vsel %vm169, %v1072, 0
  %v1114 = vsel %vm169, %v1073, 0
  %v1117 = vsel %vm169, %v1074, 0
  %v1120 = vsel %vm169, %v1075, 0
  %v1123 = vsel %vm169, %v1076, 0
  %v1126 = vsel %vm169, %v1077, 0
  %v1129 = vsel %vm169, %v1078, 0
  %v1132 = vsel %vm169, %v1079, 0
  %v1135 = vsel %vm206, %v1094, 0
  %v1138 = vsel %vm206, %v1095, 0
  %1140 = vmatprep.subr.bf16.mxu0 0
  %1141 = vmatpush1.bf16.msra.mxu0 0
  %1142 = vmatprep.subr.bf16.mxu0 0
  %1143 = vmatpush1.bf16.msra.mxu0 0
  %1144 = vmatprep.subr.bf16.mxu0 0
  %1145 = vmatpush1.bf16.msra.mxu0 0
  %1146 = vmatprep.subr.bf16.mxu0 0
  %1147 = vmatpush1.bf16.msra.mxu0 0
  %1148 = vmatprep.subr.bf16.mxu0 0
  %1149 = vmatpush1.bf16.msra.mxu0 0
  %1150 = vmatprep.subr.bf16.mxu0 0
  %1151 = vmatpush1.bf16.msra.mxu0 0
  %1152 = vmatprep.subr.bf16.mxu0 %v1138
  %1153 = vmatpush1.bf16.msra.mxu0 %v1135
  %1154 = vmatprep.subr.bf16.mxu0 %v1093
  %1155 = vmatpush1.bf16.msra.mxu0 %v1092
  %1156 = vmatprep.subr.bf16.mxu0 0
  %1157 = vmatpush2.bf16.msra.mxu0 0
  %1158 = vmatprep.subr.bf16.mxu0 0
  %1159 = vmatpush2.bf16.msra.mxu0 0
  %1160 = vmatprep.subr.bf16.mxu0 0
  %1161 = vmatpush2.bf16.msra.mxu0 0
  %1162 = vmatprep.subr.bf16.mxu0 0
  %1163 = vmatpush2.bf16.msra.mxu0 0
  %1164 = vmatprep.subr.bf16.mxu0 0
  %1165 = vmatpush2.bf16.msra.mxu0 0
  %1166 = vmatprep.subr.bf16.mxu0 0
  %1167 = vmatpush2.bf16.msra.mxu0 0
  %1168 = vmatprep.subr.bf16.mxu0 0
  %1169 = vmatpush2.bf16.msra.mxu0 0
  %1170 = vmatprep.subr.bf16.mxu0 0
  %1171 = vmatpush2.bf16.msra.mxu0 0
  %1172 = vmatprep.mubr.bf16.mxu0 0
  %1173 = vmatmul.mubr.bf16.gmra.mxu0 %v1099
  %v1174 = vpop.f32.mrf.mxu0
  %v1175 = vadd.f32 0.0, %v1174
  %v1176 = vpop.f32.mrf.mxu0
  %v1177 = vadd.f32 0.0, %v1176
  %v1178 = vpop.f32.mrf.mxu0
  %v1179 = vadd.f32 0.0, %v1178
  %v1180 = vpop.f32.mrf.mxu0
  %v1181 = vadd.f32 0.0, %v1180
  %1182 = vmatprep.mubr.bf16.mxu0 0
  %1183 = vmatmul.mubr.bf16.gmra.mxu0 %v1102
  %v1184 = vpop.f32.mrf.mxu0
  %v1185 = vadd.f32 0.0, %v1184
  %v1186 = vpop.f32.mrf.mxu0
  %v1187 = vadd.f32 0.0, %v1186
  %v1188 = vpop.f32.mrf.mxu0
  %v1189 = vadd.f32 0.0, %v1188
  %v1190 = vpop.f32.mrf.mxu0
  %v1191 = vadd.f32 0.0, %v1190
  %1192 = vmatprep.mubr.bf16.mxu0 0
  %1193 = vmatmul.mubr.bf16.gmra.mxu0 %v1105
  %v1194 = vpop.f32.mrf.mxu0
  %v1195 = vadd.f32 0.0, %v1194
  %v1196 = vpop.f32.mrf.mxu0
  %v1197 = vadd.f32 0.0, %v1196
  %v1198 = vpop.f32.mrf.mxu0
  %v1199 = vadd.f32 0.0, %v1198
  %v1200 = vpop.f32.mrf.mxu0
  %v1201 = vadd.f32 0.0, %v1200
  %1202 = vmatprep.mubr.bf16.mxu0 0
  %1203 = vmatmul.mubr.bf16.gmra.mxu0 %v1108
  %v1204 = vpop.f32.mrf.mxu0
  %v1205 = vadd.f32 0.0, %v1204
  %v1206 = vpop.f32.mrf.mxu0
  %v1207 = vadd.f32 0.0, %v1206
  %v1208 = vpop.f32.mrf.mxu0
  %v1209 = vadd.f32 0.0, %v1208
  %v1210 = vpop.f32.mrf.mxu0
  %v1211 = vadd.f32 0.0, %v1210
  %1212 = vmatprep.mubr.bf16.mxu0 0
  %1213 = vmatmul.mubr.bf16.gmra.mxu0 %v1111
  %v1214 = vpop.f32.mrf.mxu0
  %v1215 = vadd.f32 0.0, %v1214
  %v1216 = vpop.f32.mrf.mxu0
  %v1217 = vadd.f32 0.0, %v1216
  %v1218 = vpop.f32.mrf.mxu0
  %v1219 = vadd.f32 0.0, %v1218
  %v1220 = vpop.f32.mrf.mxu0
  %v1221 = vadd.f32 0.0, %v1220
  %1222 = vmatprep.mubr.bf16.mxu0 0
  %1223 = vmatmul.mubr.bf16.gmra.mxu0 %v1114
  %v1224 = vpop.f32.mrf.mxu0
  %v1225 = vadd.f32 0.0, %v1224
  %v1226 = vpop.f32.mrf.mxu0
  %v1227 = vadd.f32 0.0, %v1226
  %v1228 = vpop.f32.mrf.mxu0
  %v1229 = vadd.f32 0.0, %v1228
  %v1230 = vpop.f32.mrf.mxu0
  %v1231 = vadd.f32 0.0, %v1230
  %1232 = vmatprep.mubr.bf16.mxu0 0
  %1233 = vmatmul.mubr.bf16.gmra.mxu0 %v1117
  %v1234 = vpop.f32.mrf.mxu0
  %v1235 = vadd.f32 0.0, %v1234
  %v1236 = vpop.f32.mrf.mxu0
  %v1237 = vadd.f32 0.0, %v1236
  %v1238 = vpop.f32.mrf.mxu0
  %v1239 = vadd.f32 0.0, %v1238
  %v1240 = vpop.f32.mrf.mxu0
  %v1241 = vadd.f32 0.0, %v1240
  %1242 = vmatprep.mubr.bf16.mxu0 0
  %1243 = vmatmul.mubr.bf16.gmra.mxu0 %v1120
  %v1244 = vpop.f32.mrf.mxu0
  %v1245 = vadd.f32 0.0, %v1244
  %v1246 = vpop.f32.mrf.mxu0
  %v1247 = vadd.f32 0.0, %v1246
  %v1248 = vpop.f32.mrf.mxu0
  %v1249 = vadd.f32 0.0, %v1248
  %v1250 = vpop.f32.mrf.mxu0
  %v1251 = vadd.f32 0.0, %v1250
  %1252 = vmatprep.mubr.bf16.mxu0 0
  %1253 = vmatmul.mubr.bf16.gmra.mxu0 %v1123
  %v1254 = vpop.f32.mrf.mxu0
  %v1255 = vadd.f32 0.0, %v1254
  %v1256 = vpop.f32.mrf.mxu0
  %v1257 = vadd.f32 0.0, %v1256
  %v1258 = vpop.f32.mrf.mxu0
  %v1259 = vadd.f32 0.0, %v1258
  %v1260 = vpop.f32.mrf.mxu0
  %v1261 = vadd.f32 0.0, %v1260
  %1262 = vmatprep.mubr.bf16.mxu0 0
  %1263 = vmatmul.mubr.bf16.gmra.mxu0 %v1126
  %v1264 = vpop.f32.mrf.mxu0
  %v1265 = vadd.f32 0.0, %v1264
  %v1266 = vpop.f32.mrf.mxu0
  %v1267 = vadd.f32 0.0, %v1266
  %v1268 = vpop.f32.mrf.mxu0
  %v1269 = vadd.f32 0.0, %v1268
  %v1270 = vpop.f32.mrf.mxu0
  %v1271 = vadd.f32 0.0, %v1270
  %1272 = vmatprep.mubr.bf16.mxu0 0
  %1273 = vmatmul.mubr.bf16.gmra.mxu0 %v1129
  %v1274 = vpop.f32.mrf.mxu0
  %v1275 = vadd.f32 0.0, %v1274
  %v1276 = vpop.f32.mrf.mxu0
  %v1277 = vadd.f32 0.0, %v1276
  %v1278 = vpop.f32.mrf.mxu0
  %v1279 = vadd.f32 0.0, %v1278
  %v1280 = vpop.f32.mrf.mxu0
  %v1281 = vadd.f32 0.0, %v1280
  %1282 = vmatprep.mubr.bf16.mxu0 0
  %1283 = vmatmul.mubr.bf16.gmra.mxu0 %v1132
  %v1284 = vpop.f32.mrf.mxu0
  %v1285 = vadd.f32 0.0, %v1284
  %v1286 = vpop.f32.mrf.mxu0
  %v1287 = vadd.f32 0.0, %v1286
  %v1288 = vpop.f32.mrf.mxu0
  %v1289 = vadd.f32 0.0, %v1288
  %v1290 = vpop.f32.mrf.mxu0
  %v1291 = vadd.f32 0.0, %v1290
  %1292 = vdwg.mxu0
  %v1293 = vadd.f32 %v942, %v1175
  %v1294 = vadd.f32 %v943, %v1177
  %v1295 = vadd.f32 %v944, %v1179
  %v1296 = vadd.f32 %v945, %v1181
  %v1297 = vadd.f32 %v946, %v1185
  %v1298 = vadd.f32 %v947, %v1187
  %v1299 = vadd.f32 %v948, %v1189
  %v1300 = vadd.f32 %v949, %v1191
  %v1301 = vadd.f32 %v950, %v1195
  %v1302 = vadd.f32 %v951, %v1197
  %v1303 = vadd.f32 %v952, %v1199
  %v1304 = vadd.f32 %v953, %v1201
  %v1305 = vadd.f32 %v954, %v1205
  %v1306 = vadd.f32 %v955, %v1207
  %v1307 = vadd.f32 %v956, %v1209
  %v1308 = vadd.f32 %v957, %v1211
  %v1309 = vadd.f32 %v958, %v1215
  %v1310 = vadd.f32 %v959, %v1217
  %v1311 = vadd.f32 %v960, %v1219
  %v1312 = vadd.f32 %v961, %v1221
  %v1313 = vadd.f32 %v962, %v1225
  %v1314 = vadd.f32 %v963, %v1227
  %v1315 = vadd.f32 %v964, %v1229
  %v1316 = vadd.f32 %v965, %v1231
  %v1317 = vadd.f32 %v966, %v1235
  %v1318 = vadd.f32 %v967, %v1237
  %v1319 = vadd.f32 %v968, %v1239
  %v1320 = vadd.f32 %v969, %v1241
  %v1321 = vadd.f32 %v970, %v1245
  %v1322 = vadd.f32 %v971, %v1247
  %v1323 = vadd.f32 %v972, %v1249
  %v1324 = vadd.f32 %v973, %v1251
  %v1325 = vadd.f32 %v974, %v1255
  %v1326 = vadd.f32 %v975, %v1257
  %v1327 = vadd.f32 %v976, %v1259
  %v1328 = vadd.f32 %v977, %v1261
  %v1329 = vadd.f32 %v978, %v1265
  %v1330 = vadd.f32 %v979, %v1267
  %v1331 = vadd.f32 %v980, %v1269
  %v1332 = vadd.f32 %v981, %v1271
  %v1333 = vadd.f32 %v982, %v1275
  %v1334 = vadd.f32 %v983, %v1277
  %v1335 = vadd.f32 %v984, %v1279
  %v1336 = vadd.f32 %v985, %v1281
  %v1337 = vadd.f32 %v986, %v1285
  %v1338 = vadd.f32 %v987, %v1287
  %v1339 = vadd.f32 %v988, %v1289
  %v1340 = vadd.f32 %v989, %v1291
  %s1341 = scalar_lea.vmem %s0, 16
  %v1342 = vld [vmem:[%s1341] sm:$0xf]
  %v1343 = vld [vmem:[%s1341 + $0x4] sm:$0xf]
  %v1344 = vld [vmem:[%s1341 + $0x8] sm:$0xf]
  %v1345 = vld [vmem:[%s1341 + $0xc] sm:$0xf]
  %v1346 = vld [vmem:[%s1341 + $0x10] sm:$0xf]
  %v1347 = vld [vmem:[%s1341 + $0x14] sm:$0xf]
  %v1348 = vld [vmem:[%s1341 + $0x18] sm:$0xf]
  %v1349 = vld [vmem:[%s1341 + $0x1c] sm:$0xf]
  %v1350 = vld [vmem:[%s1341 + $0x20] sm:$0xf]
  %v1351 = vld [vmem:[%s1341 + $0x24] sm:$0xf]
  %v1352 = vld [vmem:[%s1341 + $0x28] sm:$0xf]
  %v1353 = vld [vmem:[%s1341 + $0x2c] sm:$0xf]
  %v1354 = vld [vmem:[%s1341 + $0x30] sm:$0xf]
  %v1355 = vld [vmem:[%s1341 + $0x34] sm:$0xf]
  %v1356 = vld [vmem:[%s1341 + $0x38] sm:$0xf]
  %v1357 = vld [vmem:[%s1341 + $0x3c] sm:$0xf]
  %v1358 = vld [vmem:[%s1341 + $0x40] sm:$0xf]
  %v1359 = vld [vmem:[%s1341 + $0x44] sm:$0xf]
  %v1360 = vld [vmem:[%s1341 + $0x48] sm:$0xf]
  %v1361 = vld [vmem:[%s1341 + $0x4c] sm:$0xf]
  %v1362 = vld [vmem:[%s1341 + $0x50] sm:$0xf]
  %v1363 = vld [vmem:[%s1341 + $0x54] sm:$0xf]
  %v1364 = vld [vmem:[%s1341 + $0x58] sm:$0xf]
  %v1365 = vld [vmem:[%s1341 + $0x5c] sm:$0xf]
  %s1366 = scalar_lea.vmem %s1, 128
  %v1367 = vld [vmem:[%s1366] sm:$0xff]
  %v1368 = vld [vmem:[%s1366 + $0x8] sm:$0xff]
  %v1369 = vld [vmem:[%s1366 + $0x10] sm:$0xff]
  %v1370 = vld [vmem:[%s1366 + $0x18] sm:$0x33]
  %v1395 = vunpack.c.l.b16 %v1342
  %v1396 = vunpack.c.l.b16 %v1343
  %v1397 = vunpack.c.l.b16 %v1344
  %v1398 = vunpack.c.l.b16 %v1345
  %v1399 = vunpack.c.l.b16 %v1346
  %v1400 = vunpack.c.l.b16 %v1347
  %v1401 = vunpack.c.l.b16 %v1348
  %v1402 = vunpack.c.l.b16 %v1349
  %v1403 = vunpack.c.l.b16 %v1350
  %v1404 = vunpack.c.l.b16 %v1351
  %v1405 = vunpack.c.l.b16 %v1352
  %v1406 = vunpack.c.l.b16 %v1353
  %v1407 = vunpack.c.l.b16 %v1354
  %v1408 = vunpack.c.l.b16 %v1355
  %v1409 = vunpack.c.l.b16 %v1356
  %v1410 = vunpack.c.l.b16 %v1357
  %v1411 = vunpack.c.l.b16 %v1358
  %v1412 = vunpack.c.l.b16 %v1359
  %v1413 = vunpack.c.l.b16 %v1360
  %v1414 = vunpack.c.l.b16 %v1361
  %v1415 = vunpack.c.l.b16 %v1362
  %v1416 = vunpack.c.l.b16 %v1363
  %v1417 = vunpack.c.l.b16 %v1364
  %v1418 = vunpack.c.l.b16 %v1365
  %v1419 = vpack.c.b16 %v1396, %v1395
  %v1420 = vpack.c.b16 %v1398, %v1397
  %v1421 = vpack.c.b16 %v1400, %v1399
  %v1422 = vpack.c.b16 %v1402, %v1401
  %v1423 = vpack.c.b16 %v1404, %v1403
  %v1424 = vpack.c.b16 %v1406, %v1405
  %v1425 = vpack.c.b16 %v1408, %v1407
  %v1426 = vpack.c.b16 %v1410, %v1409
  %v1427 = vpack.c.b16 %v1412, %v1411
  %v1428 = vpack.c.b16 %v1414, %v1413
  %v1429 = vpack.c.b16 %v1416, %v1415
  %v1430 = vpack.c.b16 %v1418, %v1417
  %v1435 = vunpack.c.l.b16 %v1367
  %v1436 = vunpack.c.h.b16 %v1367
  %v1437 = vunpack.c.l.b16 %v1368
  %v1438 = vunpack.c.h.b16 %v1368
  %v1439 = vunpack.c.l.b16 %v1369
  %v1440 = vunpack.c.h.b16 %v1369
  %v1441 = vunpack.c.l.b16 %v1370
  %v1442 = vunpack.c.h.b16 %v1370
  %v1443 = vpack.c.b16 %v1437, %v1435
  %v1444 = vpack.c.b16 %v1438, %v1436
  %v1445 = vpack.c.b16 %v1441, %v1439
  %v1446 = vpack.c.b16 %v1442, %v1440
  %v1450 = vsel %vm169, %v1419, 0
  %v1453 = vsel %vm169, %v1420, 0
  %v1456 = vsel %vm169, %v1421, 0
  %v1459 = vsel %vm169, %v1422, 0
  %v1462 = vsel %vm169, %v1423, 0
  %v1465 = vsel %vm169, %v1424, 0
  %v1468 = vsel %vm169, %v1425, 0
  %v1471 = vsel %vm169, %v1426, 0
  %v1474 = vsel %vm169, %v1427, 0
  %v1477 = vsel %vm169, %v1428, 0
  %v1480 = vsel %vm169, %v1429, 0
  %v1483 = vsel %vm169, %v1430, 0
  %v1486 = vsel %vm206, %v1445, 0
  %v1489 = vsel %vm206, %v1446, 0
  %1491 = vmatprep.subr.bf16.mxu0 0
  %1492 = vmatpush1.bf16.msra.mxu0 0
  %1493 = vmatprep.subr.bf16.mxu0 0
  %1494 = vmatpush1.bf16.msra.mxu0 0
  %1495 = vmatprep.subr.bf16.mxu0 0
  %1496 = vmatpush1.bf16.msra.mxu0 0
  %1497 = vmatprep.subr.bf16.mxu0 0
  %1498 = vmatpush1.bf16.msra.mxu0 0
  %1499 = vmatprep.subr.bf16.mxu0 0
  %1500 = vmatpush1.bf16.msra.mxu0 0
  %1501 = vmatprep.subr.bf16.mxu0 0
  %1502 = vmatpush1.bf16.msra.mxu0 0
  %1503 = vmatprep.subr.bf16.mxu0 %v1489
  %1504 = vmatpush1.bf16.msra.mxu0 %v1486
  %1505 = vmatprep.subr.bf16.mxu0 %v1444
  %1506 = vmatpush1.bf16.msra.mxu0 %v1443
  %1507 = vmatprep.subr.bf16.mxu0 0
  %1508 = vmatpush2.bf16.msra.mxu0 0
  %1509 = vmatprep.subr.bf16.mxu0 0
  %1510 = vmatpush2.bf16.msra.mxu0 0
  %1511 = vmatprep.subr.bf16.mxu0 0
  %1512 = vmatpush2.bf16.msra.mxu0 0
  %1513 = vmatprep.subr.bf16.mxu0 0
  %1514 = vmatpush2.bf16.msra.mxu0 0
  %1515 = vmatprep.subr.bf16.mxu0 0
  %1516 = vmatpush2.bf16.msra.mxu0 0
  %1517 = vmatprep.subr.bf16.mxu0 0
  %1518 = vmatpush2.bf16.msra.mxu0 0
  %1519 = vmatprep.subr.bf16.mxu0 0
  %1520 = vmatpush2.bf16.msra.mxu0 0
  %1521 = vmatprep.subr.bf16.mxu0 0
  %1522 = vmatpush2.bf16.msra.mxu0 0
  %1523 = vmatprep.mubr.bf16.mxu0 0
  %1524 = vmatmul.mubr.bf16.gmra.mxu0 %v1450
  %v1525 = vpop.f32.mrf.mxu0
  %v1526 = vadd.f32 0.0, %v1525
  %v1527 = vpop.f32.mrf.mxu0
  %v1528 = vadd.f32 0.0, %v1527
  %v1529 = vpop.f32.mrf.mxu0
  %v1530 = vadd.f32 0.0, %v1529
  %v1531 = vpop.f32.mrf.mxu0
  %v1532 = vadd.f32 0.0, %v1531
  %1533 = vmatprep.mubr.bf16.mxu0 0
  %1534 = vmatmul.mubr.bf16.gmra.mxu0 %v1453
  %v1535 = vpop.f32.mrf.mxu0
  %v1536 = vadd.f32 0.0, %v1535
  %v1537 = vpop.f32.mrf.mxu0
  %v1538 = vadd.f32 0.0, %v1537
  %v1539 = vpop.f32.mrf.mxu0
  %v1540 = vadd.f32 0.0, %v1539
  %v1541 = vpop.f32.mrf.mxu0
  %v1542 = vadd.f32 0.0, %v1541
  %1543 = vmatprep.mubr.bf16.mxu0 0
  %1544 = vmatmul.mubr.bf16.gmra.mxu0 %v1456
  %v1545 = vpop.f32.mrf.mxu0
  %v1546 = vadd.f32 0.0, %v1545
  %v1547 = vpop.f32.mrf.mxu0
  %v1548 = vadd.f32 0.0, %v1547
  %v1549 = vpop.f32.mrf.mxu0
  %v1550 = vadd.f32 0.0, %v1549
  %v1551 = vpop.f32.mrf.mxu0
  %v1552 = vadd.f32 0.0, %v1551
  %1553 = vmatprep.mubr.bf16.mxu0 0
  %1554 = vmatmul.mubr.bf16.gmra.mxu0 %v1459
  %v1555 = vpop.f32.mrf.mxu0
  %v1556 = vadd.f32 0.0, %v1555
  %v1557 = vpop.f32.mrf.mxu0
  %v1558 = vadd.f32 0.0, %v1557
  %v1559 = vpop.f32.mrf.mxu0
  %v1560 = vadd.f32 0.0, %v1559
  %v1561 = vpop.f32.mrf.mxu0
  %v1562 = vadd.f32 0.0, %v1561
  %1563 = vmatprep.mubr.bf16.mxu0 0
  %1564 = vmatmul.mubr.bf16.gmra.mxu0 %v1462
  %v1565 = vpop.f32.mrf.mxu0
  %v1566 = vadd.f32 0.0, %v1565
  %v1567 = vpop.f32.mrf.mxu0
  %v1568 = vadd.f32 0.0, %v1567
  %v1569 = vpop.f32.mrf.mxu0
  %v1570 = vadd.f32 0.0, %v1569
  %v1571 = vpop.f32.mrf.mxu0
  %v1572 = vadd.f32 0.0, %v1571
  %1573 = vmatprep.mubr.bf16.mxu0 0
  %1574 = vmatmul.mubr.bf16.gmra.mxu0 %v1465
  %v1575 = vpop.f32.mrf.mxu0
  %v1576 = vadd.f32 0.0, %v1575
  %v1577 = vpop.f32.mrf.mxu0
  %v1578 = vadd.f32 0.0, %v1577
  %v1579 = vpop.f32.mrf.mxu0
  %v1580 = vadd.f32 0.0, %v1579
  %v1581 = vpop.f32.mrf.mxu0
  %v1582 = vadd.f32 0.0, %v1581
  %1583 = vmatprep.mubr.bf16.mxu0 0
  %1584 = vmatmul.mubr.bf16.gmra.mxu0 %v1468
  %v1585 = vpop.f32.mrf.mxu0
  %v1586 = vadd.f32 0.0, %v1585
  %v1587 = vpop.f32.mrf.mxu0
  %v1588 = vadd.f32 0.0, %v1587
  %v1589 = vpop.f32.mrf.mxu0
  %v1590 = vadd.f32 0.0, %v1589
  %v1591 = vpop.f32.mrf.mxu0
  %v1592 = vadd.f32 0.0, %v1591
  %1593 = vmatprep.mubr.bf16.mxu0 0
  %1594 = vmatmul.mubr.bf16.gmra.mxu0 %v1471
  %v1595 = vpop.f32.mrf.mxu0
  %v1596 = vadd.f32 0.0, %v1595
  %v1597 = vpop.f32.mrf.mxu0
  %v1598 = vadd.f32 0.0, %v1597
  %v1599 = vpop.f32.mrf.mxu0
  %v1600 = vadd.f32 0.0, %v1599
  %v1601 = vpop.f32.mrf.mxu0
  %v1602 = vadd.f32 0.0, %v1601
  %1603 = vmatprep.mubr.bf16.mxu0 0
  %1604 = vmatmul.mubr.bf16.gmra.mxu0 %v1474
  %v1605 = vpop.f32.mrf.mxu0
  %v1606 = vadd.f32 0.0, %v1605
  %v1607 = vpop.f32.mrf.mxu0
  %v1608 = vadd.f32 0.0, %v1607
  %v1609 = vpop.f32.mrf.mxu0
  %v1610 = vadd.f32 0.0, %v1609
  %v1611 = vpop.f32.mrf.mxu0
  %v1612 = vadd.f32 0.0, %v1611
  %1613 = vmatprep.mubr.bf16.mxu0 0
  %1614 = vmatmul.mubr.bf16.gmra.mxu0 %v1477
  %v1615 = vpop.f32.mrf.mxu0
  %v1616 = vadd.f32 0.0, %v1615
  %v1617 = vpop.f32.mrf.mxu0
  %v1618 = vadd.f32 0.0, %v1617
  %v1619 = vpop.f32.mrf.mxu0
  %v1620 = vadd.f32 0.0, %v1619
  %v1621 = vpop.f32.mrf.mxu0
  %v1622 = vadd.f32 0.0, %v1621
  %1623 = vmatprep.mubr.bf16.mxu0 0
  %1624 = vmatmul.mubr.bf16.gmra.mxu0 %v1480
  %v1625 = vpop.f32.mrf.mxu0
  %v1626 = vadd.f32 0.0, %v1625
  %v1627 = vpop.f32.mrf.mxu0
  %v1628 = vadd.f32 0.0, %v1627
  %v1629 = vpop.f32.mrf.mxu0
  %v1630 = vadd.f32 0.0, %v1629
  %v1631 = vpop.f32.mrf.mxu0
  %v1632 = vadd.f32 0.0, %v1631
  %1633 = vmatprep.mubr.bf16.mxu0 0
  %1634 = vmatmul.mubr.bf16.gmra.mxu0 %v1483
  %v1635 = vpop.f32.mrf.mxu0
  %v1636 = vadd.f32 0.0, %v1635
  %v1637 = vpop.f32.mrf.mxu0
  %v1638 = vadd.f32 0.0, %v1637
  %v1639 = vpop.f32.mrf.mxu0
  %v1640 = vadd.f32 0.0, %v1639
  %v1641 = vpop.f32.mrf.mxu0
  %v1642 = vadd.f32 0.0, %v1641
  %1643 = vdwg.mxu0
  %v1644 = vadd.f32 %v1293, %v1526
  %v1645 = vadd.f32 %v1294, %v1528
  %v1646 = vadd.f32 %v1295, %v1530
  %v1647 = vadd.f32 %v1296, %v1532
  %v1648 = vadd.f32 %v1297, %v1536
  %v1649 = vadd.f32 %v1298, %v1538
  %v1650 = vadd.f32 %v1299, %v1540
  %v1651 = vadd.f32 %v1300, %v1542
  %v1652 = vadd.f32 %v1301, %v1546
  %v1653 = vadd.f32 %v1302, %v1548
  %v1654 = vadd.f32 %v1303, %v1550
  %v1655 = vadd.f32 %v1304, %v1552
  %v1656 = vadd.f32 %v1305, %v1556
  %v1657 = vadd.f32 %v1306, %v1558
  %v1658 = vadd.f32 %v1307, %v1560
  %v1659 = vadd.f32 %v1308, %v1562
  %v1660 = vadd.f32 %v1309, %v1566
  %v1661 = vadd.f32 %v1310, %v1568
  %v1662 = vadd.f32 %v1311, %v1570
  %v1663 = vadd.f32 %v1312, %v1572
  %v1664 = vadd.f32 %v1313, %v1576
  %v1665 = vadd.f32 %v1314, %v1578
  %v1666 = vadd.f32 %v1315, %v1580
  %v1667 = vadd.f32 %v1316, %v1582
  %v1668 = vadd.f32 %v1317, %v1586
  %v1669 = vadd.f32 %v1318, %v1588
  %v1670 = vadd.f32 %v1319, %v1590
  %v1671 = vadd.f32 %v1320, %v1592
  %v1672 = vadd.f32 %v1321, %v1596
  %v1673 = vadd.f32 %v1322, %v1598
  %v1674 = vadd.f32 %v1323, %v1600
  %v1675 = vadd.f32 %v1324, %v1602
  %v1676 = vadd.f32 %v1325, %v1606
  %v1677 = vadd.f32 %v1326, %v1608
  %v1678 = vadd.f32 %v1327, %v1610
  %v1679 = vadd.f32 %v1328, %v1612
  %v1680 = vadd.f32 %v1329, %v1616
  %v1681 = vadd.f32 %v1330, %v1618
  %v1682 = vadd.f32 %v1331, %v1620
  %v1683 = vadd.f32 %v1332, %v1622
  %v1684 = vadd.f32 %v1333, %v1626
  %v1685 = vadd.f32 %v1334, %v1628
  %v1686 = vadd.f32 %v1335, %v1630
  %v1687 = vadd.f32 %v1336, %v1632
  %v1688 = vadd.f32 %v1337, %v1636
  %v1689 = vadd.f32 %v1338, %v1638
  %v1690 = vadd.f32 %v1339, %v1640
  %v1691 = vadd.f32 %v1340, %v1642
  %v1692 = vld [vmem:[%s2] sm:$0x3]
  %v1694 = vlaneseq
  %v1695 = vshrl.u32 %v1694, 7
  %v1696 = vsub.s32 0, %v1695
  %v1697 = vrot.slane %v1692, %v1696
  %v1698 = vlaneseq
  %v1699 = vshrl.u32 %v1698, 7
  %v1700 = vsub.s32 1, %v1699
  %v1701 = vrot.slane %v1692, %v1700
  %v1704 = vadd.f32 %v1644, %v1697
  %v1705 = vadd.f32 %v1645, %v1701
  %v1706 = vadd.f32 %v1646, %v1697
  %v1707 = vadd.f32 %v1647, %v1701
  %v1708 = vadd.f32 %v1648, %v1697
  %v1709 = vadd.f32 %v1649, %v1701
  %v1710 = vadd.f32 %v1650, %v1697
  %v1711 = vadd.f32 %v1651, %v1701
  %v1712 = vadd.f32 %v1652, %v1697
  %v1713 = vadd.f32 %v1653, %v1701
  %v1714 = vadd.f32 %v1654, %v1697
  %v1715 = vadd.f32 %v1655, %v1701
  %v1716 = vadd.f32 %v1656, %v1697
  %v1717 = vadd.f32 %v1657, %v1701
  %v1718 = vadd.f32 %v1658, %v1697
  %v1719 = vadd.f32 %v1659, %v1701
  %v1720 = vadd.f32 %v1660, %v1697
  %v1721 = vadd.f32 %v1661, %v1701
  %v1722 = vadd.f32 %v1662, %v1697
  %v1723 = vadd.f32 %v1663, %v1701
  %v1724 = vadd.f32 %v1664, %v1697
  %v1725 = vadd.f32 %v1665, %v1701
  %v1726 = vadd.f32 %v1666, %v1697
  %v1727 = vadd.f32 %v1667, %v1701
  %v1728 = vadd.f32 %v1668, %v1697
  %v1729 = vadd.f32 %v1669, %v1701
  %v1730 = vadd.f32 %v1670, %v1697
  %v1731 = vadd.f32 %v1671, %v1701
  %v1732 = vadd.f32 %v1672, %v1697
  %v1733 = vadd.f32 %v1673, %v1701
  %v1734 = vadd.f32 %v1674, %v1697
  %v1735 = vadd.f32 %v1675, %v1701
  %v1736 = vadd.f32 %v1676, %v1697
  %v1737 = vadd.f32 %v1677, %v1701
  %v1738 = vadd.f32 %v1678, %v1697
  %v1739 = vadd.f32 %v1679, %v1701
  %v1740 = vadd.f32 %v1680, %v1697
  %v1741 = vadd.f32 %v1681, %v1701
  %v1742 = vadd.f32 %v1682, %v1697
  %v1743 = vadd.f32 %v1683, %v1701
  %v1744 = vadd.f32 %v1684, %v1697
  %v1745 = vadd.f32 %v1685, %v1701
  %v1746 = vadd.f32 %v1686, %v1697
  %v1747 = vadd.f32 %v1687, %v1701
  %v1748 = vadd.f32 %v1688, %v1697
  %v1749 = vadd.f32 %v1689, %v1701
  %v1750 = vadd.f32 %v1690, %v1697
  %v1751 = vadd.f32 %v1691, %v1701
  %1800 = vrot.lane.b32.xlu0 %v1704, 8
  %v1801 = vpop.permute.xlu0 %1800
  %1802 = vrot.lane.b32.xlu0 %v1705, 8
  %v1803 = vpop.permute.xlu0 %1802
  %1804 = vrot.lane.b32.xlu0 %v1706, 8
  %v1805 = vpop.permute.xlu0 %1804
  %1806 = vrot.lane.b32.xlu0 %v1707, 8
  %v1807 = vpop.permute.xlu0 %1806
  %1808 = vrot.lane.b32.xlu0 %v1708, 8
  %v1809 = vpop.permute.xlu0 %1808
  %1810 = vrot.lane.b32.xlu0 %v1709, 8
  %v1811 = vpop.permute.xlu0 %1810
  %1812 = vrot.lane.b32.xlu0 %v1710, 8
  %v1813 = vpop.permute.xlu0 %1812
  %1814 = vrot.lane.b32.xlu0 %v1711, 8
  %v1815 = vpop.permute.xlu0 %1814
  %1816 = vrot.lane.b32.xlu0 %v1712, 8
  %v1817 = vpop.permute.xlu0 %1816
  %1818 = vrot.lane.b32.xlu0 %v1713, 8
  %v1819 = vpop.permute.xlu0 %1818
  %1820 = vrot.lane.b32.xlu0 %v1714, 8
  %v1821 = vpop.permute.xlu0 %1820
  %1822 = vrot.lane.b32.xlu0 %v1715, 8
  %v1823 = vpop.permute.xlu0 %1822
  %1824 = vrot.lane.b32.xlu0 %v1716, 8
  %v1825 = vpop.permute.xlu0 %1824
  %1826 = vrot.lane.b32.xlu0 %v1717, 8
  %v1827 = vpop.permute.xlu0 %1826
  %1828 = vrot.lane.b32.xlu0 %v1718, 8
  %v1829 = vpop.permute.xlu0 %1828
  %1830 = vrot.lane.b32.xlu0 %v1719, 8
  %v1831 = vpop.permute.xlu0 %1830
  %1832 = vrot.lane.b32.xlu0 %v1720, 8
  %v1833 = vpop.permute.xlu0 %1832
  %1834 = vrot.lane.b32.xlu0 %v1721, 8
  %v1835 = vpop.permute.xlu0 %1834
  %1836 = vrot.lane.b32.xlu0 %v1722, 8
  %v1837 = vpop.permute.xlu0 %1836
  %1838 = vrot.lane.b32.xlu0 %v1723, 8
  %v1839 = vpop.permute.xlu0 %1838
  %1840 = vrot.lane.b32.xlu0 %v1724, 8
  %v1841 = vpop.permute.xlu0 %1840
  %1842 = vrot.lane.b32.xlu0 %v1725, 8
  %v1843 = vpop.permute.xlu0 %1842
  %1844 = vrot.lane.b32.xlu0 %v1726, 8
  %v1845 = vpop.permute.xlu0 %1844
  %1846 = vrot.lane.b32.xlu0 %v1727, 8
  %v1847 = vpop.permute.xlu0 %1846
  %1848 = vrot.lane.b32.xlu0 %v1728, 8
  %v1849 = vpop.permute.xlu0 %1848
  %1850 = vrot.lane.b32.xlu0 %v1729, 8
  %v1851 = vpop.permute.xlu0 %1850
  %1852 = vrot.lane.b32.xlu0 %v1730, 8
  %v1853 = vpop.permute.xlu0 %1852
  %1854 = vrot.lane.b32.xlu0 %v1731, 8
  %v1855 = vpop.permute.xlu0 %1854
  %1856 = vrot.lane.b32.xlu0 %v1732, 8
  %v1857 = vpop.permute.xlu0 %1856
  %1858 = vrot.lane.b32.xlu0 %v1733, 8
  %v1859 = vpop.permute.xlu0 %1858
  %1860 = vrot.lane.b32.xlu0 %v1734, 8
  %v1861 = vpop.permute.xlu0 %1860
  %1862 = vrot.lane.b32.xlu0 %v1735, 8
  %v1863 = vpop.permute.xlu0 %1862
  %1864 = vrot.lane.b32.xlu0 %v1736, 8
  %v1865 = vpop.permute.xlu0 %1864
  %1866 = vrot.lane.b32.xlu0 %v1737, 8
  %v1867 = vpop.permute.xlu0 %1866
  %1868 = vrot.lane.b32.xlu0 %v1738, 8
  %v1869 = vpop.permute.xlu0 %1868
  %1870 = vrot.lane.b32.xlu0 %v1739, 8
  %v1871 = vpop.permute.xlu0 %1870
  %1872 = vrot.lane.b32.xlu0 %v1740, 8
  %v1873 = vpop.permute.xlu0 %1872
  %1874 = vrot.lane.b32.xlu0 %v1741, 8
  %v1875 = vpop.permute.xlu0 %1874
  %1876 = vrot.lane.b32.xlu0 %v1742, 8
  %v1877 = vpop.permute.xlu0 %1876
  %1878 = vrot.lane.b32.xlu0 %v1743, 8
  %v1879 = vpop.permute.xlu0 %1878
  %1880 = vrot.lane.b32.xlu0 %v1744, 8
  %v1881 = vpop.permute.xlu0 %1880
  %1882 = vrot.lane.b32.xlu0 %v1745, 8
  %v1883 = vpop.permute.xlu0 %1882
  %1884 = vrot.lane.b32.xlu0 %v1746, 8
  %v1885 = vpop.permute.xlu0 %1884
  %1886 = vrot.lane.b32.xlu0 %v1747, 8
  %v1887 = vpop.permute.xlu0 %1886
  %1888 = vrot.lane.b32.xlu0 %v1748, 8
  %v1889 = vpop.permute.xlu0 %1888
  %1890 = vrot.lane.b32.xlu0 %v1749, 8
  %v1891 = vpop.permute.xlu0 %1890
  %1892 = vrot.lane.b32.xlu0 %v1750, 8
  %v1893 = vpop.permute.xlu0 %1892
  %1894 = vrot.lane.b32.xlu0 %v1751, 8
  %v1895 = vpop.permute.xlu0 %1894
  %vm1896 = vcmask 64512
  %v1897 = vsel %vm1896, %v1801, %v1803
  %v1898 = vsel %vm1896, %v1805, %v1807
  %v1899 = vsel %vm1896, %v1809, %v1811
  %v1900 = vsel %vm1896, %v1813, %v1815
  %v1901 = vsel %vm1896, %v1817, %v1819
  %v1902 = vsel %vm1896, %v1821, %v1823
  %v1903 = vsel %vm1896, %v1825, %v1827
  %v1904 = vsel %vm1896, %v1829, %v1831
  %v1905 = vsel %vm1896, %v1833, %v1835
  %v1906 = vsel %vm1896, %v1837, %v1839
  %v1907 = vsel %vm1896, %v1841, %v1843
  %v1908 = vsel %vm1896, %v1845, %v1847
  %v1909 = vsel %vm1896, %v1849, %v1851
  %v1910 = vsel %vm1896, %v1853, %v1855
  %v1911 = vsel %vm1896, %v1857, %v1859
  %v1912 = vsel %vm1896, %v1861, %v1863
  %v1913 = vsel %vm1896, %v1865, %v1867
  %v1914 = vsel %vm1896, %v1869, %v1871
  %v1915 = vsel %vm1896, %v1873, %v1875
  %v1916 = vsel %vm1896, %v1877, %v1879
  %v1917 = vsel %vm1896, %v1881, %v1883
  %v1918 = vsel %vm1896, %v1885, %v1887
  %v1919 = vsel %vm1896, %v1889, %v1891
  %v1920 = vsel %vm1896, %v1893, %v1895
  %v1945 = vmax.f32 %v1704, %v1897
  %v1946 = vmax.f32 %v1706, %v1898
  %v1947 = vmax.f32 %v1708, %v1899
  %v1948 = vmax.f32 %v1710, %v1900
  %v1949 = vmax.f32 %v1712, %v1901
  %v1950 = vmax.f32 %v1714, %v1902
  %v1951 = vmax.f32 %v1716, %v1903
  %v1952 = vmax.f32 %v1718, %v1904
  %v1953 = vmax.f32 %v1720, %v1905
  %v1954 = vmax.f32 %v1722, %v1906
  %v1955 = vmax.f32 %v1724, %v1907
  %v1956 = vmax.f32 %v1726, %v1908
  %v1957 = vmax.f32 %v1728, %v1909
  %v1958 = vmax.f32 %v1730, %v1910
  %v1959 = vmax.f32 %v1732, %v1911
  %v1960 = vmax.f32 %v1734, %v1912
  %v1961 = vmax.f32 %v1736, %v1913
  %v1962 = vmax.f32 %v1738, %v1914
  %v1963 = vmax.f32 %v1740, %v1915
  %v1964 = vmax.f32 %v1742, %v1916
  %v1965 = vmax.f32 %v1744, %v1917
  %v1966 = vmax.f32 %v1746, %v1918
  %v1967 = vmax.f32 %v1748, %v1919
  %v1968 = vmax.f32 %v1750, %v1920
  %v1969 = vmax.f32 %v1945, %v1946
  %v1970 = vmax.f32 %v1947, %v1948
  %v1971 = vmax.f32 %v1949, %v1950
  %v1972 = vmax.f32 %v1951, %v1952
  %v1973 = vmax.f32 %v1953, %v1954
  %v1974 = vmax.f32 %v1955, %v1956
  %v1975 = vmax.f32 %v1957, %v1958
  %v1976 = vmax.f32 %v1959, %v1960
  %v1977 = vmax.f32 %v1961, %v1962
  %v1978 = vmax.f32 %v1963, %v1964
  %v1979 = vmax.f32 %v1965, %v1966
  %v1980 = vmax.f32 %v1967, %v1968
  %v1981 = vmax.f32 %v1969, 0.0
  %v1982 = vmax.f32 %v1970, 0.0
  %v1983 = vmax.f32 %v1971, 0.0
  %v1984 = vmax.f32 %v1972, 0.0
  %v1985 = vmax.f32 %v1973, 0.0
  %v1986 = vmax.f32 %v1974, 0.0
  %v1987 = vmax.f32 %v1975, 0.0
  %v1988 = vmax.f32 %v1976, 0.0
  %v1989 = vmax.f32 %v1977, 0.0
  %v1990 = vmax.f32 %v1978, 0.0
  %v1991 = vmax.f32 %v1979, 0.0
  %v1992 = vmax.f32 %v1980, 0.0
  %v1993 = vpack.c.bf16 %v1982, %v1981
  %v1994 = vpack.c.bf16 %v1984, %v1983
  %v1995 = vpack.c.bf16 %v1986, %v1985
  %v1996 = vpack.c.bf16 %v1988, %v1987
  %v1997 = vpack.c.bf16 %v1990, %v1989
  %v1998 = vpack.c.bf16 %v1992, %v1991
  %v1999 = vld [vmem:[%s3] sm:$0xff]
  %v2000 = vld [vmem:[%s3 + $0x8] sm:$0xff]
  %v2001 = vld [vmem:[%s3 + $0x10] sm:$0xff]
  %v2002 = vld [vmem:[%s3 + $0x18] sm:$0xff]
  %v2003 = vld [vmem:[%s3 + $0x20] sm:$0xff]
  %v2004 = vld [vmem:[%s3 + $0x28] sm:$0xff]
  %v2005 = vld [vmem:[%s3 + $0x30] sm:$0xff]
  %v2006 = vld [vmem:[%s3 + $0x38] sm:$0xff]
  %v2007 = vld [vmem:[%s3 + $0x40] sm:$0xff]
  %v2008 = vld [vmem:[%s3 + $0x48] sm:$0xff]
  %v2009 = vld [vmem:[%s3 + $0x50] sm:$0xff]
  %v2010 = vld [vmem:[%s3 + $0x58] sm:$0xff]
  %v2011 = vld [vmem:[%s3 + $0x60] sm:$0xff]
  %v2012 = vld [vmem:[%s3 + $0x68] sm:$0xff]
  %v2013 = vld [vmem:[%s3 + $0x70] sm:$0xff]
  %s2014 = scalar_lea.vmem %s3, 120
  %v2015 = vld [vmem:[%s2014] sm:$0xff]
  %v2016 = vld [vmem:[%s2014 + $0x8] sm:$0xff]
  %v2017 = vld [vmem:[%s2014 + $0x10] sm:$0xff]
  %v2018 = vld [vmem:[%s2014 + $0x18] sm:$0xff]
  %v2019 = vld [vmem:[%s2014 + $0x20] sm:$0xff]
  %v2020 = vld [vmem:[%s2014 + $0x28] sm:$0xff]
  %v2021 = vld [vmem:[%s2014 + $0x30] sm:$0xff]
  %v2022 = vld [vmem:[%s2014 + $0x38] sm:$0xff]
  %v2023 = vld [vmem:[%s2014 + $0x40] sm:$0xff]
  %v2024 = vld [vmem:[%s2014 + $0x48] sm:$0xff]
  %v2025 = vld [vmem:[%s2014 + $0x50] sm:$0xff]
  %v2026 = vld [vmem:[%s2014 + $0x58] sm:$0xff]
  %v2027 = vld [vmem:[%s2014 + $0x60] sm:$0xff]
  %v2028 = vld [vmem:[%s2014 + $0x68] sm:$0xff]
  %v2029 = vld [vmem:[%s2014 + $0x70] sm:$0xff]
  %vm2035 = vcmask 1043456
  %v2036 = vrot.slane %v1993, 4
  %v2037 = vrot.slane %v1994, 4
  %v2038 = vsel %vm2035, %v2036, %v2037
  %v2039 = vrot.slane %v1995, 4
  %v2040 = vsel %vm2035, %v2037, %v2039
  %v2041 = vrot.slane %v1996, 4
  %v2042 = vsel %vm2035, %v2039, %v2041
  %v2043 = vrot.slane %v1997, 4
  %v2044 = vsel %vm2035, %v2041, %v2043
  %v2060 = vunpack.c.l.b16 %v2015
  %v2061 = vunpack.c.h.b16 %v2015
  %v2062 = vunpack.c.l.b16 %v2016
  %v2063 = vunpack.c.h.b16 %v2016
  %v2064 = vunpack.c.l.b16 %v2017
  %v2065 = vunpack.c.h.b16 %v2017
  %v2066 = vunpack.c.l.b16 %v2018
  %v2067 = vunpack.c.h.b16 %v2018
  %v2068 = vunpack.c.l.b16 %v2019
  %v2069 = vunpack.c.h.b16 %v2019
  %v2070 = vunpack.c.l.b16 %v2020
  %v2071 = vunpack.c.h.b16 %v2020
  %v2072 = vunpack.c.l.b16 %v2021
  %v2073 = vunpack.c.h.b16 %v2021
  %v2074 = vunpack.c.l.b16 %v2022
  %v2075 = vunpack.c.h.b16 %v2022
  %v2076 = vunpack.c.l.b16 %v2023
  %v2077 = vunpack.c.h.b16 %v2023
  %v2078 = vunpack.c.l.b16 %v2024
  %v2079 = vunpack.c.h.b16 %v2024
  %v2080 = vunpack.c.l.b16 %v2025
  %v2081 = vunpack.c.h.b16 %v2025
  %v2082 = vunpack.c.l.b16 %v2026
  %v2083 = vunpack.c.h.b16 %v2026
  %v2084 = vunpack.c.l.b16 %v2027
  %v2085 = vunpack.c.h.b16 %v2027
  %v2086 = vunpack.c.l.b16 %v2028
  %v2087 = vunpack.c.h.b16 %v2028
  %v2088 = vunpack.c.l.b16 %v2029
  %v2089 = vunpack.c.h.b16 %v2029
  %v2090 = vpack.c.b16 %v2062, %v2060
  %v2091 = vpack.c.b16 %v2063, %v2061
  %v2092 = vpack.c.b16 %v2066, %v2064
  %v2093 = vpack.c.b16 %v2067, %v2065
  %v2094 = vpack.c.b16 %v2070, %v2068
  %v2095 = vpack.c.b16 %v2071, %v2069
  %v2096 = vpack.c.b16 %v2074, %v2072
  %v2097 = vpack.c.b16 %v2075, %v2073
  %v2098 = vpack.c.b16 %v2078, %v2076
  %v2099 = vpack.c.b16 %v2079, %v2077
  %v2100 = vpack.c.b16 %v2082, %v2080
  %v2101 = vpack.c.b16 %v2083, %v2081
  %v2102 = vpack.c.b16 %v2086, %v2084
  %v2103 = vpack.c.b16 %v2087, %v2085
  %v2104 = vpack.c.b16 %v2088, %v2088
  %v2105 = vpack.c.b16 %v2089, %v2089
  %vm2120 = vcmask 982016
  %v2122 = vsel %vm2120, %v2038, 0
  %v2125 = vsel %vm2120, %v2040, 0
  %v2128 = vsel %vm2120, %v2042, 0
  %v2131 = vsel %vm2120, %v2044, 0
  %vm2133 = vcmask 1043456
  %v2135 = vsel %vm2133, %v2104, 0
  %v2138 = vsel %vm2133, %v2105, 0
  %2140 = vmatprep.subr.bf16.mxu0 %v2138
  %2141 = vmatpush1.bf16.msra.mxu0 %v2135
  %2142 = vmatprep.subr.bf16.mxu0 %v2103
  %2143 = vmatpush1.bf16.msra.mxu0 %v2102
  %2144 = vmatprep.subr.bf16.mxu0 %v2101
  %2145 = vmatpush1.bf16.msra.mxu0 %v2100
  %2146 = vmatprep.subr.bf16.mxu0 %v2099
  %2147 = vmatpush1.bf16.msra.mxu0 %v2098
  %2148 = vmatprep.subr.bf16.mxu0 %v2097
  %2149 = vmatpush1.bf16.msra.mxu0 %v2096
  %2150 = vmatprep.subr.bf16.mxu0 %v2095
  %2151 = vmatpush1.bf16.msra.mxu0 %v2094
  %2152 = vmatprep.subr.bf16.mxu0 %v2093
  %2153 = vmatpush1.bf16.msra.mxu0 %v2092
  %2154 = vmatprep.subr.bf16.mxu0 %v2091
  %2155 = vmatpush1.bf16.msra.mxu0 %v2090
  %2156 = vmatprep.subr.bf16.mxu0 0
  %2157 = vmatpush2.bf16.msra.mxu0 0
  %2158 = vmatprep.subr.bf16.mxu0 0
  %2159 = vmatpush2.bf16.msra.mxu0 0
  %2160 = vmatprep.subr.bf16.mxu0 0
  %2161 = vmatpush2.bf16.msra.mxu0 0
  %2162 = vmatprep.subr.bf16.mxu0 0
  %2163 = vmatpush2.bf16.msra.mxu0 0
  %2164 = vmatprep.subr.bf16.mxu0 0
  %2165 = vmatpush2.bf16.msra.mxu0 0
  %2166 = vmatprep.subr.bf16.mxu0 0
  %2167 = vmatpush2.bf16.msra.mxu0 0
  %2168 = vmatprep.subr.bf16.mxu0 0
  %2169 = vmatpush2.bf16.msra.mxu0 0
  %2170 = vmatprep.subr.bf16.mxu0 0
  %2171 = vmatpush2.bf16.msra.mxu0 0
  %2172 = vmatprep.mubr.bf16.mxu0 0
  %2173 = vmatmul.mubr.bf16.gmra.mxu0 %v2122
  %v2174 = vpop.f32.mrf.mxu0
  %v2175 = vadd.f32 0.0, %v2174
  %v2176 = vpop.f32.mrf.mxu0
  %v2177 = vadd.f32 0.0, %v2176
  %v2178 = vpop.f32.mrf.mxu0
  %v2179 = vadd.f32 0.0, %v2178
  %v2180 = vpop.f32.mrf.mxu0
  %v2181 = vadd.f32 0.0, %v2180
  %2182 = vmatprep.mubr.bf16.mxu0 0
  %2183 = vmatmul.mubr.bf16.gmra.mxu0 %v2125
  %v2184 = vpop.f32.mrf.mxu0
  %v2185 = vadd.f32 0.0, %v2184
  %v2186 = vpop.f32.mrf.mxu0
  %v2187 = vadd.f32 0.0, %v2186
  %v2188 = vpop.f32.mrf.mxu0
  %v2189 = vadd.f32 0.0, %v2188
  %v2190 = vpop.f32.mrf.mxu0
  %v2191 = vadd.f32 0.0, %v2190
  %2192 = vmatprep.mubr.bf16.mxu0 0
  %2193 = vmatmul.mubr.bf16.gmra.mxu0 %v2128
  %v2194 = vpop.f32.mrf.mxu0
  %v2195 = vadd.f32 0.0, %v2194
  %v2196 = vpop.f32.mrf.mxu0
  %v2197 = vadd.f32 0.0, %v2196
  %v2198 = vpop.f32.mrf.mxu0
  %v2199 = vadd.f32 0.0, %v2198
  %v2200 = vpop.f32.mrf.mxu0
  %v2201 = vadd.f32 0.0, %v2200
  %2202 = vmatprep.mubr.bf16.mxu0 0
  %2203 = vmatmul.mubr.bf16.gmra.mxu0 %v2131
  %v2204 = vpop.f32.mrf.mxu0
  %v2205 = vadd.f32 0.0, %v2204
  %v2206 = vpop.f32.mrf.mxu0
  %v2207 = vadd.f32 0.0, %v2206
  %v2208 = vpop.f32.mrf.mxu0
  %v2209 = vadd.f32 0.0, %v2208
  %v2210 = vpop.f32.mrf.mxu0
  %v2211 = vadd.f32 0.0, %v2210
  %2212 = vdwg.mxu0
  %v2228 = vunpack.c.l.b16 %v1999
  %v2229 = vunpack.c.h.b16 %v1999
  %v2230 = vunpack.c.l.b16 %v2000
  %v2231 = vunpack.c.h.b16 %v2000
  %v2232 = vunpack.c.l.b16 %v2001
  %v2233 = vunpack.c.h.b16 %v2001
  %v2234 = vunpack.c.l.b16 %v2002
  %v2235 = vunpack.c.h.b16 %v2002
  %v2236 = vunpack.c.l.b16 %v2003
  %v2237 = vunpack.c.h.b16 %v2003
  %v2238 = vunpack.c.l.b16 %v2004
  %v2239 = vunpack.c.h.b16 %v2004
  %v2240 = vunpack.c.l.b16 %v2005
  %v2241 = vunpack.c.h.b16 %v2005
  %v2242 = vunpack.c.l.b16 %v2006
  %v2243 = vunpack.c.h.b16 %v2006
  %v2244 = vunpack.c.l.b16 %v2007
  %v2245 = vunpack.c.h.b16 %v2007
  %v2246 = vunpack.c.l.b16 %v2008
  %v2247 = vunpack.c.h.b16 %v2008
  %v2248 = vunpack.c.l.b16 %v2009
  %v2249 = vunpack.c.h.b16 %v2009
  %v2250 = vunpack.c.l.b16 %v2010
  %v2251 = vunpack.c.h.b16 %v2010
  %v2252 = vunpack.c.l.b16 %v2011
  %v2253 = vunpack.c.h.b16 %v2011
  %v2254 = vunpack.c.l.b16 %v2012
  %v2255 = vunpack.c.h.b16 %v2012
  %v2256 = vunpack.c.l.b16 %v2013
  %v2257 = vunpack.c.h.b16 %v2013
  %v2258 = vpack.c.b16 %v2230, %v2228
  %v2259 = vpack.c.b16 %v2231, %v2229
  %v2260 = vpack.c.b16 %v2234, %v2232
  %v2261 = vpack.c.b16 %v2235, %v2233
  %v2262 = vpack.c.b16 %v2238, %v2236
  %v2263 = vpack.c.b16 %v2239, %v2237
  %v2264 = vpack.c.b16 %v2242, %v2240
  %v2265 = vpack.c.b16 %v2243, %v2241
  %v2266 = vpack.c.b16 %v2246, %v2244
  %v2267 = vpack.c.b16 %v2247, %v2245
  %v2268 = vpack.c.b16 %v2250, %v2248
  %v2269 = vpack.c.b16 %v2251, %v2249
  %v2270 = vpack.c.b16 %v2254, %v2252
  %v2271 = vpack.c.b16 %v2255, %v2253
  %v2272 = vpack.c.b16 %v2256, %v2256
  %v2273 = vpack.c.b16 %v2257, %v2257
  %v2289 = vsel %vm2120, %v1993, 0
  %v2292 = vsel %vm2120, %v1994, 0
  %v2295 = vsel %vm2120, %v1995, 0
  %v2298 = vsel %vm2120, %v1996, 0
  %v2301 = vsel %vm2133, %v2272, 0
  %v2304 = vsel %vm2133, %v2273, 0
  %2306 = vmatprep.subr.bf16.mxu0 %v2304
  %2307 = vmatpush1.bf16.msra.mxu0 %v2301
  %2308 = vmatprep.subr.bf16.mxu0 %v2271
  %2309 = vmatpush1.bf16.msra.mxu0 %v2270
  %2310 = vmatprep.subr.bf16.mxu0 %v2269
  %2311 = vmatpush1.bf16.msra.mxu0 %v2268
  %2312 = vmatprep.subr.bf16.mxu0 %v2267
  %2313 = vmatpush1.bf16.msra.mxu0 %v2266
  %2314 = vmatprep.subr.bf16.mxu0 %v2265
  %2315 = vmatpush1.bf16.msra.mxu0 %v2264
  %2316 = vmatprep.subr.bf16.mxu0 %v2263
  %2317 = vmatpush1.bf16.msra.mxu0 %v2262
  %2318 = vmatprep.subr.bf16.mxu0 %v2261
  %2319 = vmatpush1.bf16.msra.mxu0 %v2260
  %2320 = vmatprep.subr.bf16.mxu0 %v2259
  %2321 = vmatpush1.bf16.msra.mxu0 %v2258
  %2322 = vmatprep.subr.bf16.mxu0 0
  %2323 = vmatpush2.bf16.msra.mxu0 0
  %2324 = vmatprep.subr.bf16.mxu0 0
  %2325 = vmatpush2.bf16.msra.mxu0 0
  %2326 = vmatprep.subr.bf16.mxu0 0
  %2327 = vmatpush2.bf16.msra.mxu0 0
  %2328 = vmatprep.subr.bf16.mxu0 0
  %2329 = vmatpush2.bf16.msra.mxu0 0
  %2330 = vmatprep.subr.bf16.mxu0 0
  %2331 = vmatpush2.bf16.msra.mxu0 0
  %2332 = vmatprep.subr.bf16.mxu0 0
  %2333 = vmatpush2.bf16.msra.mxu0 0
  %2334 = vmatprep.subr.bf16.mxu0 0
  %2335 = vmatpush2.bf16.msra.mxu0 0
  %2336 = vmatprep.subr.bf16.mxu0 0
  %2337 = vmatpush2.bf16.msra.mxu0 0
  %2338 = vmatprep.mubr.bf16.mxu0 0
  %2339 = vmatmul.mubr.bf16.gmra.mxu0 %v2289
  %v2340 = vpop.f32.mrf.mxu0
  %v2341 = vadd.f32 %v2175, %v2340
  %v2342 = vpop.f32.mrf.mxu0
  %v2343 = vadd.f32 %v2177, %v2342
  %v2344 = vpop.f32.mrf.mxu0
  %v2345 = vadd.f32 %v2179, %v2344
  %v2346 = vpop.f32.mrf.mxu0
  %v2347 = vadd.f32 %v2181, %v2346
  %2348 = vmatprep.mubr.bf16.mxu0 0
  %2349 = vmatmul.mubr.bf16.gmra.mxu0 %v2292
  %v2350 = vpop.f32.mrf.mxu0
  %v2351 = vadd.f32 %v2185, %v2350
  %v2352 = vpop.f32.mrf.mxu0
  %v2353 = vadd.f32 %v2187, %v2352
  %v2354 = vpop.f32.mrf.mxu0
  %v2355 = vadd.f32 %v2189, %v2354
  %v2356 = vpop.f32.mrf.mxu0
  %v2357 = vadd.f32 %v2191, %v2356
  %2358 = vmatprep.mubr.bf16.mxu0 0
  %2359 = vmatmul.mubr.bf16.gmra.mxu0 %v2295
  %v2360 = vpop.f32.mrf.mxu0
  %v2361 = vadd.f32 %v2195, %v2360
  %v2362 = vpop.f32.mrf.mxu0
  %v2363 = vadd.f32 %v2197, %v2362
  %v2364 = vpop.f32.mrf.mxu0
  %v2365 = vadd.f32 %v2199, %v2364
  %v2366 = vpop.f32.mrf.mxu0
  %v2367 = vadd.f32 %v2201, %v2366
  %2368 = vmatprep.mubr.bf16.mxu0 0
  %2369 = vmatmul.mubr.bf16.gmra.mxu0 %v2298
  %v2370 = vpop.f32.mrf.mxu0
  %v2371 = vadd.f32 %v2205, %v2370
  %v2372 = vpop.f32.mrf.mxu0
  %v2373 = vadd.f32 %v2207, %v2372
  %v2374 = vpop.f32.mrf.mxu0
  %v2375 = vadd.f32 %v2209, %v2374
  %v2376 = vpop.f32.mrf.mxu0
  %v2377 = vadd.f32 %v2211, %v2376
  %2378 = vdwg.mxu0
  %s2379 = scalar_lea.vmem %s3, 240
  %v2380 = vld [vmem:[%s2379] sm:$0xff]
  %v2381 = vld [vmem:[%s2379 + $0x8] sm:$0xff]
  %v2382 = vld [vmem:[%s2379 + $0x10] sm:$0xff]
  %v2383 = vld [vmem:[%s2379 + $0x18] sm:$0xff]
  %v2384 = vld [vmem:[%s2379 + $0x20] sm:$0xff]
  %v2385 = vld [vmem:[%s2379 + $0x28] sm:$0xff]
  %v2386 = vld [vmem:[%s2379 + $0x30] sm:$0xff]
  %v2387 = vld [vmem:[%s2379 + $0x38] sm:$0xff]
  %v2388 = vld [vmem:[%s2379 + $0x40] sm:$0xff]
  %v2389 = vld [vmem:[%s2379 + $0x48] sm:$0xff]
  %v2390 = vld [vmem:[%s2379 + $0x50] sm:$0xff]
  %v2391 = vld [vmem:[%s2379 + $0x58] sm:$0xff]
  %v2392 = vld [vmem:[%s2379 + $0x60] sm:$0xff]
  %v2393 = vld [vmem:[%s2379 + $0x68] sm:$0xff]
  %v2394 = vld [vmem:[%s2379 + $0x70] sm:$0xff]
  %v2410 = vunpack.c.l.b16 %v2380
  %v2411 = vunpack.c.h.b16 %v2380
  %v2412 = vunpack.c.l.b16 %v2381
  %v2413 = vunpack.c.h.b16 %v2381
  %v2414 = vunpack.c.l.b16 %v2382
  %v2415 = vunpack.c.h.b16 %v2382
  %v2416 = vunpack.c.l.b16 %v2383
  %v2417 = vunpack.c.h.b16 %v2383
  %v2418 = vunpack.c.l.b16 %v2384
  %v2419 = vunpack.c.h.b16 %v2384
  %v2420 = vunpack.c.l.b16 %v2385
  %v2421 = vunpack.c.h.b16 %v2385
  %v2422 = vunpack.c.l.b16 %v2386
  %v2423 = vunpack.c.h.b16 %v2386
  %v2424 = vunpack.c.l.b16 %v2387
  %v2425 = vunpack.c.h.b16 %v2387
  %v2426 = vunpack.c.l.b16 %v2388
  %v2427 = vunpack.c.h.b16 %v2388
  %v2428 = vunpack.c.l.b16 %v2389
  %v2429 = vunpack.c.h.b16 %v2389
  %v2430 = vunpack.c.l.b16 %v2390
  %v2431 = vunpack.c.h.b16 %v2390
  %v2432 = vunpack.c.l.b16 %v2391
  %v2433 = vunpack.c.h.b16 %v2391
  %v2434 = vunpack.c.l.b16 %v2392
  %v2435 = vunpack.c.h.b16 %v2392
  %v2436 = vunpack.c.l.b16 %v2393
  %v2437 = vunpack.c.h.b16 %v2393
  %v2438 = vunpack.c.l.b16 %v2394
  %v2439 = vunpack.c.h.b16 %v2394
  %v2440 = vpack.c.b16 %v2412, %v2410
  %v2441 = vpack.c.b16 %v2413, %v2411
  %v2442 = vpack.c.b16 %v2416, %v2414
  %v2443 = vpack.c.b16 %v2417, %v2415
  %v2444 = vpack.c.b16 %v2420, %v2418
  %v2445 = vpack.c.b16 %v2421, %v2419
  %v2446 = vpack.c.b16 %v2424, %v2422
  %v2447 = vpack.c.b16 %v2425, %v2423
  %v2448 = vpack.c.b16 %v2428, %v2426
  %v2449 = vpack.c.b16 %v2429, %v2427
  %v2450 = vpack.c.b16 %v2432, %v2430
  %v2451 = vpack.c.b16 %v2433, %v2431
  %v2452 = vpack.c.b16 %v2436, %v2434
  %v2453 = vpack.c.b16 %v2437, %v2435
  %v2454 = vpack.c.b16 %v2438, %v2438
  %v2455 = vpack.c.b16 %v2439, %v2439
  %v2471 = vsel %vm2120, %v1997, 0
  %v2474 = vsel %vm2133, %v2454, 0
  %v2477 = vsel %vm2133, %v2455, 0
  %2479 = vmatprep.subr.bf16.mxu0 %v2477
  %2480 = vmatpush1.bf16.msra.mxu0 %v2474
  %2481 = vmatprep.subr.bf16.mxu0 %v2453
  %2482 = vmatpush1.bf16.msra.mxu0 %v2452
  %2483 = vmatprep.subr.bf16.mxu0 %v2451
  %2484 = vmatpush1.bf16.msra.mxu0 %v2450
  %2485 = vmatprep.subr.bf16.mxu0 %v2449
  %2486 = vmatpush1.bf16.msra.mxu0 %v2448
  %2487 = vmatprep.subr.bf16.mxu0 %v2447
  %2488 = vmatpush1.bf16.msra.mxu0 %v2446
  %2489 = vmatprep.subr.bf16.mxu0 %v2445
  %2490 = vmatpush1.bf16.msra.mxu0 %v2444
  %2491 = vmatprep.subr.bf16.mxu0 %v2443
  %2492 = vmatpush1.bf16.msra.mxu0 %v2442
  %2493 = vmatprep.subr.bf16.mxu0 %v2441
  %2494 = vmatpush1.bf16.msra.mxu0 %v2440
  %2495 = vmatprep.subr.bf16.mxu0 0
  %2496 = vmatpush2.bf16.msra.mxu0 0
  %2497 = vmatprep.subr.bf16.mxu0 0
  %2498 = vmatpush2.bf16.msra.mxu0 0
  %2499 = vmatprep.subr.bf16.mxu0 0
  %2500 = vmatpush2.bf16.msra.mxu0 0
  %2501 = vmatprep.subr.bf16.mxu0 0
  %2502 = vmatpush2.bf16.msra.mxu0 0
  %2503 = vmatprep.subr.bf16.mxu0 0
  %2504 = vmatpush2.bf16.msra.mxu0 0
  %2505 = vmatprep.subr.bf16.mxu0 0
  %2506 = vmatpush2.bf16.msra.mxu0 0
  %2507 = vmatprep.subr.bf16.mxu0 0
  %2508 = vmatpush2.bf16.msra.mxu0 0
  %2509 = vmatprep.subr.bf16.mxu0 0
  %2510 = vmatpush2.bf16.msra.mxu0 0
  %2511 = vmatprep.mubr.bf16.mxu0 0
  %2512 = vmatmul.mubr.bf16.gmra.mxu0 %v2292
  %v2513 = vpop.f32.mrf.mxu0
  %v2514 = vadd.f32 0.0, %v2513
  %v2515 = vpop.f32.mrf.mxu0
  %v2516 = vadd.f32 0.0, %v2515
  %v2517 = vpop.f32.mrf.mxu0
  %v2518 = vadd.f32 0.0, %v2517
  %v2519 = vpop.f32.mrf.mxu0
  %v2520 = vadd.f32 0.0, %v2519
  %2521 = vmatprep.mubr.bf16.mxu0 0
  %2522 = vmatmul.mubr.bf16.gmra.mxu0 %v2295
  %v2523 = vpop.f32.mrf.mxu0
  %v2524 = vadd.f32 0.0, %v2523
  %v2525 = vpop.f32.mrf.mxu0
  %v2526 = vadd.f32 0.0, %v2525
  %v2527 = vpop.f32.mrf.mxu0
  %v2528 = vadd.f32 0.0, %v2527
  %v2529 = vpop.f32.mrf.mxu0
  %v2530 = vadd.f32 0.0, %v2529
  %2531 = vmatprep.mubr.bf16.mxu0 0
  %2532 = vmatmul.mubr.bf16.gmra.mxu0 %v2298
  %v2533 = vpop.f32.mrf.mxu0
  %v2534 = vadd.f32 0.0, %v2533
  %v2535 = vpop.f32.mrf.mxu0
  %v2536 = vadd.f32 0.0, %v2535
  %v2537 = vpop.f32.mrf.mxu0
  %v2538 = vadd.f32 0.0, %v2537
  %v2539 = vpop.f32.mrf.mxu0
  %v2540 = vadd.f32 0.0, %v2539
  %2541 = vmatprep.mubr.bf16.mxu0 0
  %2542 = vmatmul.mubr.bf16.gmra.mxu0 %v2471
  %v2543 = vpop.f32.mrf.mxu0
  %v2544 = vadd.f32 0.0, %v2543
  %v2545 = vpop.f32.mrf.mxu0
  %v2546 = vadd.f32 0.0, %v2545
  %v2547 = vpop.f32.mrf.mxu0
  %v2548 = vadd.f32 0.0, %v2547
  %v2549 = vpop.f32.mrf.mxu0
  %v2550 = vadd.f32 0.0, %v2549
  %2551 = vdwg.mxu0
  %v2552 = vadd.f32 %v2341, %v2514
  %v2553 = vadd.f32 %v2343, %v2516
  %v2554 = vadd.f32 %v2345, %v2518
  %v2555 = vadd.f32 %v2347, %v2520
  %v2556 = vadd.f32 %v2351, %v2524
  %v2557 = vadd.f32 %v2353, %v2526
  %v2558 = vadd.f32 %v2355, %v2528
  %v2559 = vadd.f32 %v2357, %v2530
  %v2560 = vadd.f32 %v2361, %v2534
  %v2561 = vadd.f32 %v2363, %v2536
  %v2562 = vadd.f32 %v2365, %v2538
  %v2563 = vadd.f32 %v2367, %v2540
  %v2564 = vadd.f32 %v2371, %v2544
  %v2565 = vadd.f32 %v2373, %v2546
  %v2566 = vadd.f32 %v2375, %v2548
  %v2567 = vadd.f32 %v2377, %v2550
  %s2568 = scalar_lea.vmem %s3, 360
  %v2569 = vld [vmem:[%s2568] sm:$0xff]
  %v2570 = vld [vmem:[%s2568 + $0x8] sm:$0xff]
  %v2571 = vld [vmem:[%s2568 + $0x10] sm:$0xff]
  %v2572 = vld [vmem:[%s2568 + $0x18] sm:$0xff]
  %v2573 = vld [vmem:[%s2568 + $0x20] sm:$0xff]
  %v2574 = vld [vmem:[%s2568 + $0x28] sm:$0xff]
  %v2575 = vld [vmem:[%s2568 + $0x30] sm:$0xff]
  %v2576 = vld [vmem:[%s2568 + $0x38] sm:$0xff]
  %v2577 = vld [vmem:[%s2568 + $0x40] sm:$0xff]
  %v2578 = vld [vmem:[%s2568 + $0x48] sm:$0xff]
  %v2579 = vld [vmem:[%s2568 + $0x50] sm:$0xff]
  %v2580 = vld [vmem:[%s2568 + $0x58] sm:$0xff]
  %v2581 = vld [vmem:[%s2568 + $0x60] sm:$0xff]
  %v2582 = vld [vmem:[%s2568 + $0x68] sm:$0xff]
  %v2583 = vld [vmem:[%s2568 + $0x70] sm:$0xff]
  %v2585 = vrot.slane %v1998, 4
  %v2586 = vsel %vm2035, %v2043, %v2585
  %v2602 = vunpack.c.l.b16 %v2569
  %v2603 = vunpack.c.h.b16 %v2569
  %v2604 = vunpack.c.l.b16 %v2570
  %v2605 = vunpack.c.h.b16 %v2570
  %v2606 = vunpack.c.l.b16 %v2571
  %v2607 = vunpack.c.h.b16 %v2571
  %v2608 = vunpack.c.l.b16 %v2572
  %v2609 = vunpack.c.h.b16 %v2572
  %v2610 = vunpack.c.l.b16 %v2573
  %v2611 = vunpack.c.h.b16 %v2573
  %v2612 = vunpack.c.l.b16 %v2574
  %v2613 = vunpack.c.h.b16 %v2574
  %v2614 = vunpack.c.l.b16 %v2575
  %v2615 = vunpack.c.h.b16 %v2575
  %v2616 = vunpack.c.l.b16 %v2576
  %v2617 = vunpack.c.h.b16 %v2576
  %v2618 = vunpack.c.l.b16 %v2577
  %v2619 = vunpack.c.h.b16 %v2577
  %v2620 = vunpack.c.l.b16 %v2578
  %v2621 = vunpack.c.h.b16 %v2578
  %v2622 = vunpack.c.l.b16 %v2579
  %v2623 = vunpack.c.h.b16 %v2579
  %v2624 = vunpack.c.l.b16 %v2580
  %v2625 = vunpack.c.h.b16 %v2580
  %v2626 = vunpack.c.l.b16 %v2581
  %v2627 = vunpack.c.h.b16 %v2581
  %v2628 = vunpack.c.l.b16 %v2582
  %v2629 = vunpack.c.h.b16 %v2582
  %v2630 = vunpack.c.l.b16 %v2583
  %v2631 = vunpack.c.h.b16 %v2583
  %v2632 = vpack.c.b16 %v2604, %v2602
  %v2633 = vpack.c.b16 %v2605, %v2603
  %v2634 = vpack.c.b16 %v2608, %v2606
  %v2635 = vpack.c.b16 %v2609, %v2607
  %v2636 = vpack.c.b16 %v2612, %v2610
  %v2637 = vpack.c.b16 %v2613, %v2611
  %v2638 = vpack.c.b16 %v2616, %v2614
  %v2639 = vpack.c.b16 %v2617, %v2615
  %v2640 = vpack.c.b16 %v2620, %v2618
  %v2641 = vpack.c.b16 %v2621, %v2619
  %v2642 = vpack.c.b16 %v2624, %v2622
  %v2643 = vpack.c.b16 %v2625, %v2623
  %v2644 = vpack.c.b16 %v2628, %v2626
  %v2645 = vpack.c.b16 %v2629, %v2627
  %v2646 = vpack.c.b16 %v2630, %v2630
  %v2647 = vpack.c.b16 %v2631, %v2631
  %v2663 = vsel %vm2120, %v2586, 0
  %v2666 = vsel %vm2133, %v2646, 0
  %v2669 = vsel %vm2133, %v2647, 0
  %2671 = vmatprep.subr.bf16.mxu0 %v2669
  %2672 = vmatpush1.bf16.msra.mxu0 %v2666
  %2673 = vmatprep.subr.bf16.mxu0 %v2645
  %2674 = vmatpush1.bf16.msra.mxu0 %v2644
  %2675 = vmatprep.subr.bf16.mxu0 %v2643
  %2676 = vmatpush1.bf16.msra.mxu0 %v2642
  %2677 = vmatprep.subr.bf16.mxu0 %v2641
  %2678 = vmatpush1.bf16.msra.mxu0 %v2640
  %2679 = vmatprep.subr.bf16.mxu0 %v2639
  %2680 = vmatpush1.bf16.msra.mxu0 %v2638
  %2681 = vmatprep.subr.bf16.mxu0 %v2637
  %2682 = vmatpush1.bf16.msra.mxu0 %v2636
  %2683 = vmatprep.subr.bf16.mxu0 %v2635
  %2684 = vmatpush1.bf16.msra.mxu0 %v2634
  %2685 = vmatprep.subr.bf16.mxu0 %v2633
  %2686 = vmatpush1.bf16.msra.mxu0 %v2632
  %2687 = vmatprep.subr.bf16.mxu0 0
  %2688 = vmatpush2.bf16.msra.mxu0 0
  %2689 = vmatprep.subr.bf16.mxu0 0
  %2690 = vmatpush2.bf16.msra.mxu0 0
  %2691 = vmatprep.subr.bf16.mxu0 0
  %2692 = vmatpush2.bf16.msra.mxu0 0
  %2693 = vmatprep.subr.bf16.mxu0 0
  %2694 = vmatpush2.bf16.msra.mxu0 0
  %2695 = vmatprep.subr.bf16.mxu0 0
  %2696 = vmatpush2.bf16.msra.mxu0 0
  %2697 = vmatprep.subr.bf16.mxu0 0
  %2698 = vmatpush2.bf16.msra.mxu0 0
  %2699 = vmatprep.subr.bf16.mxu0 0
  %2700 = vmatpush2.bf16.msra.mxu0 0
  %2701 = vmatprep.subr.bf16.mxu0 0
  %2702 = vmatpush2.bf16.msra.mxu0 0
  %2703 = vmatprep.mubr.bf16.mxu0 0
  %2704 = vmatmul.mubr.bf16.gmra.mxu0 %v2125
  %v2705 = vpop.f32.mrf.mxu0
  %v2706 = vadd.f32 0.0, %v2705
  %v2707 = vpop.f32.mrf.mxu0
  %v2708 = vadd.f32 0.0, %v2707
  %v2709 = vpop.f32.mrf.mxu0
  %v2710 = vadd.f32 0.0, %v2709
  %v2711 = vpop.f32.mrf.mxu0
  %v2712 = vadd.f32 0.0, %v2711
  %2713 = vmatprep.mubr.bf16.mxu0 0
  %2714 = vmatmul.mubr.bf16.gmra.mxu0 %v2128
  %v2715 = vpop.f32.mrf.mxu0
  %v2716 = vadd.f32 0.0, %v2715
  %v2717 = vpop.f32.mrf.mxu0
  %v2718 = vadd.f32 0.0, %v2717
  %v2719 = vpop.f32.mrf.mxu0
  %v2720 = vadd.f32 0.0, %v2719
  %v2721 = vpop.f32.mrf.mxu0
  %v2722 = vadd.f32 0.0, %v2721
  %2723 = vmatprep.mubr.bf16.mxu0 0
  %2724 = vmatmul.mubr.bf16.gmra.mxu0 %v2131
  %v2725 = vpop.f32.mrf.mxu0
  %v2726 = vadd.f32 0.0, %v2725
  %v2727 = vpop.f32.mrf.mxu0
  %v2728 = vadd.f32 0.0, %v2727
  %v2729 = vpop.f32.mrf.mxu0
  %v2730 = vadd.f32 0.0, %v2729
  %v2731 = vpop.f32.mrf.mxu0
  %v2732 = vadd.f32 0.0, %v2731
  %2733 = vmatprep.mubr.bf16.mxu0 0
  %2734 = vmatmul.mubr.bf16.gmra.mxu0 %v2663
  %v2735 = vpop.f32.mrf.mxu0
  %v2736 = vadd.f32 0.0, %v2735
  %v2737 = vpop.f32.mrf.mxu0
  %v2738 = vadd.f32 0.0, %v2737
  %v2739 = vpop.f32.mrf.mxu0
  %v2740 = vadd.f32 0.0, %v2739
  %v2741 = vpop.f32.mrf.mxu0
  %v2742 = vadd.f32 0.0, %v2741
  %2743 = vdwg.mxu0
  %v2744 = vadd.f32 %v2552, %v2706
  %v2745 = vadd.f32 %v2553, %v2708
  %v2746 = vadd.f32 %v2554, %v2710
  %v2747 = vadd.f32 %v2555, %v2712
  %v2748 = vadd.f32 %v2556, %v2716
  %v2749 = vadd.f32 %v2557, %v2718
  %v2750 = vadd.f32 %v2558, %v2720
  %v2751 = vadd.f32 %v2559, %v2722
  %v2752 = vadd.f32 %v2560, %v2726
  %v2753 = vadd.f32 %v2561, %v2728
  %v2754 = vadd.f32 %v2562, %v2730
  %v2755 = vadd.f32 %v2563, %v2732
  %v2756 = vadd.f32 %v2564, %v2736
  %v2757 = vadd.f32 %v2565, %v2738
  %v2758 = vadd.f32 %v2566, %v2740
  %v2759 = vadd.f32 %v2567, %v2742
  %s2760 = scalar_lea.vmem %s3, 480
  %v2761 = vld [vmem:[%s2760] sm:$0xff]
  %v2762 = vld [vmem:[%s2760 + $0x8] sm:$0xff]
  %v2763 = vld [vmem:[%s2760 + $0x10] sm:$0xff]
  %v2764 = vld [vmem:[%s2760 + $0x18] sm:$0xff]
  %v2765 = vld [vmem:[%s2760 + $0x20] sm:$0xff]
  %v2766 = vld [vmem:[%s2760 + $0x28] sm:$0xff]
  %v2767 = vld [vmem:[%s2760 + $0x30] sm:$0xff]
  %v2768 = vld [vmem:[%s2760 + $0x38] sm:$0xff]
  %v2769 = vld [vmem:[%s2760 + $0x40] sm:$0xff]
  %v2770 = vld [vmem:[%s2760 + $0x48] sm:$0xff]
  %v2771 = vld [vmem:[%s2760 + $0x50] sm:$0xff]
  %v2772 = vld [vmem:[%s2760 + $0x58] sm:$0xff]
  %v2773 = vld [vmem:[%s2760 + $0x60] sm:$0xff]
  %v2774 = vld [vmem:[%s2760 + $0x68] sm:$0xff]
  %v2775 = vld [vmem:[%s2760 + $0x70] sm:$0xff]
  %v2791 = vunpack.c.l.b16 %v2761
  %v2792 = vunpack.c.h.b16 %v2761
  %v2793 = vunpack.c.l.b16 %v2762
  %v2794 = vunpack.c.h.b16 %v2762
  %v2795 = vunpack.c.l.b16 %v2763
  %v2796 = vunpack.c.h.b16 %v2763
  %v2797 = vunpack.c.l.b16 %v2764
  %v2798 = vunpack.c.h.b16 %v2764
  %v2799 = vunpack.c.l.b16 %v2765
  %v2800 = vunpack.c.h.b16 %v2765
  %v2801 = vunpack.c.l.b16 %v2766
  %v2802 = vunpack.c.h.b16 %v2766
  %v2803 = vunpack.c.l.b16 %v2767
  %v2804 = vunpack.c.h.b16 %v2767
  %v2805 = vunpack.c.l.b16 %v2768
  %v2806 = vunpack.c.h.b16 %v2768
  %v2807 = vunpack.c.l.b16 %v2769
  %v2808 = vunpack.c.h.b16 %v2769
  %v2809 = vunpack.c.l.b16 %v2770
  %v2810 = vunpack.c.h.b16 %v2770
  %v2811 = vunpack.c.l.b16 %v2771
  %v2812 = vunpack.c.h.b16 %v2771
  %v2813 = vunpack.c.l.b16 %v2772
  %v2814 = vunpack.c.h.b16 %v2772
  %v2815 = vunpack.c.l.b16 %v2773
  %v2816 = vunpack.c.h.b16 %v2773
  %v2817 = vunpack.c.l.b16 %v2774
  %v2818 = vunpack.c.h.b16 %v2774
  %v2819 = vunpack.c.l.b16 %v2775
  %v2820 = vunpack.c.h.b16 %v2775
  %v2821 = vpack.c.b16 %v2793, %v2791
  %v2822 = vpack.c.b16 %v2794, %v2792
  %v2823 = vpack.c.b16 %v2797, %v2795
  %v2824 = vpack.c.b16 %v2798, %v2796
  %v2825 = vpack.c.b16 %v2801, %v2799
  %v2826 = vpack.c.b16 %v2802, %v2800
  %v2827 = vpack.c.b16 %v2805, %v2803
  %v2828 = vpack.c.b16 %v2806, %v2804
  %v2829 = vpack.c.b16 %v2809, %v2807
  %v2830 = vpack.c.b16 %v2810, %v2808
  %v2831 = vpack.c.b16 %v2813, %v2811
  %v2832 = vpack.c.b16 %v2814, %v2812
  %v2833 = vpack.c.b16 %v2817, %v2815
  %v2834 = vpack.c.b16 %v2818, %v2816
  %v2835 = vpack.c.b16 %v2819, %v2819
  %v2836 = vpack.c.b16 %v2820, %v2820
  %v2852 = vsel %vm2120, %v1998, 0
  %v2855 = vsel %vm2133, %v2835, 0
  %v2858 = vsel %vm2133, %v2836, 0
  %2860 = vmatprep.subr.bf16.mxu0 %v2858
  %2861 = vmatpush1.bf16.msra.mxu0 %v2855
  %2862 = vmatprep.subr.bf16.mxu0 %v2834
  %2863 = vmatpush1.bf16.msra.mxu0 %v2833
  %2864 = vmatprep.subr.bf16.mxu0 %v2832
  %2865 = vmatpush1.bf16.msra.mxu0 %v2831
  %2866 = vmatprep.subr.bf16.mxu0 %v2830
  %2867 = vmatpush1.bf16.msra.mxu0 %v2829
  %2868 = vmatprep.subr.bf16.mxu0 %v2828
  %2869 = vmatpush1.bf16.msra.mxu0 %v2827
  %2870 = vmatprep.subr.bf16.mxu0 %v2826
  %2871 = vmatpush1.bf16.msra.mxu0 %v2825
  %2872 = vmatprep.subr.bf16.mxu0 %v2824
  %2873 = vmatpush1.bf16.msra.mxu0 %v2823
  %2874 = vmatprep.subr.bf16.mxu0 %v2822
  %2875 = vmatpush1.bf16.msra.mxu0 %v2821
  %2876 = vmatprep.subr.bf16.mxu0 0
  %2877 = vmatpush2.bf16.msra.mxu0 0
  %2878 = vmatprep.subr.bf16.mxu0 0
  %2879 = vmatpush2.bf16.msra.mxu0 0
  %2880 = vmatprep.subr.bf16.mxu0 0
  %2881 = vmatpush2.bf16.msra.mxu0 0
  %2882 = vmatprep.subr.bf16.mxu0 0
  %2883 = vmatpush2.bf16.msra.mxu0 0
  %2884 = vmatprep.subr.bf16.mxu0 0
  %2885 = vmatpush2.bf16.msra.mxu0 0
  %2886 = vmatprep.subr.bf16.mxu0 0
  %2887 = vmatpush2.bf16.msra.mxu0 0
  %2888 = vmatprep.subr.bf16.mxu0 0
  %2889 = vmatpush2.bf16.msra.mxu0 0
  %2890 = vmatprep.subr.bf16.mxu0 0
  %2891 = vmatpush2.bf16.msra.mxu0 0
  %2892 = vmatprep.mubr.bf16.mxu0 0
  %2893 = vmatmul.mubr.bf16.gmra.mxu0 %v2295
  %v2894 = vpop.f32.mrf.mxu0
  %v2895 = vadd.f32 0.0, %v2894
  %v2896 = vpop.f32.mrf.mxu0
  %v2897 = vadd.f32 0.0, %v2896
  %v2898 = vpop.f32.mrf.mxu0
  %v2899 = vadd.f32 0.0, %v2898
  %v2900 = vpop.f32.mrf.mxu0
  %v2901 = vadd.f32 0.0, %v2900
  %2902 = vmatprep.mubr.bf16.mxu0 0
  %2903 = vmatmul.mubr.bf16.gmra.mxu0 %v2298
  %v2904 = vpop.f32.mrf.mxu0
  %v2905 = vadd.f32 0.0, %v2904
  %v2906 = vpop.f32.mrf.mxu0
  %v2907 = vadd.f32 0.0, %v2906
  %v2908 = vpop.f32.mrf.mxu0
  %v2909 = vadd.f32 0.0, %v2908
  %v2910 = vpop.f32.mrf.mxu0
  %v2911 = vadd.f32 0.0, %v2910
  %2912 = vmatprep.mubr.bf16.mxu0 0
  %2913 = vmatmul.mubr.bf16.gmra.mxu0 %v2471
  %v2914 = vpop.f32.mrf.mxu0
  %v2915 = vadd.f32 0.0, %v2914
  %v2916 = vpop.f32.mrf.mxu0
  %v2917 = vadd.f32 0.0, %v2916
  %v2918 = vpop.f32.mrf.mxu0
  %v2919 = vadd.f32 0.0, %v2918
  %v2920 = vpop.f32.mrf.mxu0
  %v2921 = vadd.f32 0.0, %v2920
  %2922 = vmatprep.mubr.bf16.mxu0 0
  %2923 = vmatmul.mubr.bf16.gmra.mxu0 %v2852
  %v2924 = vpop.f32.mrf.mxu0
  %v2925 = vadd.f32 0.0, %v2924
  %v2926 = vpop.f32.mrf.mxu0
  %v2927 = vadd.f32 0.0, %v2926
  %v2928 = vpop.f32.mrf.mxu0
  %v2929 = vadd.f32 0.0, %v2928
  %v2930 = vpop.f32.mrf.mxu0
  %v2931 = vadd.f32 0.0, %v2930
  %2932 = vdwg.mxu0
  %v2933 = vadd.f32 %v2744, %v2895
  %v2934 = vadd.f32 %v2745, %v2897
  %v2935 = vadd.f32 %v2746, %v2899
  %v2936 = vadd.f32 %v2747, %v2901
  %v2937 = vadd.f32 %v2748, %v2905
  %v2938 = vadd.f32 %v2749, %v2907
  %v2939 = vadd.f32 %v2750, %v2909
  %v2940 = vadd.f32 %v2751, %v2911
  %v2941 = vadd.f32 %v2752, %v2915
  %v2942 = vadd.f32 %v2753, %v2917
  %v2943 = vadd.f32 %v2754, %v2919
  %v2944 = vadd.f32 %v2755, %v2921
  %v2945 = vadd.f32 %v2756, %v2925
  %v2946 = vadd.f32 %v2757, %v2927
  %v2947 = vadd.f32 %v2758, %v2929
  %v2948 = vadd.f32 %v2759, %v2931
  %v2949 = vld [vmem:[%s4] sm:$0x3]
  %v2951 = vlaneseq
  %v2952 = vshrl.u32 %v2951, 7
  %v2953 = vsub.s32 0, %v2952
  %v2954 = vrot.slane %v2949, %v2953
  %v2955 = vlaneseq
  %v2956 = vshrl.u32 %v2955, 7
  %v2957 = vsub.s32 1, %v2956
  %v2958 = vrot.slane %v2949, %v2957
  %v2961 = vadd.f32 %v2933, %v2954
  %v2962 = vadd.f32 %v2934, %v2958
  %v2963 = vadd.f32 %v2935, %v2954
  %v2964 = vadd.f32 %v2936, %v2958
  %v2965 = vadd.f32 %v2937, %v2954
  %v2966 = vadd.f32 %v2938, %v2958
  %v2967 = vadd.f32 %v2939, %v2954
  %v2968 = vadd.f32 %v2940, %v2958
  %v2969 = vadd.f32 %v2941, %v2954
  %v2970 = vadd.f32 %v2942, %v2958
  %v2971 = vadd.f32 %v2943, %v2954
  %v2972 = vadd.f32 %v2944, %v2958
  %v2973 = vadd.f32 %v2945, %v2954
  %v2974 = vadd.f32 %v2946, %v2958
  %v2975 = vadd.f32 %v2947, %v2954
  %v2976 = vadd.f32 %v2948, %v2958
  %2993 = vrot.lane.b32.xlu0 %v2961, 48
  %v2994 = vpop.permute.xlu0 %2993
  %2995 = vrot.lane.b32.xlu0 %v2962, 48
  %v2996 = vpop.permute.xlu0 %2995
  %2997 = vrot.lane.b32.xlu0 %v2963, 48
  %v2998 = vpop.permute.xlu0 %2997
  %2999 = vrot.lane.b32.xlu0 %v2964, 48
  %v3000 = vpop.permute.xlu0 %2999
  %3001 = vrot.lane.b32.xlu0 %v2965, 48
  %v3002 = vpop.permute.xlu0 %3001
  %3003 = vrot.lane.b32.xlu0 %v2966, 48
  %v3004 = vpop.permute.xlu0 %3003
  %3005 = vrot.lane.b32.xlu0 %v2967, 48
  %v3006 = vpop.permute.xlu0 %3005
  %3007 = vrot.lane.b32.xlu0 %v2968, 48
  %v3008 = vpop.permute.xlu0 %3007
  %3009 = vrot.lane.b32.xlu0 %v2969, 48
  %v3010 = vpop.permute.xlu0 %3009
  %3011 = vrot.lane.b32.xlu0 %v2970, 48
  %v3012 = vpop.permute.xlu0 %3011
  %3013 = vrot.lane.b32.xlu0 %v2971, 48
  %v3014 = vpop.permute.xlu0 %3013
  %3015 = vrot.lane.b32.xlu0 %v2972, 48
  %v3016 = vpop.permute.xlu0 %3015
  %3017 = vrot.lane.b32.xlu0 %v2973, 48
  %v3018 = vpop.permute.xlu0 %3017
  %3019 = vrot.lane.b32.xlu0 %v2974, 48
  %v3020 = vpop.permute.xlu0 %3019
  %3021 = vrot.lane.b32.xlu0 %v2975, 48
  %v3022 = vpop.permute.xlu0 %3021
  %3023 = vrot.lane.b32.xlu0 %v2976, 48
  %v3024 = vpop.permute.xlu0 %3023
  %vm3025 = vcmask 392192
  %v3026 = vsel %vm3025, %v2994, %v2996
  %v3027 = vsel %vm3025, %v2998, %v3000
  %v3028 = vsel %vm3025, %v3002, %v3004
  %v3029 = vsel %vm3025, %v3006, %v3008
  %v3030 = vsel %vm3025, %v3010, %v3012
  %v3031 = vsel %vm3025, %v3014, %v3016
  %v3032 = vsel %vm3025, %v3018, %v3020
  %v3033 = vsel %vm3025, %v3022, %v3024
  %v3042 = vmax.f32 %v2961, %v3026
  %v3043 = vmax.f32 %v2963, %v3027
  %v3044 = vmax.f32 %v2965, %v3028
  %v3045 = vmax.f32 %v2967, %v3029
  %v3046 = vmax.f32 %v2969, %v3030
  %v3047 = vmax.f32 %v2971, %v3031
  %v3048 = vmax.f32 %v2973, %v3032
  %v3049 = vmax.f32 %v2975, %v3033
  %v3050 = vmax.f32 %v3042, %v3043
  %v3051 = vmax.f32 %v3044, %v3045
  %v3052 = vmax.f32 %v3046, %v3047
  %v3053 = vmax.f32 %v3048, %v3049
  %v3054 = vmax.f32 %v3050, 0.0
  %v3055 = vmax.f32 %v3051, 0.0
  %v3056 = vmax.f32 %v3052, 0.0
  %v3057 = vmax.f32 %v3053, 0.0
  %v3058 = vpack.c.bf16 %v3055, %v3054
  %v3059 = vpack.c.bf16 %v3057, %v3056
  %v3060 = vld [vmem:[%s5] sm:$0xf]
  %v3061 = vld [vmem:[%s5 + $0x4] sm:$0xf]
  %v3062 = vld [vmem:[%s5 + $0x8] sm:$0xf]
  %v3063 = vld [vmem:[%s5 + $0xc] sm:$0xf]
  %v3064 = vld [vmem:[%s5 + $0x10] sm:$0xf]
  %v3065 = vld [vmem:[%s5 + $0x14] sm:$0xf]
  %v3066 = vld [vmem:[%s5 + $0x18] sm:$0xf]
  %v3067 = vld [vmem:[%s5 + $0x1c] sm:$0xf]
  %v3068 = vld [vmem:[%s5 + $0x20] sm:$0xf]
  %v3069 = vld [vmem:[%s5 + $0x24] sm:$0xf]
  %s3070 = scalar_lea.vmem %s5, 40
  %v3071 = vld [vmem:[%s3070] sm:$0xf]
  %v3072 = vld [vmem:[%s3070 + $0x4] sm:$0xf]
  %v3073 = vld [vmem:[%s3070 + $0x8] sm:$0xf]
  %v3074 = vld [vmem:[%s3070 + $0xc] sm:$0xf]
  %v3075 = vld [vmem:[%s3070 + $0x10] sm:$0xf]
  %v3076 = vld [vmem:[%s3070 + $0x14] sm:$0xf]
  %v3077 = vld [vmem:[%s3070 + $0x18] sm:$0xf]
  %v3078 = vld [vmem:[%s3070 + $0x1c] sm:$0xf]
  %v3079 = vld [vmem:[%s3070 + $0x20] sm:$0xf]
  %v3080 = vld [vmem:[%s3070 + $0x24] sm:$0xf]
  %v3082 = vrot.slane %v3058, 4
  %v3093 = vunpack.c.l.b16 %v3071
  %v3094 = vunpack.c.l.b16 %v3072
  %v3095 = vunpack.c.l.b16 %v3073
  %v3096 = vunpack.c.l.b16 %v3074
  %v3097 = vunpack.c.l.b16 %v3075
  %v3098 = vunpack.c.l.b16 %v3076
  %v3099 = vunpack.c.l.b16 %v3077
  %v3100 = vunpack.c.l.b16 %v3078
  %v3101 = vunpack.c.l.b16 %v3079
  %v3102 = vunpack.c.l.b16 %v3080
  %v3103 = vpack.c.b16 %v3094, %v3093
  %v3104 = vpack.c.b16 %v3096, %v3095
  %v3105 = vpack.c.b16 %v3098, %v3097
  %v3106 = vpack.c.b16 %v3100, %v3099
  %v3107 = vpack.c.b16 %v3102, %v3101
  %vm3113 = vcmask 654336
  %v3115 = vsel %vm3113, %v3082, 0
  %3117 = vmatprep.subr.bf16.mxu0 0
  %3118 = vmatpush1.bf16.msra.mxu0 0
  %3119 = vmatprep.subr.bf16.mxu0 0
  %3120 = vmatpush1.bf16.msra.mxu0 0
  %3121 = vmatprep.subr.bf16.mxu0 0
  %3122 = vmatpush1.bf16.msra.mxu0 0
  %3123 = vmatprep.subr.bf16.mxu0 0
  %3124 = vmatpush1.bf16.msra.mxu0 %v3107
  %3125 = vmatprep.subr.bf16.mxu0 0
  %3126 = vmatpush1.bf16.msra.mxu0 %v3106
  %3127 = vmatprep.subr.bf16.mxu0 0
  %3128 = vmatpush1.bf16.msra.mxu0 %v3105
  %3129 = vmatprep.subr.bf16.mxu0 0
  %3130 = vmatpush1.bf16.msra.mxu0 %v3104
  %3131 = vmatprep.subr.bf16.mxu0 0
  %3132 = vmatpush1.bf16.msra.mxu0 %v3103
  %3133 = vmatprep.subr.bf16.mxu0 0
  %3134 = vmatpush2.bf16.msra.mxu0 0
  %3135 = vmatprep.subr.bf16.mxu0 0
  %3136 = vmatpush2.bf16.msra.mxu0 0
  %3137 = vmatprep.subr.bf16.mxu0 0
  %3138 = vmatpush2.bf16.msra.mxu0 0
  %3139 = vmatprep.subr.bf16.mxu0 0
  %3140 = vmatpush2.bf16.msra.mxu0 0
  %3141 = vmatprep.subr.bf16.mxu0 0
  %3142 = vmatpush2.bf16.msra.mxu0 0
  %3143 = vmatprep.subr.bf16.mxu0 0
  %3144 = vmatpush2.bf16.msra.mxu0 0
  %3145 = vmatprep.subr.bf16.mxu0 0
  %3146 = vmatpush2.bf16.msra.mxu0 0
  %3147 = vmatprep.subr.bf16.mxu0 0
  %3148 = vmatpush2.bf16.msra.mxu0 0
  %3149 = vmatprep.mubr.bf16.mxu0 0
  %3150 = vmatmul.mubr.bf16.gmra.mxu0 %v3115
  %v3151 = vpop.f32.mrf.mxu0
  %v3152 = vadd.f32 0.0, %v3151
  %v3153 = vpop.f32.mrf.mxu0
  %v3154 = vpop.f32.mrf.mxu0
  %v3155 = vpop.f32.mrf.mxu0
  %3156 = vdwg.mxu0
  %v3167 = vunpack.c.l.b16 %v3060
  %v3168 = vunpack.c.l.b16 %v3061
  %v3169 = vunpack.c.l.b16 %v3062
  %v3170 = vunpack.c.l.b16 %v3063
  %v3171 = vunpack.c.l.b16 %v3064
  %v3172 = vunpack.c.l.b16 %v3065
  %v3173 = vunpack.c.l.b16 %v3066
  %v3174 = vunpack.c.l.b16 %v3067
  %v3175 = vunpack.c.l.b16 %v3068
  %v3176 = vunpack.c.l.b16 %v3069
  %v3177 = vpack.c.b16 %v3168, %v3167
  %v3178 = vpack.c.b16 %v3170, %v3169
  %v3179 = vpack.c.b16 %v3172, %v3171
  %v3180 = vpack.c.b16 %v3174, %v3173
  %v3181 = vpack.c.b16 %v3176, %v3175
  %v3188 = vsel %vm3113, %v3058, 0
  %3190 = vmatprep.subr.bf16.mxu0 0
  %3191 = vmatpush1.bf16.msra.mxu0 0
  %3192 = vmatprep.subr.bf16.mxu0 0
  %3193 = vmatpush1.bf16.msra.mxu0 0
  %3194 = vmatprep.subr.bf16.mxu0 0
  %3195 = vmatpush1.bf16.msra.mxu0 0
  %3196 = vmatprep.subr.bf16.mxu0 0
  %3197 = vmatpush1.bf16.msra.mxu0 %v3181
  %3198 = vmatprep.subr.bf16.mxu0 0
  %3199 = vmatpush1.bf16.msra.mxu0 %v3180
  %3200 = vmatprep.subr.bf16.mxu0 0
  %3201 = vmatpush1.bf16.msra.mxu0 %v3179
  %3202 = vmatprep.subr.bf16.mxu0 0
  %3203 = vmatpush1.bf16.msra.mxu0 %v3178
  %3204 = vmatprep.subr.bf16.mxu0 0
  %3205 = vmatpush1.bf16.msra.mxu0 %v3177
  %3206 = vmatprep.subr.bf16.mxu0 0
  %3207 = vmatpush2.bf16.msra.mxu0 0
  %3208 = vmatprep.subr.bf16.mxu0 0
  %3209 = vmatpush2.bf16.msra.mxu0 0
  %3210 = vmatprep.subr.bf16.mxu0 0
  %3211 = vmatpush2.bf16.msra.mxu0 0
  %3212 = vmatprep.subr.bf16.mxu0 0
  %3213 = vmatpush2.bf16.msra.mxu0 0
  %3214 = vmatprep.subr.bf16.mxu0 0
  %3215 = vmatpush2.bf16.msra.mxu0 0
  %3216 = vmatprep.subr.bf16.mxu0 0
  %3217 = vmatpush2.bf16.msra.mxu0 0
  %3218 = vmatprep.subr.bf16.mxu0 0
  %3219 = vmatpush2.bf16.msra.mxu0 0
  %3220 = vmatprep.subr.bf16.mxu0 0
  %3221 = vmatpush2.bf16.msra.mxu0 0
  %3222 = vmatprep.mubr.bf16.mxu0 0
  %3223 = vmatmul.mubr.bf16.gmra.mxu0 %v3188
  %v3224 = vpop.f32.mrf.mxu0
  %v3225 = vadd.f32 %v3152, %v3224
  %v3226 = vpop.f32.mrf.mxu0
  %v3227 = vpop.f32.mrf.mxu0
  %v3228 = vpop.f32.mrf.mxu0
  %3229 = vdwg.mxu0
  %s3230 = scalar_lea.vmem %s5, 80
  %v3231 = vld [vmem:[%s3230] sm:$0xf]
  %v3232 = vld [vmem:[%s3230 + $0x4] sm:$0xf]
  %v3233 = vld [vmem:[%s3230 + $0x8] sm:$0xf]
  %v3234 = vld [vmem:[%s3230 + $0xc] sm:$0xf]
  %v3235 = vld [vmem:[%s3230 + $0x10] sm:$0xf]
  %v3236 = vld [vmem:[%s3230 + $0x14] sm:$0xf]
  %v3237 = vld [vmem:[%s3230 + $0x18] sm:$0xf]
  %v3238 = vld [vmem:[%s3230 + $0x1c] sm:$0xf]
  %v3239 = vld [vmem:[%s3230 + $0x20] sm:$0xf]
  %v3240 = vld [vmem:[%s3230 + $0x24] sm:$0xf]
  %v3251 = vunpack.c.l.b16 %v3231
  %v3252 = vunpack.c.l.b16 %v3232
  %v3253 = vunpack.c.l.b16 %v3233
  %v3254 = vunpack.c.l.b16 %v3234
  %v3255 = vunpack.c.l.b16 %v3235
  %v3256 = vunpack.c.l.b16 %v3236
  %v3257 = vunpack.c.l.b16 %v3237
  %v3258 = vunpack.c.l.b16 %v3238
  %v3259 = vunpack.c.l.b16 %v3239
  %v3260 = vunpack.c.l.b16 %v3240
  %v3261 = vpack.c.b16 %v3252, %v3251
  %v3262 = vpack.c.b16 %v3254, %v3253
  %v3263 = vpack.c.b16 %v3256, %v3255
  %v3264 = vpack.c.b16 %v3258, %v3257
  %v3265 = vpack.c.b16 %v3260, %v3259
  %v3272 = vsel %vm3113, %v3059, 0
  %3274 = vmatprep.subr.bf16.mxu0 0
  %3275 = vmatpush1.bf16.msra.mxu0 0
  %3276 = vmatprep.subr.bf16.mxu0 0
  %3277 = vmatpush1.bf16.msra.mxu0 0
  %3278 = vmatprep.subr.bf16.mxu0 0
  %3279 = vmatpush1.bf16.msra.mxu0 0
  %3280 = vmatprep.subr.bf16.mxu0 0
  %3281 = vmatpush1.bf16.msra.mxu0 %v3265
  %3282 = vmatprep.subr.bf16.mxu0 0
  %3283 = vmatpush1.bf16.msra.mxu0 %v3264
  %3284 = vmatprep.subr.bf16.mxu0 0
  %3285 = vmatpush1.bf16.msra.mxu0 %v3263
  %3286 = vmatprep.subr.bf16.mxu0 0
  %3287 = vmatpush1.bf16.msra.mxu0 %v3262
  %3288 = vmatprep.subr.bf16.mxu0 0
  %3289 = vmatpush1.bf16.msra.mxu0 %v3261
  %3290 = vmatprep.subr.bf16.mxu0 0
  %3291 = vmatpush2.bf16.msra.mxu0 0
  %3292 = vmatprep.subr.bf16.mxu0 0
  %3293 = vmatpush2.bf16.msra.mxu0 0
  %3294 = vmatprep.subr.bf16.mxu0 0
  %3295 = vmatpush2.bf16.msra.mxu0 0
  %3296 = vmatprep.subr.bf16.mxu0 0
  %3297 = vmatpush2.bf16.msra.mxu0 0
  %3298 = vmatprep.subr.bf16.mxu0 0
  %3299 = vmatpush2.bf16.msra.mxu0 0
  %3300 = vmatprep.subr.bf16.mxu0 0
  %3301 = vmatpush2.bf16.msra.mxu0 0
  %3302 = vmatprep.subr.bf16.mxu0 0
  %3303 = vmatpush2.bf16.msra.mxu0 0
  %3304 = vmatprep.subr.bf16.mxu0 0
  %3305 = vmatpush2.bf16.msra.mxu0 0
  %3306 = vmatprep.mubr.bf16.mxu0 0
  %3307 = vmatmul.mubr.bf16.gmra.mxu0 %v3272
  %v3308 = vpop.f32.mrf.mxu0
  %v3309 = vadd.f32 0.0, %v3308
  %v3310 = vpop.f32.mrf.mxu0
  %v3311 = vpop.f32.mrf.mxu0
  %v3312 = vpop.f32.mrf.mxu0
  %3313 = vdwg.mxu0
  %v3314 = vadd.f32 %v3225, %v3309
  %s3315 = scalar_lea.vmem %s5, 120
  %v3316 = vld [vmem:[%s3315] sm:$0xf]
  %v3317 = vld [vmem:[%s3315 + $0x4] sm:$0xf]
  %v3318 = vld [vmem:[%s3315 + $0x8] sm:$0xf]
  %v3319 = vld [vmem:[%s3315 + $0xc] sm:$0xf]
  %v3320 = vld [vmem:[%s3315 + $0x10] sm:$0xf]
  %v3321 = vld [vmem:[%s3315 + $0x14] sm:$0xf]
  %v3322 = vld [vmem:[%s3315 + $0x18] sm:$0xf]
  %v3323 = vld [vmem:[%s3315 + $0x1c] sm:$0xf]
  %v3324 = vld [vmem:[%s3315 + $0x20] sm:$0xf]
  %v3325 = vld [vmem:[%s3315 + $0x24] sm:$0xf]
  %v3327 = vrot.slane %v3059, 4
  %v3338 = vunpack.c.l.b16 %v3316
  %v3339 = vunpack.c.l.b16 %v3317
  %v3340 = vunpack.c.l.b16 %v3318
  %v3341 = vunpack.c.l.b16 %v3319
  %v3342 = vunpack.c.l.b16 %v3320
  %v3343 = vunpack.c.l.b16 %v3321
  %v3344 = vunpack.c.l.b16 %v3322
  %v3345 = vunpack.c.l.b16 %v3323
  %v3346 = vunpack.c.l.b16 %v3324
  %v3347 = vunpack.c.l.b16 %v3325
  %v3348 = vpack.c.b16 %v3339, %v3338
  %v3349 = vpack.c.b16 %v3341, %v3340
  %v3350 = vpack.c.b16 %v3343, %v3342
  %v3351 = vpack.c.b16 %v3345, %v3344
  %v3352 = vpack.c.b16 %v3347, %v3346
  %v3359 = vsel %vm3113, %v3327, 0
  %3361 = vmatprep.subr.bf16.mxu0 0
  %3362 = vmatpush1.bf16.msra.mxu0 0
  %3363 = vmatprep.subr.bf16.mxu0 0
  %3364 = vmatpush1.bf16.msra.mxu0 0
  %3365 = vmatprep.subr.bf16.mxu0 0
  %3366 = vmatpush1.bf16.msra.mxu0 0
  %3367 = vmatprep.subr.bf16.mxu0 0
  %3368 = vmatpush1.bf16.msra.mxu0 %v3352
  %3369 = vmatprep.subr.bf16.mxu0 0
  %3370 = vmatpush1.bf16.msra.mxu0 %v3351
  %3371 = vmatprep.subr.bf16.mxu0 0
  %3372 = vmatpush1.bf16.msra.mxu0 %v3350
  %3373 = vmatprep.subr.bf16.mxu0 0
  %3374 = vmatpush1.bf16.msra.mxu0 %v3349
  %3375 = vmatprep.subr.bf16.mxu0 0
  %3376 = vmatpush1.bf16.msra.mxu0 %v3348
  %3377 = vmatprep.subr.bf16.mxu0 0
  %3378 = vmatpush2.bf16.msra.mxu0 0
  %3379 = vmatprep.subr.bf16.mxu0 0
  %3380 = vmatpush2.bf16.msra.mxu0 0
  %3381 = vmatprep.subr.bf16.mxu0 0
  %3382 = vmatpush2.bf16.msra.mxu0 0
  %3383 = vmatprep.subr.bf16.mxu0 0
  %3384 = vmatpush2.bf16.msra.mxu0 0
  %3385 = vmatprep.subr.bf16.mxu0 0
  %3386 = vmatpush2.bf16.msra.mxu0 0
  %3387 = vmatprep.subr.bf16.mxu0 0
  %3388 = vmatpush2.bf16.msra.mxu0 0
  %3389 = vmatprep.subr.bf16.mxu0 0
  %3390 = vmatpush2.bf16.msra.mxu0 0
  %3391 = vmatprep.subr.bf16.mxu0 0
  %3392 = vmatpush2.bf16.msra.mxu0 0
  %3393 = vmatprep.mubr.bf16.mxu0 0
  %3394 = vmatmul.mubr.bf16.gmra.mxu0 %v3359
  %v3395 = vpop.f32.mrf.mxu0
  %v3396 = vadd.f32 0.0, %v3395
  %v3397 = vpop.f32.mrf.mxu0
  %v3398 = vpop.f32.mrf.mxu0
  %v3399 = vpop.f32.mrf.mxu0
  %3400 = vdwg.mxu0
  %v3401 = vadd.f32 %v3314, %v3396
  %v3402 = vld [vmem:[%s6] sm:$0x1]
  %v3404 = vlaneseq
  %v3405 = vshrl.u32 %v3404, 7
  %v3406 = vsub.s32 0, %v3405
  %v3407 = vrot.slane %v3402, %v3406
  %v3409 = vadd.f32 %v3401, %v3407
  %v3410 = vmax.f32 %v3409, 0.0
  %v3411 = vpack.c.bf16 %v3410, %v3410
  %v3412 = vld [vmem:[%s7] sm:$0xf]
  %v3413 = vld [vmem:[%s7 + $0x4] sm:$0xf]
  %v3414 = vld [vmem:[%s7 + $0x8] sm:$0xf]
  %v3415 = vld [vmem:[%s7 + $0xc] sm:$0xf]
  %v3416 = vld [vmem:[%s7 + $0x10] sm:$0xf]
  %v3417 = vld [vmem:[%s7 + $0x14] sm:$0xf]
  %v3418 = vld [vmem:[%s7 + $0x18] sm:$0xf]
  %v3419 = vld [vmem:[%s7 + $0x1c] sm:$0xf]
  %v3420 = vld [vmem:[%s8] sm:$0x1]
  %v3422 = vlaneseq
  %v3423 = vshrl.u32 %v3422, 7
  %v3424 = vsub.s32 0, %v3423
  %v3425 = vrot.slane %v3420, %v3424
  %v3435 = vunpack.c.l.b16 %v3412
  %v3436 = vunpack.c.l.b16 %v3413
  %v3437 = vunpack.c.l.b16 %v3414
  %v3438 = vunpack.c.l.b16 %v3415
  %v3439 = vunpack.c.l.b16 %v3416
  %v3440 = vunpack.c.l.b16 %v3417
  %v3441 = vunpack.c.l.b16 %v3418
  %v3442 = vunpack.c.l.b16 %v3419
  %v3443 = vpack.c.b16 %v3436, %v3435
  %v3444 = vpack.c.b16 %v3438, %v3437
  %v3445 = vpack.c.b16 %v3440, %v3439
  %v3446 = vpack.c.b16 %v3442, %v3441
  %vm3451 = vcmask 523264
  %v3453 = vsel %vm3451, %v3411, 0
  %3455 = vmatprep.subr.bf16.mxu0 0
  %3456 = vmatpush1.bf16.msra.mxu0 0
  %3457 = vmatprep.subr.bf16.mxu0 0
  %3458 = vmatpush1.bf16.msra.mxu0 0
  %3459 = vmatprep.subr.bf16.mxu0 0
  %3460 = vmatpush1.bf16.msra.mxu0 0
  %3461 = vmatprep.subr.bf16.mxu0 0
  %3462 = vmatpush1.bf16.msra.mxu0 0
  %3463 = vmatprep.subr.bf16.mxu0 0
  %3464 = vmatpush1.bf16.msra.mxu0 %v3446
  %3465 = vmatprep.subr.bf16.mxu0 0
  %3466 = vmatpush1.bf16.msra.mxu0 %v3445
  %3467 = vmatprep.subr.bf16.mxu0 0
  %3468 = vmatpush1.bf16.msra.mxu0 %v3444
  %3469 = vmatprep.subr.bf16.mxu0 0
  %3470 = vmatpush1.bf16.msra.mxu0 %v3443
  %3471 = vmatprep.subr.bf16.mxu0 0
  %3472 = vmatpush2.bf16.msra.mxu0 0
  %3473 = vmatprep.subr.bf16.mxu0 0
  %3474 = vmatpush2.bf16.msra.mxu0 0
  %3475 = vmatprep.subr.bf16.mxu0 0
  %3476 = vmatpush2.bf16.msra.mxu0 0
  %3477 = vmatprep.subr.bf16.mxu0 0
  %3478 = vmatpush2.bf16.msra.mxu0 0
  %3479 = vmatprep.subr.bf16.mxu0 0
  %3480 = vmatpush2.bf16.msra.mxu0 0
  %3481 = vmatprep.subr.bf16.mxu0 0
  %3482 = vmatpush2.bf16.msra.mxu0 0
  %3483 = vmatprep.subr.bf16.mxu0 0
  %3484 = vmatpush2.bf16.msra.mxu0 0
  %3485 = vmatprep.subr.bf16.mxu0 0
  %3486 = vmatpush2.bf16.msra.mxu0 0
  %3487 = vmatprep.mubr.bf16.mxu0 0
  %3488 = vmatmul.mubr.bf16.gmra.mxu0 %v3453
  %v3489 = vpop.f32.mrf.mxu0
  %v3490 = vadd.f32 %v3425, %v3489
  %v3491 = vpop.f32.mrf.mxu0
  %v3492 = vpop.f32.mrf.mxu0
  %v3493 = vpop.f32.mrf.mxu0
  %3494 = vdwg.mxu0
  %3495 = vmax.xlane.f32.xlu0 %v3490
  %v3496 = vpop.xlane.xlu0 %3495
  %v3497 = vsub.f32 %v3490, %v3496
  %v3498 = vmul.f32 %v3497, 1.442695
  %v3499 = vpow.pop %v3498
  %3500 = vadd.xlane.f32.xlu0 %v3499
  %v3501 = vpop.xlane.xlu0 %3500
  %v3502 = vlog2.pop %v3501
  %v3503 = vmul.f32 %v3502, 0.6931472
  %v3504 = vsub.f32 %v3497, %v3503
  %3505 = vst [vmem:[%s9] sm:$0xff] %v3504
  // Predicated region
  $region38: #{net_forward.1} parent=0 // pred_check
    _
  $region39: #{net_forward.1} parent=0 // pred_check_branch
    %3507 = sbr.rel (0) target = $region41
  $region40: #{net_forward.1} parent=0 // pred_region
    _
  $region41: #{net_forward.1} parent=0 // pred_fallthru
    _
  // Predicated region
  $region42: #{net_forward.1} parent=0 // pred_check
    _
  $region43: #{net_forward.1} parent=0 // pred_check_branch
    %3509 = sbr.rel (0) target = $region45
  $region44: #{net_forward.1} parent=0 // pred_region
    _
  $region45: #{net_forward.1} parent=0 // pred_fallthru
    _

</llo_original>
